<compile_context>
chip_gen: v5e
topology: v5e:2x2
jax: 0.10.0
libtpu: 0.0.40
codegen_flags: <defaults>
</compile_context>

<pallas_src>
import math
from typing import NamedTuple, Tuple

import jax
import jax.numpy as jnp
from jax.experimental import pallas as pl
from jax.experimental.pallas import tpu as pltpu

NEG_SLOPE = 0.2


# ---------------------------------------------------------------------------
# small helpers
# ---------------------------------------------------------------------------
def _round_up(x, m):
    return ((x + m - 1) // m) * m


def _cdiv(a, b):
    return (a + b - 1) // b


def _leaky(x):
    return jnp.where(x > 0, x, NEG_SLOPE * x)


def _pad_cols(a, cols):
    return jnp.pad(a, ((0, 0), (0, cols - a.shape[1])))


def _pad2(a, rows, cols):
    return jnp.pad(a, ((0, rows - a.shape[0]), (0, cols - a.shape[1])))


def _vmem_budget_bytes():
    """~75% of physical VMEM (64 MiB v7x, 128 MiB v5e/v6e); safe fallback."""
    cap = 64 << 20
    try:
        info = pltpu.get_tpu_info()
        cap = int(getattr(info, "vmem_capacity_bytes", cap) or cap)
    except Exception:
        pass
    return int(cap * 3 // 4)


def _row_tile(n_rows, per_row_bytes, weight_bytes, budget, cap=2048):
    """Largest row tile that fits the VMEM budget; keep >=2 grid steps
    when possible so v7x's 2 TensorCores both get work."""
    avail = max(budget - 2 * weight_bytes, 1 << 20)
    by_budget = max(8, (avail // max(per_row_bytes, 1)) // 8 * 8)
    t = min(cap, by_budget, _round_up(n_rows, 8))
    if n_rows > 8 and _cdiv(n_rows, t) < 2:
        t = _round_up(_cdiv(n_rows, 2), 8)
    return max(8, t)


class MLPMeta(NamedTuple):
    x_dim: int
    z_dim: int
    h1: int
    h2: int
    out_dim: int
    n_blocks1: int
    shortcuts2: Tuple[bool, ...]


# ---------------------------------------------------------------------------
# fused kernels
# ---------------------------------------------------------------------------
def _make_stage1_kernel(n_blocks, num_views):
    """first_fc + n_blocks x (ResBlockFC with fused z offset) + view-mean.

    refs = (x, z, wf, bf, [wz, bz, w1, b1, w2, b2]*n_blocks, o_ref).
    Grid = (row_tiles, views); the output block is constant along the view
    axis and used directly as the mean accumulator (f32).
    """
    inv_v = 1.0 / float(num_views)

    def kernel(*refs):
        x_ref, z_ref = refs[0], refs[1]
        w = refs[2:2 + 2 + 6 * n_blocks]
        o_ref = refs[-1]
        v = pl.program_id(1)

        wf, bf = w[0], w[1]
        cdt = wf.dtype                      # compute dtype for matmul operands
        x = x_ref[...].astype(cdt)
        z = z_ref[...].astype(cdt)

        h = jnp.dot(x, wf[...], preferred_element_type=jnp.float32) + bf[...]
        for l in range(n_blocks):
            wz, bz, w1, b1, w2, b2 = w[2 + 6 * l: 8 + 6 * l]
            zp = jnp.dot(z, wz[...],
                         preferred_element_type=jnp.float32) + bz[...]
            a = _leaky(h + zp).astype(cdt)
            h1 = _leaky(jnp.dot(a, w1[...],
                                preferred_element_type=jnp.float32) + b1[...])
            h = (jnp.dot(h1.astype(cdt), w2[...],
                         preferred_element_type=jnp.float32) + b2[...] + h)

        @pl.when(v == 0)
        def _init():
            o_ref[...] = jnp.zeros_like(o_ref)

        o_ref[...] += h

        @pl.when(v == num_views - 1)
        def _finalize():
            o_ref[...] = o_ref[...] * inv_v

    return kernel


def _make_stage2_kernel(shortcut_flags):
    """All stage-2 ResBlockFC layers (z = 0) + final LeakyReLU + last_fc.

    refs = (x, [w1, b1, w2, b2 (, ws, bs)]*n_layers, wl, bl, o_ref).
    """
    def kernel(*refs):
        x_ref = refs[0]
        o_ref = refs[-1]
        w = refs[1:-1]

        h = x_ref[...]                      # f32
        idx = 0
        for has_sc in shortcut_flags:
            w1, b1, w2, b2 = w[idx:idx + 4]
            idx += 4
            cdt = w1.dtype
            if has_sc:
                ws, bs = w[idx:idx + 2]
                idx += 2
                identity = jnp.dot(h.astype(cdt), ws[...],
                                   preferred_element_type=jnp.float32) + bs[...]
            else:
                identity = h
            a = _leaky(h).astype(cdt)
            h1 = _leaky(jnp.dot(a, w1[...],
                                preferred_element_type=jnp.float32) + b1[...])
            h = (jnp.dot(h1.astype(cdt), w2[...],
                         preferred_element_type=jnp.float32) + b2[...]
                 + identity)

        wl, bl = w[idx], w[idx + 1]
        a = _leaky(h).astype(wl.dtype)
        o_ref[...] = (jnp.dot(a, wl[...],
                              preferred_element_type=jnp.float32)
                      + bl[...]).astype(o_ref.dtype)

    return kernel


# ---------------------------------------------------------------------------
# one-time weight preparation (pad to 128-multiples, cast matmul weights)
# ---------------------------------------------------------------------------
def prepare_mlp(params, compute_dtype=jnp.bfloat16):
    x_dim = params["first_fc"]["w"].shape[0]
    z_dim = params["c1_projs"][0]["w"].shape[0]
    h1 = params["first_fc"]["w"].shape[1]
    h2 = params["last_fc"]["w"].shape[0]
    out_dim = params["last_fc"]["w"].shape[1]
    h1_p = _round_up(h1, 128)
    h2_p = _round_up(h2, 128)
    out_p = _round_up(out_dim, 128)

    def W(a, rows, cols):                    # matmul weights -> compute dtype
        return _pad2(a, rows, cols).astype(compute_dtype)

    def Bf(a, cols):                         # biases stay f32
        return _pad_cols(a, cols).astype(jnp.float32)

    s1 = [W(params["first_fc"]["w"], x_dim, h1_p),
          Bf(params["first_fc"]["b"], h1_p)]
    for blk, proj in zip(params["blocks"], params["c1_projs"]):
        s1 += [W(proj["w"], z_dim, h1_p), Bf(proj["b"], h1_p),
               W(blk["w1"], h1_p, h1_p), Bf(blk["b1"], h1_p),
               W(blk["w2"], h1_p, h1_p), Bf(blk["b2"], h1_p)]

    s2, shortcuts, in_p = [], [], h1_p
    for blk in params["blocks2"]:
        s2 += [W(blk["w1"], in_p, h2_p), Bf(blk["b1"], h2_p),
               W(blk["w2"], h2_p, h2_p), Bf(blk["b2"], h2_p)]
        has_sc = "ws" in blk
        if has_sc:
            s2 += [W(blk["ws"], in_p, h2_p), Bf(blk["bs"], h2_p)]
        shortcuts.append(has_sc)
        in_p = h2_p
    s2 += [W(params["last_fc"]["w"], h2_p, out_p),
           Bf(params["last_fc"]["b"], out_p)]

    prep = {"s1": s1, "s2": s2}
    meta = MLPMeta(x_dim=x_dim, z_dim=z_dim, h1=h1, h2=h2, out_dim=out_dim,
                   n_blocks1=len(params["blocks"]),
                   shortcuts2=tuple(shortcuts))
    return prep, meta


# ---------------------------------------------------------------------------
# forward
# ---------------------------------------------------------------------------
def mlp_forward(prep, x, z, meta, view_dim=1):
    """x: [..., x_dim] with a view axis at `view_dim`; z broadcastable to it."""
    lead = x.shape[:-1]
    z = jnp.broadcast_to(z, lead + (z.shape[-1],))
    V = x.shape[view_dim]

    # Views to the front, everything else flattened into rows.
    xv = jnp.moveaxis(x, view_dim, 0)
    zv = jnp.moveaxis(z, view_dim, 0)
    out_lead = xv.shape[1:-1]
    n2 = math.prod(out_lead)
    xv = xv.reshape(V, n2, meta.x_dim).astype(jnp.float32)
    zv = zv.reshape(V, n2, meta.z_dim).astype(jnp.float32)

    s1, s2 = prep["s1"], prep["s2"]
    h1_p = s1[0].shape[1]
    h2_p = s2[-2].shape[0]
    out_p = s2[-2].shape[1]

    # --- tile sizing from an explicit VMEM budget (v7x 64 MiB safe) ---------
    budget = _vmem_budget_bytes()
    w1_bytes = sum(int(a.size) * a.dtype.itemsize for a in s1)
    w2_bytes = sum(int(a.size) * a.dtype.itemsize for a in s2)
    f32b = 4
    per_row1 = (2 * (meta.x_dim + meta.z_dim) * f32b   # double-buffered x/z in
                + 2 * h1_p * f32b                      # output block
                + 4 * h1_p * f32b)                     # in-kernel temporaries
    per_row2 = 2 * h1_p * f32b + 2 * out_p * f32b + 4 * h2_p * f32b
    tile = min(_row_tile(n2, per_row1, w1_bytes, budget),
               _row_tile(n2, per_row2, w2_bytes, budget))
    n_pad = _round_up(n2, tile)
    if n_pad != n2:
        xv = jnp.pad(xv, ((0, 0), (0, n_pad - n2), (0, 0)))
        zv = jnp.pad(zv, ((0, 0), (0, n_pad - n2), (0, 0)))

    # --- stage 1: first_fc + z-ResBlocks + fused view-mean ------------------
    nb1 = meta.n_blocks1
    flops1 = 2 * V * n2 * (meta.x_dim * meta.h1
                           + nb1 * (meta.z_dim * meta.h1
                                    + 2 * meta.h1 * meta.h1))
    bytes1 = (int(xv.size) * xv.dtype.itemsize
              + int(zv.size) * zv.dtype.itemsize
              + w1_bytes + n_pad * h1_p * f32b)
    in_specs1 = ([pl.BlockSpec((None, tile, meta.x_dim),
                               lambda i, v: (v, i, 0)),
                  pl.BlockSpec((None, tile, meta.z_dim),
                               lambda i, v: (v, i, 0))]
                 + [pl.BlockSpec(a.shape, lambda i, v: (0, 0)) for a in s1])
    out1 = pl.pallas_call(
        _make_stage1_kernel(nb1, V),
        out_shape=jax.ShapeDtypeStruct((n_pad, h1_p), jnp.float32),
        grid_spec=pltpu.PrefetchScalarGridSpec(
            num_scalar_prefetch=0,
            grid=(n_pad // tile, V),
            in_specs=in_specs1,
            out_specs=pl.BlockSpec((tile, h1_p), lambda i, v: (i, 0))),
        compiler_params=pltpu.CompilerParams(
            dimension_semantics=("parallel", "arbitrary"),
            vmem_limit_bytes=budget),
        cost_estimate=pl.CostEstimate(flops=int(flops1), transcendentals=0,
                                      bytes_accessed=int(bytes1)),
    )(xv, zv, *s1)

    # --- stage 2: ResBlocks (no z) + LeakyReLU + last_fc ---------------------
    flops2, in_d = 0, meta.h1
    for has_sc in meta.shortcuts2:
        flops2 += 2 * n2 * (in_d * meta.h2 + meta.h2 * meta.h2)
        if has_sc:
            flops2 += 2 * n2 * in_d * meta.h2
        in_d = meta.h2
    flops2 += 2 * n2 * meta.h2 * meta.out_dim
    bytes2 = n_pad * h1_p * f32b + w2_bytes + n_pad * out_p * f32b
    in_specs2 = ([pl.BlockSpec((tile, h1_p), lambda i: (i, 0))]
                 + [pl.BlockSpec(a.shape, lambda i: (0, 0)) for a in s2])
    out2 = pl.pallas_call(
        _make_stage2_kernel(meta.shortcuts2),
        out_shape=jax.ShapeDtypeStruct((n_pad, out_p), jnp.float32),
        grid_spec=pltpu.PrefetchScalarGridSpec(
            num_scalar_prefetch=0,
            grid=(n_pad // tile,),
            in_specs=in_specs2,
            out_specs=pl.BlockSpec((tile, out_p), lambda i: (i, 0))),
        compiler_params=pltpu.CompilerParams(
            dimension_semantics=("parallel",),
            vmem_limit_bytes=budget),
        cost_estimate=pl.CostEstimate(flops=int(flops2), transcendentals=0,
                                      bytes_accessed=int(bytes2)),
    )(out1, *s2)

    out = out2[:n2, :meta.out_dim]
    return out.reshape(out_lead + (meta.out_dim,))


# ---------------------------------------------------------------------------
# plain-JAX reference (unpadded params, mirrors the PyTorch forward)
# ---------------------------------------------------------------------------
def mlp_forward_ref(params, x, z, view_dim=1):
    out = x @ params["first_fc"]["w"] + params["first_fc"]["b"]
    for blk, proj in zip(params["blocks"], params["c1_projs"]):
        zp = z @ proj["w"] + proj["b"]
        identity = out
        h = _leaky(out + zp)
        h1 = _leaky(h @ blk["w1"] + blk["b1"])
        out = h1 @ blk["w2"] + blk["b2"] + identity
    out = jnp.mean(out, axis=view_dim)
    for blk in params["blocks2"]:
        identity = out @ blk["ws"] + blk["bs"] if "ws" in blk else out
        h = _leaky(out)
        h1 = _leaky(h @ blk["w1"] + blk["b1"])
        out = h1 @ blk["w2"] + blk["b2"] + identity
    out = _leaky(out)
    return out @ params["last_fc"]["w"] + params["last_fc"]["b"]


# ---------------------------------------------------------------------------
# parameter init (mirrors the PyTorch module's __init__)
# ---------------------------------------------------------------------------
def init_mlp_params(key, x_dim, z_dim, hidden_dim_1, hidden_dim_2,
                    n_layers_stage1=3, n_layers_stage2=3, dtype=jnp.float32):
    keys = iter(jax.random.split(key, 8 + 4 * (n_layers_stage1 + n_layers_stage2)))

    def kaiming(k, fan_in, fan_out):  # kaiming_normal_(a=0.2, mode='fan_in')
        gain = (2.0 / (1.0 + NEG_SLOPE ** 2)) ** 0.5
        return jax.random.normal(k, (fan_in, fan_out), dtype) * (gain / fan_in ** 0.5)

    def default_linear(k, fan_in, fan_out):  # nn.Linear default init
        kw, kb = jax.random.split(k)
        bound = 1.0 / fan_in ** 0.5
        w = jax.random.uniform(kw, (fan_in, fan_out), dtype, -bound, bound)
        b = jax.random.uniform(kb, (1, fan_out), dtype, -bound, bound)
        return w, b

    def resblock(in_dim, out_dim):
        hidden = out_dim
        p = {"w1": kaiming(next(keys), in_dim, hidden),
             "b1": jnp.zeros((1, hidden), dtype),
             "w2": jnp.zeros((hidden, out_dim), dtype),
             "b2": jnp.zeros((1, out_dim), dtype)}
        if in_dim != out_dim:
            p["ws"], p["bs"] = default_linear(next(keys), in_dim, out_dim)
        return p

    params = {
        "first_fc": {"w": kaiming(next(keys), x_dim, hidden_dim_1),
                     "b": jnp.zeros((1, hidden_dim_1), dtype)},
        "blocks": [resblock(hidden_dim_1, hidden_dim_1)
                   for _ in range(n_layers_stage1)],
        "c1_projs": [dict(zip(("w", "b"),
                              default_linear(next(keys), z_dim, hidden_dim_1)))
                     for _ in range(n_layers_stage1)],
        "blocks2": [resblock(hidden_dim_1 if i == 0 else hidden_dim_2,
                             hidden_dim_2)
                    for i in range(n_layers_stage2)],
    }
    wl, bl = default_linear(next(keys), hidden_dim_2, 3)
    params["last_fc"] = {"w": wl, "b": bl}
    return params


# ---------------------------------------------------------------------------
if __name__ == "__main__":
    key = jax.random.PRNGKey(0)
    kx, kz, kp, kf = jax.random.split(key, 4)

    B, V, P = 2, 4, 8                     # batch, views (view_dim=1), points
    X_DIM, Z_DIM, H1, H2 = 16, 8, 32, 48  # H1 != H2 -> exercises the shortcut path

    x = jax.random.normal(kx, (B, V, P, X_DIM), jnp.float32)
    z = jax.random.normal(kz, (B, V, P, Z_DIM), jnp.float32)

    params = init_mlp_params(kp, X_DIM, Z_DIM, H1, H2)
    # The spec zero-inits fc2 weights (blocks would reduce to identities); give
    # them small random values so the test exercises the full datapath.
    fkeys = iter(jax.random.split(kf, 8))
    for blk in params["blocks"] + params["blocks2"]:
        blk["w2"] = 0.05 * jax.random.normal(next(fkeys), blk["w2"].shape,
                                             jnp.float32)

    ref = mlp_forward_ref(params, x, z)

    # 1) exact-semantics check: f32 compute path, tight tolerance
    prep32, meta = prepare_mlp(params, compute_dtype=jnp.float32)
    fwd32 = jax.jit(lambda p, xx, zz: mlp_forward(p, xx, zz, meta))
    out32 = jax.block_until_ready(fwd32(prep32, x, z))
    assert out32.shape == (B, P, 3), out32.shape
    err32 = float(jnp.max(jnp.abs(out32 - ref)))
    assert err32 < 2e-3, f"f32 path max abs err {err32}"

    # 2) performance path: bf16 matmul operands, f32 accumulation/residuals
    prep16, meta16 = prepare_mlp(params, compute_dtype=jnp.bfloat16)
    fwd16 = jax.jit(lambda p, xx, zz: mlp_forward(p, xx, zz, meta16))
    out16 = jax.block_until_ready(fwd16(prep16, x, z))
    assert out16.shape == (B, P, 3), out16.shape
    scale = max(1.0, float(jnp.max(jnp.abs(ref))))
    err16 = float(jnp.max(jnp.abs(out16 - ref)))
    assert err16 < 5e-2 * scale, f"bf16 path max abs err {err16} (scale {scale})"

    print("KERNEL_OK")
</pallas_src>

<mosaic_0001>
module attributes {stable_mosaic.version = 11 : i64} {
  func.func @kernel(%arg0: i32, %arg1: memref<8x128xf32, #tpu.memory_space<vmem>>, %arg2: memref<128x128xf32, #tpu.memory_space<vmem>>, %arg3: memref<1x128xf32, #tpu.memory_space<vmem>>, %arg4: memref<128x128xf32, #tpu.memory_space<vmem>>, %arg5: memref<1x128xf32, #tpu.memory_space<vmem>>, %arg6: memref<128x128xf32, #tpu.memory_space<vmem>>, %arg7: memref<1x128xf32, #tpu.memory_space<vmem>>, %arg8: memref<128x128xf32, #tpu.memory_space<vmem>>, %arg9: memref<1x128xf32, #tpu.memory_space<vmem>>, %arg10: memref<128x128xf32, #tpu.memory_space<vmem>>, %arg11: memref<1x128xf32, #tpu.memory_space<vmem>>, %arg12: memref<128x128xf32, #tpu.memory_space<vmem>>, %arg13: memref<1x128xf32, #tpu.memory_space<vmem>>, %arg14: memref<128x128xf32, #tpu.memory_space<vmem>>, %arg15: memref<1x128xf32, #tpu.memory_space<vmem>>, %arg16: memref<128x128xf32, #tpu.memory_space<vmem>>, %arg17: memref<1x128xf32, #tpu.memory_space<vmem>>, %arg18: memref<8x128xf32, #tpu.memory_space<vmem>>) attributes {dimension_semantics = [#tpu.dimension_semantics<parallel>], iteration_bounds = array<i64: 2>, scalar_prefetch = 0 : i64, scratch_operands = 0 : i64, tpu.core_type = #tpu.core_type<tc>, window_params = [{transform_indices = @transform_0, window_bounds = array<i64: 8, 128>}, {pipeline_mode = #tpu.pipeline_mode<synchronous>, transform_indices = @transform_1, window_bounds = array<i64: 128, 128>}, {pipeline_mode = #tpu.pipeline_mode<synchronous>, transform_indices = @transform_2, window_bounds = array<i64: 1, 128>}, {pipeline_mode = #tpu.pipeline_mode<synchronous>, transform_indices = @transform_3, window_bounds = array<i64: 128, 128>}, {pipeline_mode = #tpu.pipeline_mode<synchronous>, transform_indices = @transform_4, window_bounds = array<i64: 1, 128>}, {pipeline_mode = #tpu.pipeline_mode<synchronous>, transform_indices = @transform_5, window_bounds = array<i64: 128, 128>}, {pipeline_mode = #tpu.pipeline_mode<synchronous>, transform_indices = @transform_6, window_bounds = array<i64: 1, 128>}, {pipeline_mode = #tpu.pipeline_mode<synchronous>, transform_indices = @transform_7, window_bounds = array<i64: 128, 128>}, {pipeline_mode = #tpu.pipeline_mode<synchronous>, transform_indices = @transform_8, window_bounds = array<i64: 1, 128>}, {pipeline_mode = #tpu.pipeline_mode<synchronous>, transform_indices = @transform_9, window_bounds = array<i64: 128, 128>}, {pipeline_mode = #tpu.pipeline_mode<synchronous>, transform_indices = @transform_10, window_bounds = array<i64: 1, 128>}, {pipeline_mode = #tpu.pipeline_mode<synchronous>, transform_indices = @transform_11, window_bounds = array<i64: 128, 128>}, {pipeline_mode = #tpu.pipeline_mode<synchronous>, transform_indices = @transform_12, window_bounds = array<i64: 1, 128>}, {pipeline_mode = #tpu.pipeline_mode<synchronous>, transform_indices = @transform_13, window_bounds = array<i64: 128, 128>}, {pipeline_mode = #tpu.pipeline_mode<synchronous>, transform_indices = @transform_14, window_bounds = array<i64: 1, 128>}, {pipeline_mode = #tpu.pipeline_mode<synchronous>, transform_indices = @transform_15, window_bounds = array<i64: 128, 128>}, {pipeline_mode = #tpu.pipeline_mode<synchronous>, transform_indices = @transform_16, window_bounds = array<i64: 1, 128>}, {transform_indices = @transform_17, window_bounds = array<i64: 8, 128>}]} {
    %c0 = arith.constant 0 : index
    %c0_0 = arith.constant 0 : index
    %0 = vector.load %arg1[%c0, %c0_0] : memref<8x128xf32, #tpu.memory_space<vmem>>, vector<8x128xf32>
    %c0_1 = arith.constant 0 : index
    %c0_2 = arith.constant 0 : index
    %1 = vector.load %arg6[%c0_1, %c0_2] : memref<128x128xf32, #tpu.memory_space<vmem>>, vector<128x128xf32>
    %cst = arith.constant dense<0.000000e+00> : vector<8x128xf32>
    %2 = tpu.matmul %0, %1, %cst {dimension_numbers = #tpu.dot_dimension_numbers<[1], [0], [0], [1], [0, 0, 1, 1], [], []>} : vector<8x128xf32>, vector<128x128xf32>, vector<8x128xf32> -> vector<8x128xf32>
    %c0_3 = arith.constant 0 : index
    %c0_4 = arith.constant 0 : index
    %3 = vector.load %arg7[%c0_3, %c0_4] : memref<1x128xf32, #tpu.memory_space<vmem>>, vector<1x128xf32>
    %4 = vector.broadcast %3 : vector<1x128xf32> to vector<8x128xf32>
    %5 = arith.addf %2, %4 : vector<8x128xf32>
    %cst_5 = arith.constant 0.000000e+00 : f32
    %6 = vector.broadcast %cst_5 : f32 to vector<8x128xf32>
    %7 = arith.cmpf ogt, %0, %6 : vector<8x128xf32>
    %cst_6 = arith.constant 2.000000e-01 : f32
    %8 = vector.broadcast %cst_6 : f32 to vector<8x128xf32>
    %9 = arith.mulf %8, %0 : vector<8x128xf32>
    %10 = arith.select %7, %0, %9 : vector<8x128xi1>, vector<8x128xf32>
    %c0_7 = arith.constant 0 : index
    %c0_8 = arith.constant 0 : index
    %11 = vector.load %arg2[%c0_7, %c0_8] : memref<128x128xf32, #tpu.memory_space<vmem>>, vector<128x128xf32>
    %cst_9 = arith.constant dense<0.000000e+00> : vector<8x128xf32>
    %12 = tpu.matmul %10, %11, %cst_9 {dimension_numbers = #tpu.dot_dimension_numbers<[1], [0], [0], [1], [0, 0, 1, 1], [], []>} : vector<8x128xf32>, vector<128x128xf32>, vector<8x128xf32> -> vector<8x128xf32>
    %c0_10 = arith.constant 0 : index
    %c0_11 = arith.constant 0 : index
    %13 = vector.load %arg3[%c0_10, %c0_11] : memref<1x128xf32, #tpu.memory_space<vmem>>, vector<1x128xf32>
    %14 = vector.broadcast %13 : vector<1x128xf32> to vector<8x128xf32>
    %15 = arith.addf %12, %14 : vector<8x128xf32>
    %cst_12 = arith.constant 0.000000e+00 : f32
    %16 = vector.broadcast %cst_12 : f32 to vector<8x128xf32>
    %17 = arith.cmpf ogt, %15, %16 : vector<8x128xf32>
    %cst_13 = arith.constant 2.000000e-01 : f32
    %18 = vector.broadcast %cst_13 : f32 to vector<8x128xf32>
    %19 = arith.mulf %18, %15 : vector<8x128xf32>
    %20 = arith.select %17, %15, %19 : vector<8x128xi1>, vector<8x128xf32>
    %c0_14 = arith.constant 0 : index
    %c0_15 = arith.constant 0 : index
    %21 = vector.load %arg4[%c0_14, %c0_15] : memref<128x128xf32, #tpu.memory_space<vmem>>, vector<128x128xf32>
    %cst_16 = arith.constant dense<0.000000e+00> : vector<8x128xf32>
    %22 = tpu.matmul %20, %21, %cst_16 {dimension_numbers = #tpu.dot_dimension_numbers<[1], [0], [0], [1], [0, 0, 1, 1], [], []>} : vector<8x128xf32>, vector<128x128xf32>, vector<8x128xf32> -> vector<8x128xf32>
    %c0_17 = arith.constant 0 : index
    %c0_18 = arith.constant 0 : index
    %23 = vector.load %arg5[%c0_17, %c0_18] : memref<1x128xf32, #tpu.memory_space<vmem>>, vector<1x128xf32>
    %24 = vector.broadcast %23 : vector<1x128xf32> to vector<8x128xf32>
    %25 = arith.addf %22, %24 : vector<8x128xf32>
    %26 = arith.addf %25, %5 : vector<8x128xf32>
    %cst_19 = arith.constant 0.000000e+00 : f32
    %27 = vector.broadcast %cst_19 : f32 to vector<8x128xf32>
    %28 = arith.cmpf ogt, %26, %27 : vector<8x128xf32>
    %cst_20 = arith.constant 2.000000e-01 : f32
    %29 = vector.broadcast %cst_20 : f32 to vector<8x128xf32>
    %30 = arith.mulf %29, %26 : vector<8x128xf32>
    %31 = arith.select %28, %26, %30 : vector<8x128xi1>, vector<8x128xf32>
    %c0_21 = arith.constant 0 : index
    %c0_22 = arith.constant 0 : index
    %32 = vector.load %arg8[%c0_21, %c0_22] : memref<128x128xf32, #tpu.memory_space<vmem>>, vector<128x128xf32>
    %cst_23 = arith.constant dense<0.000000e+00> : vector<8x128xf32>
    %33 = tpu.matmul %31, %32, %cst_23 {dimension_numbers = #tpu.dot_dimension_numbers<[1], [0], [0], [1], [0, 0, 1, 1], [], []>} : vector<8x128xf32>, vector<128x128xf32>, vector<8x128xf32> -> vector<8x128xf32>
    %c0_24 = arith.constant 0 : index
    %c0_25 = arith.constant 0 : index
    %34 = vector.load %arg9[%c0_24, %c0_25] : memref<1x128xf32, #tpu.memory_space<vmem>>, vector<1x128xf32>
    %35 = vector.broadcast %34 : vector<1x128xf32> to vector<8x128xf32>
    %36 = arith.addf %33, %35 : vector<8x128xf32>
    %cst_26 = arith.constant 0.000000e+00 : f32
    %37 = vector.broadcast %cst_26 : f32 to vector<8x128xf32>
    %38 = arith.cmpf ogt, %36, %37 : vector<8x128xf32>
    %cst_27 = arith.constant 2.000000e-01 : f32
    %39 = vector.broadcast %cst_27 : f32 to vector<8x128xf32>
    %40 = arith.mulf %39, %36 : vector<8x128xf32>
    %41 = arith.select %38, %36, %40 : vector<8x128xi1>, vector<8x128xf32>
    %c0_28 = arith.constant 0 : index
    %c0_29 = arith.constant 0 : index
    %42 = vector.load %arg10[%c0_28, %c0_29] : memref<128x128xf32, #tpu.memory_space<vmem>>, vector<128x128xf32>
    %cst_30 = arith.constant dense<0.000000e+00> : vector<8x128xf32>
    %43 = tpu.matmul %41, %42, %cst_30 {dimension_numbers = #tpu.dot_dimension_numbers<[1], [0], [0], [1], [0, 0, 1, 1], [], []>} : vector<8x128xf32>, vector<128x128xf32>, vector<8x128xf32> -> vector<8x128xf32>
    %c0_31 = arith.constant 0 : index
    %c0_32 = arith.constant 0 : index
    %44 = vector.load %arg11[%c0_31, %c0_32] : memref<1x128xf32, #tpu.memory_space<vmem>>, vector<1x128xf32>
    %45 = vector.broadcast %44 : vector<1x128xf32> to vector<8x128xf32>
    %46 = arith.addf %43, %45 : vector<8x128xf32>
    %47 = arith.addf %46, %26 : vector<8x128xf32>
    %cst_33 = arith.constant 0.000000e+00 : f32
    %48 = vector.broadcast %cst_33 : f32 to vector<8x128xf32>
    %49 = arith.cmpf ogt, %47, %48 : vector<8x128xf32>
    %cst_34 = arith.constant 2.000000e-01 : f32
    %50 = vector.broadcast %cst_34 : f32 to vector<8x128xf32>
    %51 = arith.mulf %50, %47 : vector<8x128xf32>
    %52 = arith.select %49, %47, %51 : vector<8x128xi1>, vector<8x128xf32>
    %c0_35 = arith.constant 0 : index
    %c0_36 = arith.constant 0 : index
    %53 = vector.load %arg12[%c0_35, %c0_36] : memref<128x128xf32, #tpu.memory_space<vmem>>, vector<128x128xf32>
    %cst_37 = arith.constant dense<0.000000e+00> : vector<8x128xf32>
    %54 = tpu.matmul %52, %53, %cst_37 {dimension_numbers = #tpu.dot_dimension_numbers<[1], [0], [0], [1], [0, 0, 1, 1], [], []>} : vector<8x128xf32>, vector<128x128xf32>, vector<8x128xf32> -> vector<8x128xf32>
    %c0_38 = arith.constant 0 : index
    %c0_39 = arith.constant 0 : index
    %55 = vector.load %arg13[%c0_38, %c0_39] : memref<1x128xf32, #tpu.memory_space<vmem>>, vector<1x128xf32>
    %56 = vector.broadcast %55 : vector<1x128xf32> to vector<8x128xf32>
    %57 = arith.addf %54, %56 : vector<8x128xf32>
    %cst_40 = arith.constant 0.000000e+00 : f32
    %58 = vector.broadcast %cst_40 : f32 to vector<8x128xf32>
    %59 = arith.cmpf ogt, %57, %58 : vector<8x128xf32>
    %cst_41 = arith.constant 2.000000e-01 : f32
    %60 = vector.broadcast %cst_41 : f32 to vector<8x128xf32>
    %61 = arith.mulf %60, %57 : vector<8x128xf32>
    %62 = arith.select %59, %57, %61 : vector<8x128xi1>, vector<8x128xf32>
    %c0_42 = arith.constant 0 : index
    %c0_43 = arith.constant 0 : index
    %63 = vector.load %arg14[%c0_42, %c0_43] : memref<128x128xf32, #tpu.memory_space<vmem>>, vector<128x128xf32>
    %cst_44 = arith.constant dense<0.000000e+00> : vector<8x128xf32>
    %64 = tpu.matmul %62, %63, %cst_44 {dimension_numbers = #tpu.dot_dimension_numbers<[1], [0], [0], [1], [0, 0, 1, 1], [], []>} : vector<8x128xf32>, vector<128x128xf32>, vector<8x128xf32> -> vector<8x128xf32>
    %c0_45 = arith.constant 0 : index
    %c0_46 = arith.constant 0 : index
    %65 = vector.load %arg15[%c0_45, %c0_46] : memref<1x128xf32, #tpu.memory_space<vmem>>, vector<1x128xf32>
    %66 = vector.broadcast %65 : vector<1x128xf32> to vector<8x128xf32>
    %67 = arith.addf %64, %66 : vector<8x128xf32>
    %68 = arith.addf %67, %47 : vector<8x128xf32>
    %cst_47 = arith.constant 0.000000e+00 : f32
    %69 = vector.broadcast %cst_47 : f32 to vector<8x128xf32>
    %70 = arith.cmpf ogt, %68, %69 : vector<8x128xf32>
    %cst_48 = arith.constant 2.000000e-01 : f32
    %71 = vector.broadcast %cst_48 : f32 to vector<8x128xf32>
    %72 = arith.mulf %71, %68 : vector<8x128xf32>
    %73 = arith.select %70, %68, %72 : vector<8x128xi1>, vector<8x128xf32>
    %c0_49 = arith.constant 0 : index
    %c0_50 = arith.constant 0 : index
    %74 = vector.load %arg16[%c0_49, %c0_50] : memref<128x128xf32, #tpu.memory_space<vmem>>, vector<128x128xf32>
    %cst_51 = arith.constant dense<0.000000e+00> : vector<8x128xf32>
    %75 = tpu.matmul %73, %74, %cst_51 {dimension_numbers = #tpu.dot_dimension_numbers<[1], [0], [0], [1], [0, 0, 1, 1], [], []>} : vector<8x128xf32>, vector<128x128xf32>, vector<8x128xf32> -> vector<8x128xf32>
    %c0_52 = arith.constant 0 : index
    %c0_53 = arith.constant 0 : index
    %76 = vector.load %arg17[%c0_52, %c0_53] : memref<1x128xf32, #tpu.memory_space<vmem>>, vector<1x128xf32>
    %77 = vector.broadcast %76 : vector<1x128xf32> to vector<8x128xf32>
    %78 = arith.addf %75, %77 : vector<8x128xf32>
    %c0_54 = arith.constant 0 : index
    %c0_55 = arith.constant 0 : index
    %79 = vector.load %arg18[%c0_54, %c0_55] : memref<8x128xf32, #tpu.memory_space<vmem>>, vector<8x128xf32>
    tpu.vector_store %arg18[%c0_54, %c0_55], %78 {strides = array<i32>} : memref<8x128xf32, #tpu.memory_space<vmem>>, vector<8x128xf32>,
    return
  }
  func.func @transform_0(%arg0: i32) -> (i32, i32) {
    %c0_i32 = arith.constant 0 : i32
    %c0_i32_0 = arith.constant 0 : i32
    return %arg0, %c0_i32 : i32, i32
  }
  func.func @transform_1(%arg0: i32) -> (i32, i32) {
    %c0_i32 = arith.constant 0 : i32
    %c0_i32_0 = arith.constant 0 : i32
    %c0_i32_1 = arith.constant 0 : i32
    return %c0_i32, %c0_i32_0 : i32, i32
  }
  func.func @transform_2(%arg0: i32) -> (i32, i32) {
    %c0_i32 = arith.constant 0 : i32
    %c0_i32_0 = arith.constant 0 : i32
    %c0_i32_1 = arith.constant 0 : i32
    return %c0_i32, %c0_i32_0 : i32, i32
  }
  func.func @transform_3(%arg0: i32) -> (i32, i32) {
    %c0_i32 = arith.constant 0 : i32
    %c0_i32_0 = arith.constant 0 : i32
    %c0_i32_1 = arith.constant 0 : i32
    return %c0_i32, %c0_i32_0 : i32, i32
  }
  func.func @transform_4(%arg0: i32) -> (i32, i32) {
    %c0_i32 = arith.constant 0 : i32
    %c0_i32_0 = arith.constant 0 : i32
    %c0_i32_1 = arith.constant 0 : i32
    return %c0_i32, %c0_i32_0 : i32, i32
  }
  func.func @transform_5(%arg0: i32) -> (i32, i32) {
    %c0_i32 = arith.constant 0 : i32
    %c0_i32_0 = arith.constant 0 : i32
    %c0_i32_1 = arith.constant 0 : i32
    return %c0_i32, %c0_i32_0 : i32, i32
  }
  func.func @transform_6(%arg0: i32) -> (i32, i32) {
    %c0_i32 = arith.constant 0 : i32
    %c0_i32_0 = arith.constant 0 : i32
    %c0_i32_1 = arith.constant 0 : i32
    return %c0_i32, %c0_i32_0 : i32, i32
  }
  func.func @transform_7(%arg0: i32) -> (i32, i32) {
    %c0_i32 = arith.constant 0 : i32
    %c0_i32_0 = arith.constant 0 : i32
    %c0_i32_1 = arith.constant 0 : i32
    return %c0_i32, %c0_i32_0 : i32, i32
  }
  func.func @transform_8(%arg0: i32) -> (i32, i32) {
    %c0_i32 = arith.constant 0 : i32
    %c0_i32_0 = arith.constant 0 : i32
    %c0_i32_1 = arith.constant 0 : i32
    return %c0_i32, %c0_i32_0 : i32, i32
  }
  func.func @transform_9(%arg0: i32) -> (i32, i32) {
    %c0_i32 = arith.constant 0 : i32
    %c0_i32_0 = arith.constant 0 : i32
    %c0_i32_1 = arith.constant 0 : i32
    return %c0_i32, %c0_i32_0 : i32, i32
  }
  func.func @transform_10(%arg0: i32) -> (i32, i32) {
    %c0_i32 = arith.constant 0 : i32
    %c0_i32_0 = arith.constant 0 : i32
    %c0_i32_1 = arith.constant 0 : i32
    return %c0_i32, %c0_i32_0 : i32, i32
  }
  func.func @transform_11(%arg0: i32) -> (i32, i32) {
    %c0_i32 = arith.constant 0 : i32
    %c0_i32_0 = arith.constant 0 : i32
    %c0_i32_1 = arith.constant 0 : i32
    return %c0_i32, %c0_i32_0 : i32, i32
  }
  func.func @transform_12(%arg0: i32) -> (i32, i32) {
    %c0_i32 = arith.constant 0 : i32
    %c0_i32_0 = arith.constant 0 : i32
    %c0_i32_1 = arith.constant 0 : i32
    return %c0_i32, %c0_i32_0 : i32, i32
  }
  func.func @transform_13(%arg0: i32) -> (i32, i32) {
    %c0_i32 = arith.constant 0 : i32
    %c0_i32_0 = arith.constant 0 : i32
    %c0_i32_1 = arith.constant 0 : i32
    return %c0_i32, %c0_i32_0 : i32, i32
  }
  func.func @transform_14(%arg0: i32) -> (i32, i32) {
    %c0_i32 = arith.constant 0 : i32
    %c0_i32_0 = arith.constant 0 : i32
    %c0_i32_1 = arith.constant 0 : i32
    return %c0_i32, %c0_i32_0 : i32, i32
  }
  func.func @transform_15(%arg0: i32) -> (i32, i32) {
    %c0_i32 = arith.constant 0 : i32
    %c0_i32_0 = arith.constant 0 : i32
    %c0_i32_1 = arith.constant 0 : i32
    return %c0_i32, %c0_i32_0 : i32, i32
  }
  func.func @transform_16(%arg0: i32) -> (i32, i32) {
    %c0_i32 = arith.constant 0 : i32
    %c0_i32_0 = arith.constant 0 : i32
    %c0_i32_1 = arith.constant 0 : i32
    return %c0_i32, %c0_i32_0 : i32, i32
  }
  func.func @transform_17(%arg0: i32) -> (i32, i32) {
    %c0_i32 = arith.constant 0 : i32
    %c0_i32_0 = arith.constant 0 : i32
    return %arg0, %c0_i32 : i32, i32
  }
}

module attributes {stable_mosaic.version = 11 : i64} {
  func.func @kernel(%arg0: i32, %arg1: i32, %arg2: memref<1x8x16xf32, #tpu.memory_space<vmem>>, %arg3: memref<1x8x8xf32, #tpu.memory_space<vmem>>, %arg4: memref<16x128xf32, #tpu.memory_space<vmem>>, %arg5: memref<1x128xf32, #tpu.memory_space<vmem>>, %arg6: memref<8x128xf32, #tpu.memory_space<vmem>>, %arg7: memref<1x128xf32, #tpu.memory_space<vmem>>, %arg8: memref<128x128xf32, #tpu.memory_space<vmem>>, %arg9: memref<1x128xf32, #tpu.memory_space<vmem>>, %arg10: memref<128x128xf32, #tpu.memory_space<vmem>>, %arg11: memref<1x128xf32, #tpu.memory_space<vmem>>, %arg12: memref<8x128xf32, #tpu.memory_space<vmem>>, %arg13: memref<1x128xf32, #tpu.memory_space<vmem>>, %arg14: memref<128x128xf32, #tpu.memory_space<vmem>>, %arg15: memref<1x128xf32, #tpu.memory_space<vmem>>, %arg16: memref<128x128xf32, #tpu.memory_space<vmem>>, %arg17: memref<1x128xf32, #tpu.memory_space<vmem>>, %arg18: memref<8x128xf32, #tpu.memory_space<vmem>>, %arg19: memref<1x128xf32, #tpu.memory_space<vmem>>, %arg20: memref<128x128xf32, #tpu.memory_space<vmem>>, %arg21: memref<1x128xf32, #tpu.memory_space<vmem>>, %arg22: memref<128x128xf32, #tpu.memory_space<vmem>>, %arg23: memref<1x128xf32, #tpu.memory_space<vmem>>, %arg24: memref<8x128xf32, #tpu.memory_space<vmem>>) attributes {dimension_semantics = [#tpu.dimension_semantics<parallel>, #tpu.dimension_semantics<arbitrary>], iteration_bounds = array<i64: 2, 4>, scalar_prefetch = 0 : i64, scratch_operands = 0 : i64, tpu.core_type = #tpu.core_type<tc>, window_params = [{transform_indices = @transform_0, window_bounds = array<i64: 1, 8, 16>}, {transform_indices = @transform_1, window_bounds = array<i64: 1, 8, 8>}, {pipeline_mode = #tpu.pipeline_mode<synchronous>, transform_indices = @transform_2, window_bounds = array<i64: 16, 128>}, {pipeline_mode = #tpu.pipeline_mode<synchronous>, transform_indices = @transform_3, window_bounds = array<i64: 1, 128>}, {pipeline_mode = #tpu.pipeline_mode<synchronous>, transform_indices = @transform_4, window_bounds = array<i64: 8, 128>}, {pipeline_mode = #tpu.pipeline_mode<synchronous>, transform_indices = @transform_5, window_bounds = array<i64: 1, 128>}, {pipeline_mode = #tpu.pipeline_mode<synchronous>, transform_indices = @transform_6, window_bounds = array<i64: 128, 128>}, {pipeline_mode = #tpu.pipeline_mode<synchronous>, transform_indices = @transform_7, window_bounds = array<i64: 1, 128>}, {pipeline_mode = #tpu.pipeline_mode<synchronous>, transform_indices = @transform_8, window_bounds = array<i64: 128, 128>}, {pipeline_mode = #tpu.pipeline_mode<synchronous>, transform_indices = @transform_9, window_bounds = array<i64: 1, 128>}, {pipeline_mode = #tpu.pipeline_mode<synchronous>, transform_indices = @transform_10, window_bounds = array<i64: 8, 128>}, {pipeline_mode = #tpu.pipeline_mode<synchronous>, transform_indices = @transform_11, window_bounds = array<i64: 1, 128>}, {pipeline_mode = #tpu.pipeline_mode<synchronous>, transform_indices = @transform_12, window_bounds = array<i64: 128, 128>}, {pipeline_mode = #tpu.pipeline_mode<synchronous>, transform_indices = @transform_13, window_bounds = array<i64: 1, 128>}, {pipeline_mode = #tpu.pipeline_mode<synchronous>, transform_indices = @transform_14, window_bounds = array<i64: 128, 128>}, {pipeline_mode = #tpu.pipeline_mode<synchronous>, transform_indices = @transform_15, window_bounds = array<i64: 1, 128>}, {pipeline_mode = #tpu.pipeline_mode<synchronous>, transform_indices = @transform_16, window_bounds = array<i64: 8, 128>}, {pipeline_mode = #tpu.pipeline_mode<synchronous>, transform_indices = @transform_17, window_bounds = array<i64: 1, 128>}, {pipeline_mode = #tpu.pipeline_mode<synchronous>, transform_indices = @transform_18, window_bounds = array<i64: 128, 128>}, {pipeline_mode = #tpu.pipeline_mode<synchronous>, transform_indices = @transform_19, window_bounds = array<i64: 1, 128>}, {pipeline_mode = #tpu.pipeline_mode<synchronous>, transform_indices = @transform_20, window_bounds = array<i64: 128, 128>}, {pipeline_mode = #tpu.pipeline_mode<synchronous>, transform_indices = @transform_21, window_bounds = array<i64: 1, 128>}, {transform_indices = @transform_22, window_bounds = array<i64: 8, 128>}]} {
    %c0 = arith.constant 0 : index
    %c0_0 = arith.constant 0 : index
    %c0_1 = arith.constant 0 : index
    %0 = vector.load %arg2[%c0, %c0_0, %c0_1] : memref<1x8x16xf32, #tpu.memory_space<vmem>>, vector<1x8x16xf32>
    %1 = vector.shape_cast %0 : vector<1x8x16xf32> to vector<8x16xf32>
    %c0_2 = arith.constant 0 : index
    %c0_3 = arith.constant 0 : index
    %c0_4 = arith.constant 0 : index
    %2 = vector.load %arg3[%c0_2, %c0_3, %c0_4] : memref<1x8x8xf32, #tpu.memory_space<vmem>>, vector<1x8x8xf32>
    %3 = vector.shape_cast %2 : vector<1x8x8xf32> to vector<8x8xf32>
    %c0_5 = arith.constant 0 : index
    %c0_6 = arith.constant 0 : index
    %4 = vector.load %arg4[%c0_5, %c0_6] : memref<16x128xf32, #tpu.memory_space<vmem>>, vector<16x128xf32>
    %cst = arith.constant dense<0.000000e+00> : vector<8x128xf32>
    %5 = tpu.matmul %1, %4, %cst {dimension_numbers = #tpu.dot_dimension_numbers<[1], [0], [0], [1], [0, 0, 1, 1], [], []>} : vector<8x16xf32>, vector<16x128xf32>, vector<8x128xf32> -> vector<8x128xf32>
    %c0_7 = arith.constant 0 : index
    %c0_8 = arith.constant 0 : index
    %6 = vector.load %arg5[%c0_7, %c0_8] : memref<1x128xf32, #tpu.memory_space<vmem>>, vector<1x128xf32>
    %7 = vector.broadcast %6 : vector<1x128xf32> to vector<8x128xf32>
    %8 = arith.addf %5, %7 : vector<8x128xf32>
    %c0_9 = arith.constant 0 : index
    %c0_10 = arith.constant 0 : index
    %9 = vector.load %arg6[%c0_9, %c0_10] : memref<8x128xf32, #tpu.memory_space<vmem>>, vector<8x128xf32>
    %cst_11 = arith.constant dense<0.000000e+00> : vector<8x128xf32>
    %10 = tpu.matmul %3, %9, %cst_11 {dimension_numbers = #tpu.dot_dimension_numbers<[1], [0], [0], [1], [0, 0, 1, 1], [], []>} : vector<8x8xf32>, vector<8x128xf32>, vector<8x128xf32> -> vector<8x128xf32>
    %c0_12 = arith.constant 0 : index
    %c0_13 = arith.constant 0 : index
    %11 = vector.load %arg7[%c0_12, %c0_13] : memref<1x128xf32, #tpu.memory_space<vmem>>, vector<1x128xf32>
    %12 = vector.broadcast %11 : vector<1x128xf32> to vector<8x128xf32>
    %13 = arith.addf %10, %12 : vector<8x128xf32>
    %14 = arith.addf %8, %13 : vector<8x128xf32>
    %cst_14 = arith.constant 0.000000e+00 : f32
    %15 = vector.broadcast %cst_14 : f32 to vector<8x128xf32>
    %16 = arith.cmpf ogt, %14, %15 : vector<8x128xf32>
    %cst_15 = arith.constant 2.000000e-01 : f32
    %17 = vector.broadcast %cst_15 : f32 to vector<8x128xf32>
    %18 = arith.mulf %17, %14 : vector<8x128xf32>
    %19 = arith.select %16, %14, %18 : vector<8x128xi1>, vector<8x128xf32>
    %c0_16 = arith.constant 0 : index
    %c0_17 = arith.constant 0 : index
    %20 = vector.load %arg8[%c0_16, %c0_17] : memref<128x128xf32, #tpu.memory_space<vmem>>, vector<128x128xf32>
    %cst_18 = arith.constant dense<0.000000e+00> : vector<8x128xf32>
    %21 = tpu.matmul %19, %20, %cst_18 {dimension_numbers = #tpu.dot_dimension_numbers<[1], [0], [0], [1], [0, 0, 1, 1], [], []>} : vector<8x128xf32>, vector<128x128xf32>, vector<8x128xf32> -> vector<8x128xf32>
    %c0_19 = arith.constant 0 : index
    %c0_20 = arith.constant 0 : index
    %22 = vector.load %arg9[%c0_19, %c0_20] : memref<1x128xf32, #tpu.memory_space<vmem>>, vector<1x128xf32>
    %23 = vector.broadcast %22 : vector<1x128xf32> to vector<8x128xf32>
    %24 = arith.addf %21, %23 : vector<8x128xf32>
    %cst_21 = arith.constant 0.000000e+00 : f32
    %25 = vector.broadcast %cst_21 : f32 to vector<8x128xf32>
    %26 = arith.cmpf ogt, %24, %25 : vector<8x128xf32>
    %cst_22 = arith.constant 2.000000e-01 : f32
    %27 = vector.broadcast %cst_22 : f32 to vector<8x128xf32>
    %28 = arith.mulf %27, %24 : vector<8x128xf32>
    %29 = arith.select %26, %24, %28 : vector<8x128xi1>, vector<8x128xf32>
    %c0_23 = arith.constant 0 : index
    %c0_24 = arith.constant 0 : index
    %30 = vector.load %arg10[%c0_23, %c0_24] : memref<128x128xf32, #tpu.memory_space<vmem>>, vector<128x128xf32>
    %cst_25 = arith.constant dense<0.000000e+00> : vector<8x128xf32>
    %31 = tpu.matmul %29, %30, %cst_25 {dimension_numbers = #tpu.dot_dimension_numbers<[1], [0], [0], [1], [0, 0, 1, 1], [], []>} : vector<8x128xf32>, vector<128x128xf32>, vector<8x128xf32> -> vector<8x128xf32>
    %c0_26 = arith.constant 0 : index
    %c0_27 = arith.constant 0 : index
    %32 = vector.load %arg11[%c0_26, %c0_27] : memref<1x128xf32, #tpu.memory_space<vmem>>, vector<1x128xf32>
    %33 = vector.broadcast %32 : vector<1x128xf32> to vector<8x128xf32>
    %34 = arith.addf %31, %33 : vector<8x128xf32>
    %35 = arith.addf %34, %8 : vector<8x128xf32>
    %c0_28 = arith.constant 0 : index
    %c0_29 = arith.constant 0 : index
    %36 = vector.load %arg12[%c0_28, %c0_29] : memref<8x128xf32, #tpu.memory_space<vmem>>, vector<8x128xf32>
    %cst_30 = arith.constant dense<0.000000e+00> : vector<8x128xf32>
    %37 = tpu.matmul %3, %36, %cst_30 {dimension_numbers = #tpu.dot_dimension_numbers<[1], [0], [0], [1], [0, 0, 1, 1], [], []>} : vector<8x8xf32>, vector<8x128xf32>, vector<8x128xf32> -> vector<8x128xf32>
    %c0_31 = arith.constant 0 : index
    %c0_32 = arith.constant 0 : index
    %38 = vector.load %arg13[%c0_31, %c0_32] : memref<1x128xf32, #tpu.memory_space<vmem>>, vector<1x128xf32>
    %39 = vector.broadcast %38 : vector<1x128xf32> to vector<8x128xf32>
    %40 = arith.addf %37, %39 : vector<8x128xf32>
    %41 = arith.addf %35, %40 : vector<8x128xf32>
    %cst_33 = arith.constant 0.000000e+00 : f32
    %42 = vector.broadcast %cst_33 : f32 to vector<8x128xf32>
    %43 = arith.cmpf ogt, %41, %42 : vector<8x128xf32>
    %cst_34 = arith.constant 2.000000e-01 : f32
    %44 = vector.broadcast %cst_34 : f32 to vector<8x128xf32>
    %45 = arith.mulf %44, %41 : vector<8x128xf32>
    %46 = arith.select %43, %41, %45 : vector<8x128xi1>, vector<8x128xf32>
    %c0_35 = arith.constant 0 : index
    %c0_36 = arith.constant 0 : index
    %47 = vector.load %arg14[%c0_35, %c0_36] : memref<128x128xf32, #tpu.memory_space<vmem>>, vector<128x128xf32>
    %cst_37 = arith.constant dense<0.000000e+00> : vector<8x128xf32>
    %48 = tpu.matmul %46, %47, %cst_37 {dimension_numbers = #tpu.dot_dimension_numbers<[1], [0], [0], [1], [0, 0, 1, 1], [], []>} : vector<8x128xf32>, vector<128x128xf32>, vector<8x128xf32> -> vector<8x128xf32>
    %c0_38 = arith.constant 0 : index
    %c0_39 = arith.constant 0 : index
    %49 = vector.load %arg15[%c0_38, %c0_39] : memref<1x128xf32, #tpu.memory_space<vmem>>, vector<1x128xf32>
    %50 = vector.broadcast %49 : vector<1x128xf32> to vector<8x128xf32>
    %51 = arith.addf %48, %50 : vector<8x128xf32>
    %cst_40 = arith.constant 0.000000e+00 : f32
    %52 = vector.broadcast %cst_40 : f32 to vector<8x128xf32>
    %53 = arith.cmpf ogt, %51, %52 : vector<8x128xf32>
    %cst_41 = arith.constant 2.000000e-01 : f32
    %54 = vector.broadcast %cst_41 : f32 to vector<8x128xf32>
    %55 = arith.mulf %54, %51 : vector<8x128xf32>
    %56 = arith.select %53, %51, %55 : vector<8x128xi1>, vector<8x128xf32>
    %c0_42 = arith.constant 0 : index
    %c0_43 = arith.constant 0 : index
    %57 = vector.load %arg16[%c0_42, %c0_43] : memref<128x128xf32, #tpu.memory_space<vmem>>, vector<128x128xf32>
    %cst_44 = arith.constant dense<0.000000e+00> : vector<8x128xf32>
    %58 = tpu.matmul %56, %57, %cst_44 {dimension_numbers = #tpu.dot_dimension_numbers<[1], [0], [0], [1], [0, 0, 1, 1], [], []>} : vector<8x128xf32>, vector<128x128xf32>, vector<8x128xf32> -> vector<8x128xf32>
    %c0_45 = arith.constant 0 : index
    %c0_46 = arith.constant 0 : index
    %59 = vector.load %arg17[%c0_45, %c0_46] : memref<1x128xf32, #tpu.memory_space<vmem>>, vector<1x128xf32>
    %60 = vector.broadcast %59 : vector<1x128xf32> to vector<8x128xf32>
    %61 = arith.addf %58, %60 : vector<8x128xf32>
    %62 = arith.addf %61, %35 : vector<8x128xf32>
    %c0_47 = arith.constant 0 : index
    %c0_48 = arith.constant 0 : index
    %63 = vector.load %arg18[%c0_47, %c0_48] : memref<8x128xf32, #tpu.memory_space<vmem>>, vector<8x128xf32>
    %cst_49 = arith.constant dense<0.000000e+00> : vector<8x128xf32>
    %64 = tpu.matmul %3, %63, %cst_49 {dimension_numbers = #tpu.dot_dimension_numbers<[1], [0], [0], [1], [0, 0, 1, 1], [], []>} : vector<8x8xf32>, vector<8x128xf32>, vector<8x128xf32> -> vector<8x128xf32>
    %c0_50 = arith.constant 0 : index
    %c0_51 = arith.constant 0 : index
    %65 = vector.load %arg19[%c0_50, %c0_51] : memref<1x128xf32, #tpu.memory_space<vmem>>, vector<1x128xf32>
    %66 = vector.broadcast %65 : vector<1x128xf32> to vector<8x128xf32>
    %67 = arith.addf %64, %66 : vector<8x128xf32>
    %68 = arith.addf %62, %67 : vector<8x128xf32>
    %cst_52 = arith.constant 0.000000e+00 : f32
    %69 = vector.broadcast %cst_52 : f32 to vector<8x128xf32>
    %70 = arith.cmpf ogt, %68, %69 : vector<8x128xf32>
    %cst_53 = arith.constant 2.000000e-01 : f32
    %71 = vector.broadcast %cst_53 : f32 to vector<8x128xf32>
    %72 = arith.mulf %71, %68 : vector<8x128xf32>
    %73 = arith.select %70, %68, %72 : vector<8x128xi1>, vector<8x128xf32>
    %c0_54 = arith.constant 0 : index
    %c0_55 = arith.constant 0 : index
    %74 = vector.load %arg20[%c0_54, %c0_55] : memref<128x128xf32, #tpu.memory_space<vmem>>, vector<128x128xf32>
    %cst_56 = arith.constant dense<0.000000e+00> : vector<8x128xf32>
    %75 = tpu.matmul %73, %74, %cst_56 {dimension_numbers = #tpu.dot_dimension_numbers<[1], [0], [0], [1], [0, 0, 1, 1], [], []>} : vector<8x128xf32>, vector<128x128xf32>, vector<8x128xf32> -> vector<8x128xf32>
    %c0_57 = arith.constant 0 : index
    %c0_58 = arith.constant 0 : index
    %76 = vector.load %arg21[%c0_57, %c0_58] : memref<1x128xf32, #tpu.memory_space<vmem>>, vector<1x128xf32>
    %77 = vector.broadcast %76 : vector<1x128xf32> to vector<8x128xf32>
    %78 = arith.addf %75, %77 : vector<8x128xf32>
    %cst_59 = arith.constant 0.000000e+00 : f32
    %79 = vector.broadcast %cst_59 : f32 to vector<8x128xf32>
    %80 = arith.cmpf ogt, %78, %79 : vector<8x128xf32>
    %cst_60 = arith.constant 2.000000e-01 : f32
    %81 = vector.broadcast %cst_60 : f32 to vector<8x128xf32>
    %82 = arith.mulf %81, %78 : vector<8x128xf32>
    %83 = arith.select %80, %78, %82 : vector<8x128xi1>, vector<8x128xf32>
    %c0_61 = arith.constant 0 : index
    %c0_62 = arith.constant 0 : index
    %84 = vector.load %arg22[%c0_61, %c0_62] : memref<128x128xf32, #tpu.memory_space<vmem>>, vector<128x128xf32>
    %cst_63 = arith.constant dense<0.000000e+00> : vector<8x128xf32>
    %85 = tpu.matmul %83, %84, %cst_63 {dimension_numbers = #tpu.dot_dimension_numbers<[1], [0], [0], [1], [0, 0, 1, 1], [], []>} : vector<8x128xf32>, vector<128x128xf32>, vector<8x128xf32> -> vector<8x128xf32>
    %c0_64 = arith.constant 0 : index
    %c0_65 = arith.constant 0 : index
    %86 = vector.load %arg23[%c0_64, %c0_65] : memref<1x128xf32, #tpu.memory_space<vmem>>, vector<1x128xf32>
    %87 = vector.broadcast %86 : vector<1x128xf32> to vector<8x128xf32>
    %88 = arith.addf %85, %87 : vector<8x128xf32>
    %89 = arith.addf %88, %62 : vector<8x128xf32>
    %c0_i32 = arith.constant 0 : i32
    %90 = arith.cmpi eq, %arg1, %c0_i32 : i32
    %91 = arith.extui %90 : i1 to i32
    %c0_i32_66 = arith.constant 0 : i32
    %92 = arith.cmpi ne, %91, %c0_i32_66 : i32
    scf.if %92 {
      %cst_72 = arith.constant 0.000000e+00 : f32
      %99 = vector.broadcast %cst_72 : f32 to vector<8x128xf32>
      %c0_73 = arith.constant 0 : index
      %c0_74 = arith.constant 0 : index
      %100 = vector.load %arg24[%c0_73, %c0_74] : memref<8x128xf32, #tpu.memory_space<vmem>>, vector<8x128xf32>
      tpu.vector_store %arg24[%c0_73, %c0_74], %99 {strides = array<i32>} : memref<8x128xf32, #tpu.memory_space<vmem>>, vector<8x128xf32>,
    } else {
    }
    %c0_67 = arith.constant 0 : index
    %c0_68 = arith.constant 0 : index
    %93 = vector.load %arg24[%c0_67, %c0_68] : memref<8x128xf32, #tpu.memory_space<vmem>>, vector<8x128xf32>
    %94 = arith.addf %93, %89 : vector<8x128xf32>
    %c0_69 = arith.constant 0 : index
    %c0_70 = arith.constant 0 : index
    %95 = vector.load %arg24[%c0_69, %c0_70] : memref<8x128xf32, #tpu.memory_space<vmem>>, vector<8x128xf32>
    tpu.vector_store %arg24[%c0_69, %c0_70], %94 {strides = array<i32>} : memref<8x128xf32, #tpu.memory_space<vmem>>, vector<8x128xf32>,
    %c3_i32 = arith.constant 3 : i32
    %96 = arith.cmpi eq, %arg1, %c3_i32 : i32
    %97 = arith.extui %96 : i1 to i32
    %c0_i32_71 = arith.constant 0 : i32
    %98 = arith.cmpi ne, %97, %c0_i32_71 : i32
    scf.if %98 {
      %c0_72 = arith.constant 0 : index
      %c0_73 = arith.constant 0 : index
      %99 = vector.load %arg24[%c0_72, %c0_73] : memref<8x128xf32, #tpu.memory_space<vmem>>, vector<8x128xf32>
      %cst_74 = arith.constant 2.500000e-01 : f32
      %100 = vector.broadcast %cst_74 : f32 to vector<8x128xf32>
      %101 = arith.mulf %99, %100 : vector<8x128xf32>
      %c0_75 = arith.constant 0 : index
      %c0_76 = arith.constant 0 : index
      %102 = vector.load %arg24[%c0_75, %c0_76] : memref<8x128xf32, #tpu.memory_space<vmem>>, vector<8x128xf32>
      tpu.vector_store %arg24[%c0_75, %c0_76], %101 {strides = array<i32>} : memref<8x128xf32, #tpu.memory_space<vmem>>, vector<8x128xf32>,
    } else {
    }
    return
  }
  func.func @transform_0(%arg0: i32, %arg1: i32) -> (i32, i32, i32) {
    %c0_i32 = arith.constant 0 : i32
    %c0_i32_0 = arith.constant 0 : i32
    return %arg1, %arg0, %c0_i32 : i32, i32, i32
  }
  func.func @transform_1(%arg0: i32, %arg1: i32) -> (i32, i32, i32) {
    %c0_i32 = arith.constant 0 : i32
    %c0_i32_0 = arith.constant 0 : i32
    return %arg1, %arg0, %c0_i32 : i32, i32, i32
  }
  func.func @transform_2(%arg0: i32, %arg1: i32) -> (i32, i32) {
    %c0_i32 = arith.constant 0 : i32
    %c0_i32_0 = arith.constant 0 : i32
    %c0_i32_1 = arith.constant 0 : i32
    return %c0_i32, %c0_i32_0 : i32, i32
  }
  func.func @transform_3(%arg0: i32, %arg1: i32) -> (i32, i32) {
    %c0_i32 = arith.constant 0 : i32
    %c0_i32_0 = arith.constant 0 : i32
    %c0_i32_1 = arith.constant 0 : i32
    return %c0_i32, %c0_i32_0 : i32, i32
  }
  func.func @transform_4(%arg0: i32, %arg1: i32) -> (i32, i32) {
    %c0_i32 = arith.constant 0 : i32
    %c0_i32_0 = arith.constant 0 : i32
    %c0_i32_1 = arith.constant 0 : i32
    return %c0_i32, %c0_i32_0 : i32, i32
  }
  func.func @transform_5(%arg0: i32, %arg1: i32) -> (i32, i32) {
    %c0_i32 = arith.constant 0 : i32
    %c0_i32_0 = arith.constant 0 : i32
    %c0_i32_1 = arith.constant 0 : i32
    return %c0_i32, %c0_i32_0 : i32, i32
  }
  func.func @transform_6(%arg0: i32, %arg1: i32) -> (i32, i32) {
    %c0_i32 = arith.constant 0 : i32
    %c0_i32_0 = arith.constant 0 : i32
    %c0_i32_1 = arith.constant 0 : i32
    return %c0_i32, %c0_i32_0 : i32, i32
  }
  func.func @transform_7(%arg0: i32, %arg1: i32) -> (i32, i32) {
    %c0_i32 = arith.constant 0 : i32
    %c0_i32_0 = arith.constant 0 : i32
    %c0_i32_1 = arith.constant 0 : i32
    return %c0_i32, %c0_i32_0 : i32, i32
  }
  func.func @transform_8(%arg0: i32, %arg1: i32) -> (i32, i32) {
    %c0_i32 = arith.constant 0 : i32
    %c0_i32_0 = arith.constant 0 : i32
    %c0_i32_1 = arith.constant 0 : i32
    return %c0_i32, %c0_i32_0 : i32, i32
  }
  func.func @transform_9(%arg0: i32, %arg1: i32) -> (i32, i32) {
    %c0_i32 = arith.constant 0 : i32
    %c0_i32_0 = arith.constant 0 : i32
    %c0_i32_1 = arith.constant 0 : i32
    return %c0_i32, %c0_i32_0 : i32, i32
  }
  func.func @transform_10(%arg0: i32, %arg1: i32) -> (i32, i32) {
    %c0_i32 = arith.constant 0 : i32
    %c0_i32_0 = arith.constant 0 : i32
    %c0_i32_1 = arith.constant 0 : i32
    return %c0_i32, %c0_i32_0 : i32, i32
  }
  func.func @transform_11(%arg0: i32, %arg1: i32) -> (i32, i32) {
    %c0_i32 = arith.constant 0 : i32
    %c0_i32_0 = arith.constant 0 : i32
    %c0_i32_1 = arith.constant 0 : i32
    return %c0_i32, %c0_i32_0 : i32, i32
  }
  func.func @transform_12(%arg0: i32, %arg1: i32) -> (i32, i32) {
    %c0_i32 = arith.constant 0 : i32
    %c0_i32_0 = arith.constant 0 : i32
    %c0_i32_1 = arith.constant 0 : i32
    return %c0_i32, %c0_i32_0 : i32, i32
  }
  func.func @transform_13(%arg0: i32, %arg1: i32) -> (i32, i32) {
    %c0_i32 = arith.constant 0 : i32
    %c0_i32_0 = arith.constant 0 : i32
    %c0_i32_1 = arith.constant 0 : i32
    return %c0_i32, %c0_i32_0 : i32, i32
  }
  func.func @transform_14(%arg0: i32, %arg1: i32) -> (i32, i32) {
    %c0_i32 = arith.constant 0 : i32
    %c0_i32_0 = arith.constant 0 : i32
    %c0_i32_1 = arith.constant 0 : i32
    return %c0_i32, %c0_i32_0 : i32, i32
  }
  func.func @transform_15(%arg0: i32, %arg1: i32) -> (i32, i32) {
    %c0_i32 = arith.constant 0 : i32
    %c0_i32_0 = arith.constant 0 : i32
    %c0_i32_1 = arith.constant 0 : i32
    return %c0_i32, %c0_i32_0 : i32, i32
  }
  func.func @transform_16(%arg0: i32, %arg1: i32) -> (i32, i32) {
    %c0_i32 = arith.constant 0 : i32
    %c0_i32_0 = arith.constant 0 : i32
    %c0_i32_1 = arith.constant 0 : i32
    return %c0_i32, %c0_i32_0 : i32, i32
  }
  func.func @transform_17(%arg0: i32, %arg1: i32) -> (i32, i32) {
    %c0_i32 = arith.constant 0 : i32
    %c0_i32_0 = arith.constant 0 : i32
    %c0_i32_1 = arith.constant 0 : i32
    return %c0_i32, %c0_i32_0 : i32, i32
  }
  func.func @transform_18(%arg0: i32, %arg1: i32) -> (i32, i32) {
    %c0_i32 = arith.constant 0 : i32
    %c0_i32_0 = arith.constant 0 : i32
    %c0_i32_1 = arith.constant 0 : i32
    return %c0_i32, %c0_i32_0 : i32, i32
  }
  func.func @transform_19(%arg0: i32, %arg1: i32) -> (i32, i32) {
    %c0_i32 = arith.constant 0 : i32
    %c0_i32_0 = arith.constant 0 : i32
    %c0_i32_1 = arith.constant 0 : i32
    return %c0_i32, %c0_i32_0 : i32, i32
  }
  func.func @transform_20(%arg0: i32, %arg1: i32) -> (i32, i32) {
    %c0_i32 = arith.constant 0 : i32
    %c0_i32_0 = arith.constant 0 : i32
    %c0_i32_1 = arith.constant 0 : i32
    return %c0_i32, %c0_i32_0 : i32, i32
  }
  func.func @transform_21(%arg0: i32, %arg1: i32) -> (i32, i32) {
    %c0_i32 = arith.constant 0 : i32
    %c0_i32_0 = arith.constant 0 : i32
    %c0_i32_1 = arith.constant 0 : i32
    return %c0_i32, %c0_i32_0 : i32, i32
  }
  func.func @transform_22(%arg0: i32, %arg1: i32) -> (i32, i32) {
    %c0_i32 = arith.constant 0 : i32
    %c0_i32_0 = arith.constant 0 : i32
    return %arg0, %c0_i32 : i32, i32
  }
}

</mosaic_0001>

<llo_original>
// kernel: _lambda_.2
$region0: #{_lambda_.2}
  #allocation0 [shape = 'u32[]', space=smem, size = 0x4, offset = 0x4, fixed_abs, tag = 'smem constant byte address 0x4 - core index']
  #allocation1 [shape = 'u32[72,128]{1,0:T(1,128)}', space=vmem, size = 0x9000, scoped, tag = 'internal scratch']
  %s0 = inlined_call_operand.vmem [shape: f32[4,16,16], index: 0, kind: input, shape index: {}]
  %s1 = inlined_call_operand.vmem [shape: f32[4,16,8], index: 1, kind: input, shape index: {}]
  %s2 = inlined_call_operand.hbm [shape: f32[16,128], index: 2, kind: input, shape index: {}]
  %s3 = inlined_call_operand.hbm [shape: f32[1,128], index: 3, kind: input, shape index: {}]
  %s4 = inlined_call_operand.hbm [shape: f32[8,128], index: 4, kind: input, shape index: {}]
  %s5 = inlined_call_operand.hbm [shape: f32[1,128], index: 5, kind: input, shape index: {}]
  %s6 = inlined_call_operand.vmem [shape: f32[128,128], index: 6, kind: input, shape index: {}]
  %s7 = inlined_call_operand.hbm [shape: f32[1,128], index: 7, kind: input, shape index: {}]
  %s8 = inlined_call_operand.vmem [shape: f32[128,128], index: 8, kind: input, shape index: {}]
  %s9 = inlined_call_operand.hbm [shape: f32[1,128], index: 9, kind: input, shape index: {}]
  %s10 = inlined_call_operand.hbm [shape: f32[8,128], index: 10, kind: input, shape index: {}]
  %s11 = inlined_call_operand.hbm [shape: f32[1,128], index: 11, kind: input, shape index: {}]
  %s12 = inlined_call_operand.hbm [shape: f32[128,128], index: 12, kind: input, shape index: {}]
  %s13 = inlined_call_operand.hbm [shape: f32[1,128], index: 13, kind: input, shape index: {}]
  %s14 = inlined_call_operand.hbm [shape: f32[128,128], index: 14, kind: input, shape index: {}]
  %s15 = inlined_call_operand.vmem [shape: f32[1,128], index: 15, kind: input, shape index: {}]
  %s16 = inlined_call_operand.vmem [shape: f32[8,128], index: 16, kind: input, shape index: {}]
  %s17 = inlined_call_operand.vmem [shape: f32[1,128], index: 17, kind: input, shape index: {}]
  %s18 = inlined_call_operand.hbm [shape: f32[128,128], index: 18, kind: input, shape index: {}]
  %s19 = inlined_call_operand.vmem [shape: f32[1,128], index: 19, kind: input, shape index: {}]
  %s20 = inlined_call_operand.hbm [shape: f32[128,128], index: 20, kind: input, shape index: {}]
  %s21 = inlined_call_operand.vmem [shape: f32[1,128], index: 21, kind: input, shape index: {}]
  %s22 = inlined_call_operand.vmem [shape: f32[16,128], index: 22, kind: output, shape index: {}]
  %s23 = sld [smem:[#allocation0]]
  $region181: #{_lambda_.2} parent=0
    _
  %s25 = ssub.s32 1, %s23
  %s26 = scalar_select 0, %s25, %s23
  $region1: #{_lambda_.2} parent=0
    #allocation2 [shape = 'u8[8192]{0}', space=vmem, size = 0x2000, scoped, tag = 'input window, operand 2, single buffered']
    #allocation3 [shape = 's32[2]{0}', space=sflag, size = 0x8, scoped, tag = 'scoped memory for _lambda_.2']
    #allocation4 [shape = 'u8[512]{0}', space=vmem, size = 0x400, scoped, tag = 'input window, operand 3, single buffered']
    #allocation5 [shape = 's32[1]{0}', space=sflag, size = 0x4, scoped, tag = 'scoped memory for _lambda_.2']
    #allocation6 [shape = 'u8[4096]{0}', space=vmem, size = 0x1000, scoped, tag = 'input window, operand 4, single buffered']
    #allocation7 [shape = 'u8[512]{0}', space=vmem, size = 0x400, scoped, tag = 'input window, operand 5, single buffered']
    #allocation8 [shape = 's32[1]{0}', space=sflag, size = 0x4, scoped, tag = 'scoped memory for _lambda_.2']
    #allocation9 [shape = 'u8[512]{0}', space=vmem, size = 0x400, scoped, tag = 'input window, operand 7, single buffered']
    #allocation10 [shape = 'u8[512]{0}', space=vmem, size = 0x400, scoped, tag = 'input window, operand 9, single buffered']
    #allocation11 [shape = 's32[1]{0}', space=sflag, size = 0x4, scoped, tag = 'scoped memory for _lambda_.2']
    #allocation12 [shape = 'u8[4096]{0}', space=vmem, size = 0x1000, scoped, tag = 'input window, operand 10, single buffered']
    #allocation13 [shape = 'u8[512]{0}', space=vmem, size = 0x400, scoped, tag = 'input window, operand 11, single buffered']
    #allocation14 [shape = 's32[1]{0}', space=sflag, size = 0x4, scoped, tag = 'scoped memory for _lambda_.2']
    #allocation15 [shape = 'u8[65536]{0}', space=vmem, size = 0x10000, scoped, tag = 'input window, operand 12, single buffered']
    #allocation16 [shape = 'u8[512]{0}', space=vmem, size = 0x400, scoped, tag = 'input window, operand 13, single buffered']
    #allocation17 [shape = 's32[1]{0}', space=sflag, size = 0x4, scoped, tag = 'scoped memory for _lambda_.2']
    #allocation18 [shape = 'u8[65536]{0}', space=vmem, size = 0x10000, scoped, tag = 'input window, operand 14, single buffered']
    #allocation19 [shape = 'u8[65536]{0}', space=vmem, size = 0x10000, scoped, tag = 'input window, operand 18, single buffered']
    #allocation20 [shape = 's32[1]{0}', space=sflag, size = 0x4, scoped, tag = 'scoped memory for _lambda_.2']
    #allocation21 [shape = 'u8[65536]{0}', space=vmem, size = 0x10000, scoped, tag = 'input window, operand 20, single buffered']
    %27 = vsyncpa [#allocation3], 0
    %28 = vsyncpa [#allocation5], 0
    %29 = vsyncpa [#allocation8], 0
    %30 = vsyncpa [#allocation11], 0
    %31 = vsyncpa [#allocation14], 0
    %32 = vsyncpa [#allocation17], 0
    %33 = vsyncpa [#allocation20], 0
    loop: start=0, step=1, limit=10
    $region2: #{_lambda_.2} parent=1 // loop_pre_header
      _
    $region3: #{_lambda_.2} parent=1 // loop_header
      %s35 = sphi 0, %s39
      %p36 = scmp.ge.s32.totalorder %s35, 10
      %s42 = sphi 0, %s54
      %s43 = sphi 0, %s50
      %s44 = sphi 0, %s42
      %s45 = sphi 0, %s43
      %s46 = sphi 0, %s44
      %s47 = sphi 0, %s45
      %s59 = sphi 0, %s61
      %s62 = sphi 0, %s59
      %s63 = sphi 0, %s62
      %s79 = sphi 0, %s63
      %s87 = sphi 0, %s89
      %s90 = sphi 0, %s87
      %s91 = sphi 0, %s90
      %s107 = sphi 0, %s91
      %s111 = sphi 0, %s111
      %s113 = sphi 0, %s111
      %s114 = sphi 0, %s113
      %s128 = sphi 0, %s114
      %s132 = sphi 0, %s132
      %s134 = sphi 0, %s132
      %s135 = sphi 0, %s134
      %s149 = sphi 0, %s135
      %s153 = sphi 0, %s153
      %s155 = sphi 0, %s153
      %s156 = sphi 0, %s155
      %s170 = sphi 0, %s156
      %s174 = sphi 0, %s174
      %s176 = sphi 0, %s174
      %s177 = sphi 0, %s176
      %s191 = sphi 0, %s177
      %s195 = sphi 0, %s195
      %s197 = sphi 0, %s195
      %s198 = sphi 0, %s197
      %s212 = sphi 0, %s198
      %s216 = sphi 0, %s216
      %s218 = sphi 0, %s216
      %s219 = sphi 0, %s218
      %s233 = sphi 0, %s219
      %s237 = sphi 0, %s237
      %s239 = sphi 0, %s237
      %s240 = sphi 0, %s239
      %s254 = sphi 0, %s240
      %s258 = sphi 0, %s258
      %s260 = sphi 0, %s258
      %s261 = sphi 0, %s260
      %s275 = sphi 0, %s261
      %s279 = sphi 0, %s279
      %s281 = sphi 0, %s279
      %s282 = sphi 0, %s281
      %s296 = sphi 0, %s282
      %s300 = sphi 0, %s300
      %s302 = sphi 0, %s300
      %s303 = sphi 0, %s302
      %s317 = sphi 0, %s303
      %s321 = sphi 0, %s321
      %s323 = sphi 0, %s321
      %s324 = sphi 0, %s323
      %s338 = sphi 0, %s324
      %s342 = sphi 0, %s342
      %s344 = sphi 0, %s342
      %s345 = sphi 0, %s344
      %s359 = sphi 0, %s345
      %s363 = sphi 0, %s363
      %s365 = sphi 0, %s363
      %s366 = sphi 0, %s365
      %s380 = sphi 0, %s366
      %s384 = sphi 0, %s384
      %s386 = sphi 0, %s384
      %s387 = sphi 0, %s386
      %s401 = sphi 0, %s387
      %s405 = sphi 0, %s405
      %s407 = sphi 0, %s405
      %s408 = sphi 0, %s407
      %s422 = sphi 0, %s408
      %s426 = sphi 0, %s426
      %s428 = sphi 0, %s426
      %s429 = sphi 0, %s428
      %s443 = sphi 0, %s429
      %s447 = sphi 0, %s447
      %s449 = sphi 0, %s447
      %s450 = sphi 0, %s449
      %s464 = sphi 0, %s450
      %s468 = sphi 0, %s468
      %s470 = sphi 0, %s468
      %s471 = sphi 0, %s470
      %s485 = sphi 0, %s471
      %s489 = sphi 0, %s489
      %s491 = sphi 0, %s489
      %s492 = sphi 0, %s491
      %s506 = sphi 0, %s492
      %s510 = sphi 0, %s510
      %s512 = sphi 0, %s510
      %s513 = sphi 0, %s512
      %s527 = sphi 0, %s513
      %s533 = sphi 0, %s535
      %s536 = sphi 0, %s533
      %s537 = sphi 0, %s536
      %s553 = sphi 0, %s537
    $region4: #{_lambda_.2} parent=1 // loop_header_branch
      %38 = sbr.rel (%p36) target = $region8
    $region5: #{_lambda_.2} parent=1 // loop_body
      %s40 = ssub.s32 %s35, 1
      %s41 = ssub.s32 %s35, 2
      %s48 = sadd.s32 1, %s43
      %p49 = scmp.ge.s32.totalorder %s48, 4
      %s50 = scalar_select %p49, 0, %s48
      %s51 = sadd.s32 1, %s42
      %s52 = scalar_select %p49, %s51, %s42
      %p53 = scmp.ge.s32.totalorder %s52, 2
      %s54 = scalar_select %p53, 0, %s52
      %s55 = ssub.s32 %s43, %s50
      %s56 = ssub.s32 %s42, %s54
      %s57 = sor.u32 %s55, %s56
      %p58 = scmp.eq.s32.totalorder %s57, 0
      %s60 = sadd.s32 %s59, 1
      %s61 = scalar_select %p58, %s59, %s60
      %p64 = pneg %p58
      %p65 = scmp.eq.s32.totalorder %s35, 7
      %p66 = por %p64, %p65
      %p67 = scmp.ne.s32.totalorder %s59, %s62
      %p68 = scmp.eq.s32.totalorder %s35, 0
      %p69 = por %p67, %p68
      %p70 = scmp.ne.s32.totalorder %s59, %s62
      %p71 = scmp.eq.s32.totalorder %s40, 7
      %p72 = por %p70, %p71
      %p73 = scmp.ne.s32.totalorder %s62, %s63
      %p74 = scmp.eq.s32.totalorder %s40, 0
      %p75 = por %p73, %p74
      %p76 = scmp.ne.s32.totalorder %s62, %s63
      %p77 = scmp.eq.s32.totalorder %s41, 7
      %p78 = por %p76, %p77
      %p80 = scmp.ne.s32.totalorder %s63, %s79
      %p81 = scmp.eq.s32.totalorder %s41, 0
      %p82 = por %p80, %p81
      %s83 = ssub.s32 %s43, %s50
      %s84 = ssub.s32 %s42, %s54
      %s85 = sor.u32 %s83, %s84
      %p86 = scmp.eq.s32.totalorder %s85, 0
      %s88 = sadd.s32 %s87, 1
      %s89 = scalar_select %p86, %s87, %s88
      %p92 = pneg %p86
      %p93 = scmp.eq.s32.totalorder %s35, 7
      %p94 = por %p92, %p93
      %p95 = scmp.ne.s32.totalorder %s87, %s90
      %p96 = scmp.eq.s32.totalorder %s35, 0
      %p97 = por %p95, %p96
      %p98 = scmp.ne.s32.totalorder %s87, %s90
      %p99 = scmp.eq.s32.totalorder %s40, 7
      %p100 = por %p98, %p99
      %p101 = scmp.ne.s32.totalorder %s90, %s91
      %p102 = scmp.eq.s32.totalorder %s40, 0
      %p103 = por %p101, %p102
      %p104 = scmp.ne.s32.totalorder %s90, %s91
      %p105 = scmp.eq.s32.totalorder %s41, 7
      %p106 = por %p104, %p105
      %p108 = scmp.ne.s32.totalorder %s91, %s107
      %p109 = scmp.eq.s32.totalorder %s41, 0
      %p110 = por %p108, %p109
      %s112 = sadd.s32 %s111, 1
      %p115 = scmp.eq.s32.totalorder %s35, 7
      %p116 = scmp.ne.s32.totalorder %s111, %s113
      %p117 = scmp.eq.s32.totalorder %s35, 0
      %p118 = por %p116, %p117
      %p119 = scmp.ne.s32.totalorder %s111, %s113
      %p120 = scmp.eq.s32.totalorder %s40, 7
      %p121 = por %p119, %p120
      %p122 = scmp.ne.s32.totalorder %s113, %s114
      %p123 = scmp.eq.s32.totalorder %s40, 0
      %p124 = por %p122, %p123
      %p125 = scmp.ne.s32.totalorder %s113, %s114
      %p126 = scmp.eq.s32.totalorder %s41, 7
      %p127 = por %p125, %p126
      %p129 = scmp.ne.s32.totalorder %s114, %s128
      %p130 = scmp.eq.s32.totalorder %s41, 0
      %p131 = por %p129, %p130
      %s133 = sadd.s32 %s132, 1
      %p136 = scmp.eq.s32.totalorder %s35, 7
      %p137 = scmp.ne.s32.totalorder %s132, %s134
      %p138 = scmp.eq.s32.totalorder %s35, 0
      %p139 = por %p137, %p138
      %p140 = scmp.ne.s32.totalorder %s132, %s134
      %p141 = scmp.eq.s32.totalorder %s40, 7
      %p142 = por %p140, %p141
      %p143 = scmp.ne.s32.totalorder %s134, %s135
      %p144 = scmp.eq.s32.totalorder %s40, 0
      %p145 = por %p143, %p144
      %p146 = scmp.ne.s32.totalorder %s134, %s135
      %p147 = scmp.eq.s32.totalorder %s41, 7
      %p148 = por %p146, %p147
      %p150 = scmp.ne.s32.totalorder %s135, %s149
      %p151 = scmp.eq.s32.totalorder %s41, 0
      %p152 = por %p150, %p151
      %s154 = sadd.s32 %s153, 1
      %p157 = scmp.eq.s32.totalorder %s35, 7
      %p158 = scmp.ne.s32.totalorder %s153, %s155
      %p159 = scmp.eq.s32.totalorder %s35, 0
      %p160 = por %p158, %p159
      %p161 = scmp.ne.s32.totalorder %s153, %s155
      %p162 = scmp.eq.s32.totalorder %s40, 7
      %p163 = por %p161, %p162
      %p164 = scmp.ne.s32.totalorder %s155, %s156
      %p165 = scmp.eq.s32.totalorder %s40, 0
      %p166 = por %p164, %p165
      %p167 = scmp.ne.s32.totalorder %s155, %s156
      %p168 = scmp.eq.s32.totalorder %s41, 7
      %p169 = por %p167, %p168
      %p171 = scmp.ne.s32.totalorder %s156, %s170
      %p172 = scmp.eq.s32.totalorder %s41, 0
      %p173 = por %p171, %p172
      %s175 = sadd.s32 %s174, 1
      %p178 = scmp.eq.s32.totalorder %s35, 7
      %p179 = scmp.ne.s32.totalorder %s174, %s176
      %p180 = scmp.eq.s32.totalorder %s35, 0
      %p181 = por %p179, %p180
      %p182 = scmp.ne.s32.totalorder %s174, %s176
      %p183 = scmp.eq.s32.totalorder %s40, 7
      %p184 = por %p182, %p183
      %p185 = scmp.ne.s32.totalorder %s176, %s177
      %p186 = scmp.eq.s32.totalorder %s40, 0
      %p187 = por %p185, %p186
      %p188 = scmp.ne.s32.totalorder %s176, %s177
      %p189 = scmp.eq.s32.totalorder %s41, 7
      %p190 = por %p188, %p189
      %p192 = scmp.ne.s32.totalorder %s177, %s191
      %p193 = scmp.eq.s32.totalorder %s41, 0
      %p194 = por %p192, %p193
      %s196 = sadd.s32 %s195, 1
      %p199 = scmp.eq.s32.totalorder %s35, 7
      %p200 = scmp.ne.s32.totalorder %s195, %s197
      %p201 = scmp.eq.s32.totalorder %s35, 0
      %p202 = por %p200, %p201
      %p203 = scmp.ne.s32.totalorder %s195, %s197
      %p204 = scmp.eq.s32.totalorder %s40, 7
      %p205 = por %p203, %p204
      %p206 = scmp.ne.s32.totalorder %s197, %s198
      %p207 = scmp.eq.s32.totalorder %s40, 0
      %p208 = por %p206, %p207
      %p209 = scmp.ne.s32.totalorder %s197, %s198
      %p210 = scmp.eq.s32.totalorder %s41, 7
      %p211 = por %p209, %p210
      %p213 = scmp.ne.s32.totalorder %s198, %s212
      %p214 = scmp.eq.s32.totalorder %s41, 0
      %p215 = por %p213, %p214
      %s217 = sadd.s32 %s216, 1
      %p220 = scmp.eq.s32.totalorder %s35, 7
      %p221 = scmp.ne.s32.totalorder %s216, %s218
      %p222 = scmp.eq.s32.totalorder %s35, 0
      %p223 = por %p221, %p222
      %p224 = scmp.ne.s32.totalorder %s216, %s218
      %p225 = scmp.eq.s32.totalorder %s40, 7
      %p226 = por %p224, %p225
      %p227 = scmp.ne.s32.totalorder %s218, %s219
      %p228 = scmp.eq.s32.totalorder %s40, 0
      %p229 = por %p227, %p228
      %p230 = scmp.ne.s32.totalorder %s218, %s219
      %p231 = scmp.eq.s32.totalorder %s41, 7
      %p232 = por %p230, %p231
      %p234 = scmp.ne.s32.totalorder %s219, %s233
      %p235 = scmp.eq.s32.totalorder %s41, 0
      %p236 = por %p234, %p235
      %s238 = sadd.s32 %s237, 1
      %p241 = scmp.eq.s32.totalorder %s35, 7
      %p242 = scmp.ne.s32.totalorder %s237, %s239
      %p243 = scmp.eq.s32.totalorder %s35, 0
      %p244 = por %p242, %p243
      %p245 = scmp.ne.s32.totalorder %s237, %s239
      %p246 = scmp.eq.s32.totalorder %s40, 7
      %p247 = por %p245, %p246
      %p248 = scmp.ne.s32.totalorder %s239, %s240
      %p249 = scmp.eq.s32.totalorder %s40, 0
      %p250 = por %p248, %p249
      %p251 = scmp.ne.s32.totalorder %s239, %s240
      %p252 = scmp.eq.s32.totalorder %s41, 7
      %p253 = por %p251, %p252
      %p255 = scmp.ne.s32.totalorder %s240, %s254
      %p256 = scmp.eq.s32.totalorder %s41, 0
      %p257 = por %p255, %p256
      %s259 = sadd.s32 %s258, 1
      %p262 = scmp.eq.s32.totalorder %s35, 7
      %p263 = scmp.ne.s32.totalorder %s258, %s260
      %p264 = scmp.eq.s32.totalorder %s35, 0
      %p265 = por %p263, %p264
      %p266 = scmp.ne.s32.totalorder %s258, %s260
      %p267 = scmp.eq.s32.totalorder %s40, 7
      %p268 = por %p266, %p267
      %p269 = scmp.ne.s32.totalorder %s260, %s261
      %p270 = scmp.eq.s32.totalorder %s40, 0
      %p271 = por %p269, %p270
      %p272 = scmp.ne.s32.totalorder %s260, %s261
      %p273 = scmp.eq.s32.totalorder %s41, 7
      %p274 = por %p272, %p273
      %p276 = scmp.ne.s32.totalorder %s261, %s275
      %p277 = scmp.eq.s32.totalorder %s41, 0
      %p278 = por %p276, %p277
      %s280 = sadd.s32 %s279, 1
      %p283 = scmp.eq.s32.totalorder %s35, 7
      %p284 = scmp.ne.s32.totalorder %s279, %s281
      %p285 = scmp.eq.s32.totalorder %s35, 0
      %p286 = por %p284, %p285
      %p287 = scmp.ne.s32.totalorder %s279, %s281
      %p288 = scmp.eq.s32.totalorder %s40, 7
      %p289 = por %p287, %p288
      %p290 = scmp.ne.s32.totalorder %s281, %s282
      %p291 = scmp.eq.s32.totalorder %s40, 0
      %p292 = por %p290, %p291
      %p293 = scmp.ne.s32.totalorder %s281, %s282
      %p294 = scmp.eq.s32.totalorder %s41, 7
      %p295 = por %p293, %p294
      %p297 = scmp.ne.s32.totalorder %s282, %s296
      %p298 = scmp.eq.s32.totalorder %s41, 0
      %p299 = por %p297, %p298
      %s301 = sadd.s32 %s300, 1
      %p304 = scmp.eq.s32.totalorder %s35, 7
      %p305 = scmp.ne.s32.totalorder %s300, %s302
      %p306 = scmp.eq.s32.totalorder %s35, 0
      %p307 = por %p305, %p306
      %p308 = scmp.ne.s32.totalorder %s300, %s302
      %p309 = scmp.eq.s32.totalorder %s40, 7
      %p310 = por %p308, %p309
      %p311 = scmp.ne.s32.totalorder %s302, %s303
      %p312 = scmp.eq.s32.totalorder %s40, 0
      %p313 = por %p311, %p312
      %p314 = scmp.ne.s32.totalorder %s302, %s303
      %p315 = scmp.eq.s32.totalorder %s41, 7
      %p316 = por %p314, %p315
      %p318 = scmp.ne.s32.totalorder %s303, %s317
      %p319 = scmp.eq.s32.totalorder %s41, 0
      %p320 = por %p318, %p319
      %s322 = sadd.s32 %s321, 1
      %p325 = scmp.eq.s32.totalorder %s35, 7
      %p326 = scmp.ne.s32.totalorder %s321, %s323
      %p327 = scmp.eq.s32.totalorder %s35, 0
      %p328 = por %p326, %p327
      %p329 = scmp.ne.s32.totalorder %s321, %s323
      %p330 = scmp.eq.s32.totalorder %s40, 7
      %p331 = por %p329, %p330
      %p332 = scmp.ne.s32.totalorder %s323, %s324
      %p333 = scmp.eq.s32.totalorder %s40, 0
      %p334 = por %p332, %p333
      %p335 = scmp.ne.s32.totalorder %s323, %s324
      %p336 = scmp.eq.s32.totalorder %s41, 7
      %p337 = por %p335, %p336
      %p339 = scmp.ne.s32.totalorder %s324, %s338
      %p340 = scmp.eq.s32.totalorder %s41, 0
      %p341 = por %p339, %p340
      %s343 = sadd.s32 %s342, 1
      %p346 = scmp.eq.s32.totalorder %s35, 7
      %p347 = scmp.ne.s32.totalorder %s342, %s344
      %p348 = scmp.eq.s32.totalorder %s35, 0
      %p349 = por %p347, %p348
      %p350 = scmp.ne.s32.totalorder %s342, %s344
      %p351 = scmp.eq.s32.totalorder %s40, 7
      %p352 = por %p350, %p351
      %p353 = scmp.ne.s32.totalorder %s344, %s345
      %p354 = scmp.eq.s32.totalorder %s40, 0
      %p355 = por %p353, %p354
      %p356 = scmp.ne.s32.totalorder %s344, %s345
      %p357 = scmp.eq.s32.totalorder %s41, 7
      %p358 = por %p356, %p357
      %p360 = scmp.ne.s32.totalorder %s345, %s359
      %p361 = scmp.eq.s32.totalorder %s41, 0
      %p362 = por %p360, %p361
      %s364 = sadd.s32 %s363, 1
      %p367 = scmp.eq.s32.totalorder %s35, 7
      %p368 = scmp.ne.s32.totalorder %s363, %s365
      %p369 = scmp.eq.s32.totalorder %s35, 0
      %p370 = por %p368, %p369
      %p371 = scmp.ne.s32.totalorder %s363, %s365
      %p372 = scmp.eq.s32.totalorder %s40, 7
      %p373 = por %p371, %p372
      %p374 = scmp.ne.s32.totalorder %s365, %s366
      %p375 = scmp.eq.s32.totalorder %s40, 0
      %p376 = por %p374, %p375
      %p377 = scmp.ne.s32.totalorder %s365, %s366
      %p378 = scmp.eq.s32.totalorder %s41, 7
      %p379 = por %p377, %p378
      %p381 = scmp.ne.s32.totalorder %s366, %s380
      %p382 = scmp.eq.s32.totalorder %s41, 0
      %p383 = por %p381, %p382
      %s385 = sadd.s32 %s384, 1
      %p388 = scmp.eq.s32.totalorder %s35, 7
      %p389 = scmp.ne.s32.totalorder %s384, %s386
      %p390 = scmp.eq.s32.totalorder %s35, 0
      %p391 = por %p389, %p390
      %p392 = scmp.ne.s32.totalorder %s384, %s386
      %p393 = scmp.eq.s32.totalorder %s40, 7
      %p394 = por %p392, %p393
      %p395 = scmp.ne.s32.totalorder %s386, %s387
      %p396 = scmp.eq.s32.totalorder %s40, 0
      %p397 = por %p395, %p396
      %p398 = scmp.ne.s32.totalorder %s386, %s387
      %p399 = scmp.eq.s32.totalorder %s41, 7
      %p400 = por %p398, %p399
      %p402 = scmp.ne.s32.totalorder %s387, %s401
      %p403 = scmp.eq.s32.totalorder %s41, 0
      %p404 = por %p402, %p403
      %s406 = sadd.s32 %s405, 1
      %p409 = scmp.eq.s32.totalorder %s35, 7
      %p410 = scmp.ne.s32.totalorder %s405, %s407
      %p411 = scmp.eq.s32.totalorder %s35, 0
      %p412 = por %p410, %p411
      %p413 = scmp.ne.s32.totalorder %s405, %s407
      %p414 = scmp.eq.s32.totalorder %s40, 7
      %p415 = por %p413, %p414
      %p416 = scmp.ne.s32.totalorder %s407, %s408
      %p417 = scmp.eq.s32.totalorder %s40, 0
      %p418 = por %p416, %p417
      %p419 = scmp.ne.s32.totalorder %s407, %s408
      %p420 = scmp.eq.s32.totalorder %s41, 7
      %p421 = por %p419, %p420
      %p423 = scmp.ne.s32.totalorder %s408, %s422
      %p424 = scmp.eq.s32.totalorder %s41, 0
      %p425 = por %p423, %p424
      %s427 = sadd.s32 %s426, 1
      %p430 = scmp.eq.s32.totalorder %s35, 7
      %p431 = scmp.ne.s32.totalorder %s426, %s428
      %p432 = scmp.eq.s32.totalorder %s35, 0
      %p433 = por %p431, %p432
      %p434 = scmp.ne.s32.totalorder %s426, %s428
      %p435 = scmp.eq.s32.totalorder %s40, 7
      %p436 = por %p434, %p435
      %p437 = scmp.ne.s32.totalorder %s428, %s429
      %p438 = scmp.eq.s32.totalorder %s40, 0
      %p439 = por %p437, %p438
      %p440 = scmp.ne.s32.totalorder %s428, %s429
      %p441 = scmp.eq.s32.totalorder %s41, 7
      %p442 = por %p440, %p441
      %p444 = scmp.ne.s32.totalorder %s429, %s443
      %p445 = scmp.eq.s32.totalorder %s41, 0
      %p446 = por %p444, %p445
      %s448 = sadd.s32 %s447, 1
      %p451 = scmp.eq.s32.totalorder %s35, 7
      %p452 = scmp.ne.s32.totalorder %s447, %s449
      %p453 = scmp.eq.s32.totalorder %s35, 0
      %p454 = por %p452, %p453
      %p455 = scmp.ne.s32.totalorder %s447, %s449
      %p456 = scmp.eq.s32.totalorder %s40, 7
      %p457 = por %p455, %p456
      %p458 = scmp.ne.s32.totalorder %s449, %s450
      %p459 = scmp.eq.s32.totalorder %s40, 0
      %p460 = por %p458, %p459
      %p461 = scmp.ne.s32.totalorder %s449, %s450
      %p462 = scmp.eq.s32.totalorder %s41, 7
      %p463 = por %p461, %p462
      %p465 = scmp.ne.s32.totalorder %s450, %s464
      %p466 = scmp.eq.s32.totalorder %s41, 0
      %p467 = por %p465, %p466
      %s469 = sadd.s32 %s468, 1
      %p472 = scmp.eq.s32.totalorder %s35, 7
      %p473 = scmp.ne.s32.totalorder %s468, %s470
      %p474 = scmp.eq.s32.totalorder %s35, 0
      %p475 = por %p473, %p474
      %p476 = scmp.ne.s32.totalorder %s468, %s470
      %p477 = scmp.eq.s32.totalorder %s40, 7
      %p478 = por %p476, %p477
      %p479 = scmp.ne.s32.totalorder %s470, %s471
      %p480 = scmp.eq.s32.totalorder %s40, 0
      %p481 = por %p479, %p480
      %p482 = scmp.ne.s32.totalorder %s470, %s471
      %p483 = scmp.eq.s32.totalorder %s41, 7
      %p484 = por %p482, %p483
      %p486 = scmp.ne.s32.totalorder %s471, %s485
      %p487 = scmp.eq.s32.totalorder %s41, 0
      %p488 = por %p486, %p487
      %s490 = sadd.s32 %s489, 1
      %p493 = scmp.eq.s32.totalorder %s35, 7
      %p494 = scmp.ne.s32.totalorder %s489, %s491
      %p495 = scmp.eq.s32.totalorder %s35, 0
      %p496 = por %p494, %p495
      %p497 = scmp.ne.s32.totalorder %s489, %s491
      %p498 = scmp.eq.s32.totalorder %s40, 7
      %p499 = por %p497, %p498
      %p500 = scmp.ne.s32.totalorder %s491, %s492
      %p501 = scmp.eq.s32.totalorder %s40, 0
      %p502 = por %p500, %p501
      %p503 = scmp.ne.s32.totalorder %s491, %s492
      %p504 = scmp.eq.s32.totalorder %s41, 7
      %p505 = por %p503, %p504
      %p507 = scmp.ne.s32.totalorder %s492, %s506
      %p508 = scmp.eq.s32.totalorder %s41, 0
      %p509 = por %p507, %p508
      %s511 = sadd.s32 %s510, 1
      %p514 = scmp.eq.s32.totalorder %s35, 7
      %p515 = scmp.ne.s32.totalorder %s510, %s512
      %p516 = scmp.eq.s32.totalorder %s35, 0
      %p517 = por %p515, %p516
      %p518 = scmp.ne.s32.totalorder %s510, %s512
      %p519 = scmp.eq.s32.totalorder %s40, 7
      %p520 = por %p518, %p519
      %p521 = scmp.ne.s32.totalorder %s512, %s513
      %p522 = scmp.eq.s32.totalorder %s40, 0
      %p523 = por %p521, %p522
      %p524 = scmp.ne.s32.totalorder %s512, %s513
      %p525 = scmp.eq.s32.totalorder %s41, 7
      %p526 = por %p524, %p525
      %p528 = scmp.ne.s32.totalorder %s513, %s527
      %p529 = scmp.eq.s32.totalorder %s41, 0
      %p530 = por %p528, %p529
      %s531 = ssub.s32 %s42, %s54
      %p532 = scmp.eq.s32.totalorder %s531, 0
      %s534 = sadd.s32 %s533, 1
      %s535 = scalar_select %p532, %s533, %s534
      %p538 = pneg %p532
      %p539 = scmp.eq.s32.totalorder %s35, 7
      %p540 = por %p538, %p539
      %p541 = scmp.ne.s32.totalorder %s533, %s536
      %p542 = scmp.eq.s32.totalorder %s35, 0
      %p543 = por %p541, %p542
      %p544 = scmp.ne.s32.totalorder %s533, %s536
      %p545 = scmp.eq.s32.totalorder %s40, 7
      %p546 = por %p544, %p545
      %p547 = scmp.ne.s32.totalorder %s536, %s537
      %p548 = scmp.eq.s32.totalorder %s40, 0
      %p549 = por %p547, %p548
      %p550 = scmp.ne.s32.totalorder %s536, %s537
      %p551 = scmp.eq.s32.totalorder %s41, 7
      %p552 = por %p550, %p551
      %p554 = scmp.ne.s32.totalorder %s537, %s553
      %p555 = scmp.eq.s32.totalorder %s41, 0
      %p556 = por %p554, %p555
      %p557 = scmp.le.s32.totalorder 1, %s35
      %p558 = scmp.lt.s32.totalorder %s35, 9
      %p559 = pnand %p557, %p558
      %p560 = pneg %p559
      // Predicated region
      $region9: #{_lambda_.2} parent=5 // pred_check
        _
      $region10: #{_lambda_.2} parent=5 // pred_check_branch
        %562 = sbr.rel (%p559) target = $region12
      $region11: #{_lambda_.2} parent=5 // pred_region
        %s563 = ssub.s32 %s35, 1
        // Predicated region
        $region13: #{_lambda_.2} parent=11 // pred_check
          %p564 = pneg %p124
        $region14: #{_lambda_.2} parent=11 // pred_check_branch
          %566 = sbr.rel (%p564) target = $region16
        $region15: #{_lambda_.2} parent=11 // pred_region
          %568 = vsyncadd [#allocation3], 0
          %s569 = sshll.u32 %s2, 4
          %s570 = int_to_ptr.hbm [resolvable:$true] %s569
          %s571 = sshll.u32 [#allocation2], 4
          %s572 = int_to_ptr.vmem [resolvable:$true] %s571
          %577 = dma.hbm_to_vmem [thread:$0]  %s570, 256, %s572, [#allocation3], 128, 128, 8
        $region16: #{_lambda_.2} parent=11 // pred_fallthru
          _
        // Predicated region
        $region17: #{_lambda_.2} parent=11 // pred_check
          %p578 = pneg %p145
        $region18: #{_lambda_.2} parent=11 // pred_check_branch
          %580 = sbr.rel (%p578) target = $region20
        $region19: #{_lambda_.2} parent=11 // pred_region
          %582 = vsyncadd [#allocation5], 0
          %s584 = sshll.u32 %s3, 4
          %s585 = int_to_ptr.hbm [resolvable:$true] %s584
          %s586 = sshll.u32 [#allocation4], 4
          %s587 = int_to_ptr.vmem [resolvable:$true] %s586
          %589 = dma.hbm_to_vmem [thread:$0]  %s585, 16, %s587, [#allocation5]
        $region20: #{_lambda_.2} parent=11 // pred_fallthru
          _
        // Predicated region
        $region21: #{_lambda_.2} parent=11 // pred_check
          %p590 = pneg %p166
        $region22: #{_lambda_.2} parent=11 // pred_check_branch
          %592 = sbr.rel (%p590) target = $region24
        $region23: #{_lambda_.2} parent=11 // pred_region
          %594 = vsyncadd [#allocation5], 0
          %s596 = sshll.u32 %s4, 4
          %s597 = int_to_ptr.hbm [resolvable:$true] %s596
          %s598 = sshll.u32 [#allocation6], 4
          %s599 = int_to_ptr.vmem [resolvable:$true] %s598
          %601 = dma.hbm_to_vmem [thread:$0]  %s597, 128, %s599, [#allocation5]
        $region24: #{_lambda_.2} parent=11 // pred_fallthru
          _
        // Predicated region
        $region25: #{_lambda_.2} parent=11 // pred_check
          %p602 = pneg %p187
        $region26: #{_lambda_.2} parent=11 // pred_check_branch
          %604 = sbr.rel (%p602) target = $region28
        $region27: #{_lambda_.2} parent=11 // pred_region
          %606 = vsyncadd [#allocation8], 0
          %s608 = sshll.u32 %s5, 4
          %s609 = int_to_ptr.hbm [resolvable:$true] %s608
          %s610 = sshll.u32 [#allocation7], 4
          %s611 = int_to_ptr.vmem [resolvable:$true] %s610
          %613 = dma.hbm_to_vmem [thread:$0]  %s609, 16, %s611, [#allocation8]
        $region28: #{_lambda_.2} parent=11 // pred_fallthru
          _
        // Predicated region
        $region29: #{_lambda_.2} parent=11 // pred_check
          %p614 = pneg %p208
        $region30: #{_lambda_.2} parent=11 // pred_check_branch
          %616 = sbr.rel (%p614) target = $region32
        $region31: #{_lambda_.2} parent=11 // pred_region
          _
        $region32: #{_lambda_.2} parent=11 // pred_fallthru
          _
        // Predicated region
        $region33: #{_lambda_.2} parent=11 // pred_check
          %p617 = pneg %p229
        $region34: #{_lambda_.2} parent=11 // pred_check_branch
          %619 = sbr.rel (%p617) target = $region36
        $region35: #{_lambda_.2} parent=11 // pred_region
          %621 = vsyncadd [#allocation8], 0
          %s623 = sshll.u32 %s7, 4
          %s624 = int_to_ptr.hbm [resolvable:$true] %s623
          %s625 = sshll.u32 [#allocation9], 4
          %s626 = int_to_ptr.vmem [resolvable:$true] %s625
          %628 = dma.hbm_to_vmem [thread:$0]  %s624, 16, %s626, [#allocation8]
        $region36: #{_lambda_.2} parent=11 // pred_fallthru
          _
        // Predicated region
        $region37: #{_lambda_.2} parent=11 // pred_check
          %p629 = pneg %p250
        $region38: #{_lambda_.2} parent=11 // pred_check_branch
          %631 = sbr.rel (%p629) target = $region40
        $region39: #{_lambda_.2} parent=11 // pred_region
          _
        $region40: #{_lambda_.2} parent=11 // pred_fallthru
          _
        // Predicated region
        $region41: #{_lambda_.2} parent=11 // pred_check
          %p632 = pneg %p271
        $region42: #{_lambda_.2} parent=11 // pred_check_branch
          %634 = sbr.rel (%p632) target = $region44
        $region43: #{_lambda_.2} parent=11 // pred_region
          %636 = vsyncadd [#allocation11], 0
          %s638 = sshll.u32 %s9, 4
          %s639 = int_to_ptr.hbm [resolvable:$true] %s638
          %s640 = sshll.u32 [#allocation10], 4
          %s641 = int_to_ptr.vmem [resolvable:$true] %s640
          %643 = dma.hbm_to_vmem [thread:$0]  %s639, 16, %s641, [#allocation11]
        $region44: #{_lambda_.2} parent=11 // pred_fallthru
          _
        // Predicated region
        $region45: #{_lambda_.2} parent=11 // pred_check
          %p644 = pneg %p292
        $region46: #{_lambda_.2} parent=11 // pred_check_branch
          %646 = sbr.rel (%p644) target = $region48
        $region47: #{_lambda_.2} parent=11 // pred_region
          %648 = vsyncadd [#allocation11], 0
          %s650 = sshll.u32 %s10, 4
          %s651 = int_to_ptr.hbm [resolvable:$true] %s650
          %s652 = sshll.u32 [#allocation12], 4
          %s653 = int_to_ptr.vmem [resolvable:$true] %s652
          %655 = dma.hbm_to_vmem [thread:$0]  %s651, 128, %s653, [#allocation11]
        $region48: #{_lambda_.2} parent=11 // pred_fallthru
          _
        // Predicated region
        $region49: #{_lambda_.2} parent=11 // pred_check
          %p656 = pneg %p313
        $region50: #{_lambda_.2} parent=11 // pred_check_branch
          %658 = sbr.rel (%p656) target = $region52
        $region51: #{_lambda_.2} parent=11 // pred_region
          %660 = vsyncadd [#allocation14], 0
          %s662 = sshll.u32 %s11, 4
          %s663 = int_to_ptr.hbm [resolvable:$true] %s662
          %s664 = sshll.u32 [#allocation13], 4
          %s665 = int_to_ptr.vmem [resolvable:$true] %s664
          %667 = dma.hbm_to_vmem [thread:$0]  %s663, 16, %s665, [#allocation14]
        $region52: #{_lambda_.2} parent=11 // pred_fallthru
          _
        // Predicated region
        $region53: #{_lambda_.2} parent=11 // pred_check
          %p668 = pneg %p334
        $region54: #{_lambda_.2} parent=11 // pred_check_branch
          %670 = sbr.rel (%p668) target = $region56
        $region55: #{_lambda_.2} parent=11 // pred_region
          %672 = vsyncadd [#allocation14], 0
          %s673 = sshll.u32 %s12, 4
          %s674 = int_to_ptr.hbm [resolvable:$true] %s673
          %s675 = sshll.u32 [#allocation15], 4
          %s676 = int_to_ptr.vmem [resolvable:$true] %s675
          %681 = dma.hbm_to_vmem [thread:$0]  %s674, 2048, %s676, [#allocation14], 128, 128, 8
        $region56: #{_lambda_.2} parent=11 // pred_fallthru
          _
        // Predicated region
        $region57: #{_lambda_.2} parent=11 // pred_check
          %p682 = pneg %p355
        $region58: #{_lambda_.2} parent=11 // pred_check_branch
          %684 = sbr.rel (%p682) target = $region60
        $region59: #{_lambda_.2} parent=11 // pred_region
          %686 = vsyncadd [#allocation17], 0
          %s688 = sshll.u32 %s13, 4
          %s689 = int_to_ptr.hbm [resolvable:$true] %s688
          %s690 = sshll.u32 [#allocation16], 4
          %s691 = int_to_ptr.vmem [resolvable:$true] %s690
          %693 = dma.hbm_to_vmem [thread:$0]  %s689, 16, %s691, [#allocation17]
        $region60: #{_lambda_.2} parent=11 // pred_fallthru
          _
        // Predicated region
        $region61: #{_lambda_.2} parent=11 // pred_check
          %p694 = pneg %p376
        $region62: #{_lambda_.2} parent=11 // pred_check_branch
          %696 = sbr.rel (%p694) target = $region64
        $region63: #{_lambda_.2} parent=11 // pred_region
          %698 = vsyncadd [#allocation17], 0
          %s699 = sshll.u32 %s14, 4
          %s700 = int_to_ptr.hbm [resolvable:$true] %s699
          %s701 = sshll.u32 [#allocation18], 4
          %s702 = int_to_ptr.vmem [resolvable:$true] %s701
          %707 = dma.hbm_to_vmem [thread:$0]  %s700, 2048, %s702, [#allocation17], 128, 128, 8
        $region64: #{_lambda_.2} parent=11 // pred_fallthru
          _
        // Predicated region
        $region65: #{_lambda_.2} parent=11 // pred_check
          %p708 = pneg %p397
        $region66: #{_lambda_.2} parent=11 // pred_check_branch
          %710 = sbr.rel (%p708) target = $region68
        $region67: #{_lambda_.2} parent=11 // pred_region
          _
        $region68: #{_lambda_.2} parent=11 // pred_fallthru
          _
        // Predicated region
        $region69: #{_lambda_.2} parent=11 // pred_check
          %p711 = pneg %p418
        $region70: #{_lambda_.2} parent=11 // pred_check_branch
          %713 = sbr.rel (%p711) target = $region72
        $region71: #{_lambda_.2} parent=11 // pred_region
          _
        $region72: #{_lambda_.2} parent=11 // pred_fallthru
          _
        // Predicated region
        $region73: #{_lambda_.2} parent=11 // pred_check
          %p714 = pneg %p439
        $region74: #{_lambda_.2} parent=11 // pred_check_branch
          %716 = sbr.rel (%p714) target = $region76
        $region75: #{_lambda_.2} parent=11 // pred_region
          _
        $region76: #{_lambda_.2} parent=11 // pred_fallthru
          _
        // Predicated region
        $region77: #{_lambda_.2} parent=11 // pred_check
          %p717 = pneg %p460
        $region78: #{_lambda_.2} parent=11 // pred_check_branch
          %719 = sbr.rel (%p717) target = $region80
        $region79: #{_lambda_.2} parent=11 // pred_region
          %721 = vsyncadd [#allocation20], 0
          %s722 = sshll.u32 %s18, 4
          %s723 = int_to_ptr.hbm [resolvable:$true] %s722
          %s724 = sshll.u32 [#allocation19], 4
          %s725 = int_to_ptr.vmem [resolvable:$true] %s724
          %730 = dma.hbm_to_vmem [thread:$0]  %s723, 2048, %s725, [#allocation20], 128, 128, 8
        $region80: #{_lambda_.2} parent=11 // pred_fallthru
          _
        // Predicated region
        $region81: #{_lambda_.2} parent=11 // pred_check
          %p731 = pneg %p481
        $region82: #{_lambda_.2} parent=11 // pred_check_branch
          %733 = sbr.rel (%p731) target = $region84
        $region83: #{_lambda_.2} parent=11 // pred_region
          _
        $region84: #{_lambda_.2} parent=11 // pred_fallthru
          _
        // Predicated region
        $region85: #{_lambda_.2} parent=11 // pred_check
          %p734 = pneg %p502
        $region86: #{_lambda_.2} parent=11 // pred_check_branch
          %736 = sbr.rel (%p734) target = $region88
        $region87: #{_lambda_.2} parent=11 // pred_region
          %738 = vsyncadd [#allocation20], 0
          %s739 = sshll.u32 %s20, 4
          %s740 = int_to_ptr.hbm [resolvable:$true] %s739
          %s741 = sshll.u32 [#allocation21], 4
          %s742 = int_to_ptr.vmem [resolvable:$true] %s741
          %747 = dma.hbm_to_vmem [thread:$0]  %s740, 2048, %s742, [#allocation20], 128, 128, 8
        $region88: #{_lambda_.2} parent=11 // pred_fallthru
          _
        // Predicated region
        $region89: #{_lambda_.2} parent=11 // pred_check
          %p748 = pneg %p523
        $region90: #{_lambda_.2} parent=11 // pred_check_branch
          %750 = sbr.rel (%p748) target = $region92
        $region91: #{_lambda_.2} parent=11 // pred_region
          _
        $region92: #{_lambda_.2} parent=11 // pred_fallthru
          _
      $region12: #{_lambda_.2} parent=5 // pred_fallthru
        _
      %p751 = scmp.lt.s32.totalorder %s35, 8
      // Predicated region
      $region93: #{_lambda_.2} parent=5 // pred_check
        %p752 = pneg %p751
      $region94: #{_lambda_.2} parent=5 // pred_check_branch
        %754 = sbr.rel (%p752) target = $region96
      $region95: #{_lambda_.2} parent=5 // pred_region
        // Predicated region
        $region97: #{_lambda_.2} parent=95 // pred_check
          %p755 = pneg %p69
        $region98: #{_lambda_.2} parent=95 // pred_check_branch
          %757 = sbr.rel (%p755) target = $region100
        $region99: #{_lambda_.2} parent=95 // pred_region
          %p758 = scmp.lt.s32.totalorder %s43, 3
          %s759 = scalar_select %p758, %s43, 3
          %p760 = scmp.lt.s32.totalorder %s42, 1
          %s761 = scalar_select %p760, %s42, 1
          %s762 = smul.addr %s759, 2
          %s763 = sadd.s32 %s761, %s762
          %s764 = smul.addr %s763, 8
          %s765 = scalar_lea.vmem %s0, %s764
        $region100: #{_lambda_.2} parent=95 // pred_fallthru
          _
        // Predicated region
        $region101: #{_lambda_.2} parent=95 // pred_check
          %p766 = pneg %p97
        $region102: #{_lambda_.2} parent=95 // pred_check_branch
          %768 = sbr.rel (%p766) target = $region104
        $region103: #{_lambda_.2} parent=95 // pred_region
          %p769 = scmp.lt.s32.totalorder %s43, 3
          %s770 = scalar_select %p769, %s43, 3
          %p771 = scmp.lt.s32.totalorder %s42, 1
          %s772 = scalar_select %p771, %s42, 1
          %s773 = smul.addr %s770, 2
          %s774 = sadd.s32 %s772, %s773
          %s775 = smul.addr %s774, 8
          %s776 = scalar_lea.vmem %s1, %s775
        $region104: #{_lambda_.2} parent=95 // pred_fallthru
          _
      $region96: #{_lambda_.2} parent=5 // pred_fallthru
        _
      %p777 = scmp.le.s32.totalorder 1, %s35
      %p778 = scmp.lt.s32.totalorder %s35, 9
      %p779 = pnand %p777, %p778
      %p780 = pneg %p779
      // Predicated region
      $region105: #{_lambda_.2} parent=5 // pred_check
        _
      $region106: #{_lambda_.2} parent=5 // pred_check_branch
        %782 = sbr.rel (%p779) target = $region108
      $region107: #{_lambda_.2} parent=5 // pred_region
        %s783 = ssub.s32 %s35, 1
        // Predicated region
        $region109: #{_lambda_.2} parent=107 // pred_check
          %p784 = pneg %p124
        $region110: #{_lambda_.2} parent=107 // pred_check_branch
          %786 = sbr.rel (%p784) target = $region112
        $region111: #{_lambda_.2} parent=107 // pred_region
          %788 = dma.done [#allocation3], 256
        $region112: #{_lambda_.2} parent=107 // pred_fallthru
          _
        // Predicated region
        $region113: #{_lambda_.2} parent=107 // pred_check
          %p789 = pneg %p145
        $region114: #{_lambda_.2} parent=107 // pred_check_branch
          %791 = sbr.rel (%p789) target = $region116
        $region115: #{_lambda_.2} parent=107 // pred_region
          %793 = dma.done [#allocation5], 16
        $region116: #{_lambda_.2} parent=107 // pred_fallthru
          _
        // Predicated region
        $region117: #{_lambda_.2} parent=107 // pred_check
          %p794 = pneg %p166
        $region118: #{_lambda_.2} parent=107 // pred_check_branch
          %796 = sbr.rel (%p794) target = $region120
        $region119: #{_lambda_.2} parent=107 // pred_region
          %798 = dma.done [#allocation5], 128
        $region120: #{_lambda_.2} parent=107 // pred_fallthru
          _
        // Predicated region
        $region121: #{_lambda_.2} parent=107 // pred_check
          %p799 = pneg %p187
        $region122: #{_lambda_.2} parent=107 // pred_check_branch
          %801 = sbr.rel (%p799) target = $region124
        $region123: #{_lambda_.2} parent=107 // pred_region
          %803 = dma.done [#allocation8], 16
        $region124: #{_lambda_.2} parent=107 // pred_fallthru
          _
        // Predicated region
        $region125: #{_lambda_.2} parent=107 // pred_check
          %p804 = pneg %p229
        $region126: #{_lambda_.2} parent=107 // pred_check_branch
          %806 = sbr.rel (%p804) target = $region128
        $region127: #{_lambda_.2} parent=107 // pred_region
          %808 = dma.done [#allocation8], 16
        $region128: #{_lambda_.2} parent=107 // pred_fallthru
          _
        // Predicated region
        $region129: #{_lambda_.2} parent=107 // pred_check
          %p809 = pneg %p271
        $region130: #{_lambda_.2} parent=107 // pred_check_branch
          %811 = sbr.rel (%p809) target = $region132
        $region131: #{_lambda_.2} parent=107 // pred_region
          %813 = dma.done [#allocation11], 16
        $region132: #{_lambda_.2} parent=107 // pred_fallthru
          _
        // Predicated region
        $region133: #{_lambda_.2} parent=107 // pred_check
          %p814 = pneg %p292
        $region134: #{_lambda_.2} parent=107 // pred_check_branch
          %816 = sbr.rel (%p814) target = $region136
        $region135: #{_lambda_.2} parent=107 // pred_region
          %818 = dma.done [#allocation11], 128
        $region136: #{_lambda_.2} parent=107 // pred_fallthru
          _
        // Predicated region
        $region137: #{_lambda_.2} parent=107 // pred_check
          %p819 = pneg %p313
        $region138: #{_lambda_.2} parent=107 // pred_check_branch
          %821 = sbr.rel (%p819) target = $region140
        $region139: #{_lambda_.2} parent=107 // pred_region
          %823 = dma.done [#allocation14], 16
        $region140: #{_lambda_.2} parent=107 // pred_fallthru
          _
        // Predicated region
        $region141: #{_lambda_.2} parent=107 // pred_check
          %p824 = pneg %p334
        $region142: #{_lambda_.2} parent=107 // pred_check_branch
          %826 = sbr.rel (%p824) target = $region144
        $region143: #{_lambda_.2} parent=107 // pred_region
          %828 = dma.done [#allocation14], 2048
        $region144: #{_lambda_.2} parent=107 // pred_fallthru
          _
        // Predicated region
        $region145: #{_lambda_.2} parent=107 // pred_check
          %p829 = pneg %p355
        $region146: #{_lambda_.2} parent=107 // pred_check_branch
          %831 = sbr.rel (%p829) target = $region148
        $region147: #{_lambda_.2} parent=107 // pred_region
          %833 = dma.done [#allocation17], 16
        $region148: #{_lambda_.2} parent=107 // pred_fallthru
          _
        // Predicated region
        $region149: #{_lambda_.2} parent=107 // pred_check
          %p834 = pneg %p376
        $region150: #{_lambda_.2} parent=107 // pred_check_branch
          %836 = sbr.rel (%p834) target = $region152
        $region151: #{_lambda_.2} parent=107 // pred_region
          %838 = dma.done [#allocation17], 2048
        $region152: #{_lambda_.2} parent=107 // pred_fallthru
          _
        // Predicated region
        $region153: #{_lambda_.2} parent=107 // pred_check
          %p839 = pneg %p460
        $region154: #{_lambda_.2} parent=107 // pred_check_branch
          %841 = sbr.rel (%p839) target = $region156
        $region155: #{_lambda_.2} parent=107 // pred_region
          %843 = dma.done [#allocation20], 2048
        $region156: #{_lambda_.2} parent=107 // pred_fallthru
          _
        // Predicated region
        $region157: #{_lambda_.2} parent=107 // pred_check
          %p844 = pneg %p502
        $region158: #{_lambda_.2} parent=107 // pred_check_branch
          %846 = sbr.rel (%p844) target = $region160
        $region159: #{_lambda_.2} parent=107 // pred_region
          %848 = dma.done [#allocation20], 2048
        $region160: #{_lambda_.2} parent=107 // pred_fallthru
          _
        %p849 = scmp.lt.s32.totalorder %s45, 3
        %s850 = scalar_select %p849, %s45, 3
        %p851 = scmp.lt.s32.totalorder %s44, 1
        %s852 = scalar_select %p851, %s44, 1
        %s853 = smul.addr %s850, 2
        %s854 = sadd.s32 %s852, %s853
        %s855 = smul.addr %s854, 8
        %s856 = scalar_lea.vmem %s0, %s855
        %p857 = pneg %p75
        %p858 = pneg %p72
        %p859 = scmp.lt.s32.totalorder %s45, 3
        %s860 = scalar_select %p859, %s45, 3
        %p861 = scmp.lt.s32.totalorder %s44, 1
        %s862 = scalar_select %p861, %s44, 1
        %s863 = smul.addr %s860, 2
        %s864 = sadd.s32 %s862, %s863
        %s865 = smul.addr %s864, 8
        %s866 = scalar_lea.vmem %s1, %s865
        %p867 = pneg %p103
        %p868 = pneg %p100
        %p869 = pneg %p124
        %p870 = pneg %p121
        %p871 = pneg %p145
        %p872 = pneg %p142
        %p873 = pneg %p166
        %p874 = pneg %p163
        %p875 = pneg %p187
        %p876 = pneg %p184
        %p877 = pneg %p208
        %p878 = pneg %p205
        %p879 = pneg %p229
        %p880 = pneg %p226
        %p881 = pneg %p250
        %p882 = pneg %p247
        %p883 = pneg %p271
        %p884 = pneg %p268
        %p885 = pneg %p292
        %p886 = pneg %p289
        %p887 = pneg %p313
        %p888 = pneg %p310
        %p889 = pneg %p334
        %p890 = pneg %p331
        %p891 = pneg %p355
        %p892 = pneg %p352
        %p893 = pneg %p376
        %p894 = pneg %p373
        %p895 = pneg %p397
        %p896 = pneg %p394
        %p897 = pneg %p418
        %p898 = pneg %p415
        %p899 = pneg %p439
        %p900 = pneg %p436
        %p901 = pneg %p460
        %p902 = pneg %p457
        %p903 = pneg %p481
        %p904 = pneg %p478
        %p905 = pneg %p502
        %p906 = pneg %p499
        %p907 = pneg %p523
        %p908 = pneg %p520
        %p909 = pneg %p549
        %p910 = pneg %p546
        %p911 = scmp.lt.s32.totalorder %s44, 1
        %s912 = scalar_select %p911, %s44, 1
        %s913 = smul.addr %s912, 8
        %s914 = scalar_lea.vmem %s22, %s913
        %p915 = scmp.lt.s32.totalorder %s45, 3
        %s916 = scalar_select %p915, %s45, 3
        %p917 = scmp.lt.s32.totalorder %s44, 1
        %s918 = scalar_select %p917, %s44, 1
        %s919 = smul.addr %s916, 2
        %s920 = sadd.s32 %s918, %s919
        %s921 = smul.addr %s920, 8
        %s922 = scalar_lea.vmem %s0, %s921
        %p923 = scmp.lt.s32.totalorder %s45, 3
        %s924 = scalar_select %p923, %s45, 3
        %p925 = scmp.lt.s32.totalorder %s44, 1
        %s926 = scalar_select %p925, %s44, 1
        %s927 = smul.addr %s924, 2
        %s928 = sadd.s32 %s926, %s927
        %s929 = smul.addr %s928, 8
        %s930 = scalar_lea.vmem %s1, %s929
        %p931 = scmp.lt.s32.totalorder %s44, 1
        %s932 = scalar_select %p931, %s44, 1
        %s933 = smul.addr %s932, 8
        %s934 = scalar_lea.vmem %s22, %s933
        %v935 = vld [vmem:[%s922] sm:$0xff]
        %v936 = vld [vmem:[%s930] sm:$0xff]
        %v937 = vld [vmem:[#allocation2] sm:$0xff]
        %v938 = vld [vmem:[#allocation2 + $0x8] sm:$0xff]
        %v939 = vld [vmem:[#allocation4] sm:$0x1]
        %v941 = vperm.slane %v939, 0
        %vm943 = vcmask 130048
        %v945 = vsel %vm943, %v935, 0
        %947 = vmatpush.msra.mxu0 0.0
        %948 = vmatpush.msra.mxu0 0.0
        %949 = vmatpush.msra.mxu0 0.0
        %950 = vmatpush.msra.mxu0 0.0
        %951 = vmatpush.msra.mxu0 0.0
        %952 = vmatpush.msra.mxu0 0.0
        %953 = vmatpush.msra.mxu0 0.0
        %954 = vmatpush.msra.mxu0 0.0
        %955 = vmatpush.msra.mxu0 0.0
        %956 = vmatpush.msra.mxu0 0.0
        %957 = vmatpush.msra.mxu0 0.0
        %958 = vmatpush.msra.mxu0 0.0
        %959 = vmatpush.msra.mxu0 0.0
        %960 = vmatpush.msra.mxu0 0.0
        %961 = vmatpush.msra.mxu0 %v938
        %962 = vmatpush.msra.mxu0 %v937
        %963 = vmatmul.f32.gmra.mxu0 %v945
        %v964 = vpop.f32.mrf.mxu0
        %v965 = vadd.f32 %v941, %v964
        %966 = vdwg.mxu0
        %v967 = vld [vmem:[#allocation6] sm:$0xff]
        %v968 = vld [vmem:[#allocation7] sm:$0x1]
        %v970 = vperm.slane %v968, 0
        %vm972 = vcmask 64512
        %v974 = vsel %vm972, %v936, 0
        %976 = vmatpush.msra.mxu0 0.0
        %977 = vmatpush.msra.mxu0 0.0
        %978 = vmatpush.msra.mxu0 0.0
        %979 = vmatpush.msra.mxu0 0.0
        %980 = vmatpush.msra.mxu0 0.0
        %981 = vmatpush.msra.mxu0 0.0
        %982 = vmatpush.msra.mxu0 0.0
        %983 = vmatpush.msra.mxu0 0.0
        %984 = vmatpush.msra.mxu0 0.0
        %985 = vmatpush.msra.mxu0 0.0
        %986 = vmatpush.msra.mxu0 0.0
        %987 = vmatpush.msra.mxu0 0.0
        %988 = vmatpush.msra.mxu0 0.0
        %989 = vmatpush.msra.mxu0 0.0
        %990 = vmatpush.msra.mxu0 0.0
        %991 = vmatpush.msra.mxu0 %v967
        %992 = vmatmul.f32.gmra.mxu0 %v974
        %v993 = vpop.f32.mrf.mxu0
        %v994 = vadd.f32 %v970, %v993
        %995 = vdwg.mxu0
        %v996 = vadd.f32 %v965, %v994
        %vm997 = vcmp.gt.f32.partialorder %v996, 0.0
        %v998 = vmul.f32 %v996, 0.2
        %v999 = vsel %vm997, %v996, %v998
        %v1000 = vld [vmem:[%s6] sm:$0xff]
        %v1001 = vld [vmem:[%s6 + $0x8] sm:$0xff]
        %v1002 = vld [vmem:[%s6 + $0x10] sm:$0xff]
        %v1003 = vld [vmem:[%s6 + $0x18] sm:$0xff]
        %v1004 = vld [vmem:[%s6 + $0x20] sm:$0xff]
        %v1005 = vld [vmem:[%s6 + $0x28] sm:$0xff]
        %v1006 = vld [vmem:[%s6 + $0x30] sm:$0xff]
        %v1007 = vld [vmem:[%s6 + $0x38] sm:$0xff]
        %v1008 = vld [vmem:[%s6 + $0x40] sm:$0xff]
        %v1009 = vld [vmem:[%s6 + $0x48] sm:$0xff]
        %v1010 = vld [vmem:[%s6 + $0x50] sm:$0xff]
        %v1011 = vld [vmem:[%s6 + $0x58] sm:$0xff]
        %v1012 = vld [vmem:[%s6 + $0x60] sm:$0xff]
        %v1013 = vld [vmem:[%s6 + $0x68] sm:$0xff]
        %v1014 = vld [vmem:[%s6 + $0x70] sm:$0xff]
        %v1015 = vld [vmem:[%s6 + $0x78] sm:$0xff]
        %v1016 = vld [vmem:[#allocation9] sm:$0x1]
        %v1018 = vperm.slane %v1016, 0
        %1020 = vmatpush.msra.mxu0 %v1015
        %1021 = vmatpush.msra.mxu0 %v1014
        %1022 = vmatpush.msra.mxu0 %v1013
        %1023 = vmatpush.msra.mxu0 %v1012
        %1024 = vmatpush.msra.mxu0 %v1011
        %1025 = vmatpush.msra.mxu0 %v1010
        %1026 = vmatpush.msra.mxu0 %v1009
        %1027 = vmatpush.msra.mxu0 %v1008
        %1028 = vmatpush.msra.mxu0 %v1007
        %1029 = vmatpush.msra.mxu0 %v1006
        %1030 = vmatpush.msra.mxu0 %v1005
        %1031 = vmatpush.msra.mxu0 %v1004
        %1032 = vmatpush.msra.mxu0 %v1003
        %1033 = vmatpush.msra.mxu0 %v1002
        %1034 = vmatpush.msra.mxu0 %v1001
        %1035 = vmatpush.msra.mxu0 %v1000
        %1036 = vmatmul.f32.gmra.mxu0 %v999
        %v1037 = vpop.f32.mrf.mxu0
        %v1038 = vadd.f32 %v1018, %v1037
        %1039 = vdwg.mxu0
        %vm1040 = vcmp.gt.f32.partialorder %v1038, 0.0
        %v1041 = vmul.f32 %v1038, 0.2
        %v1042 = vsel %vm1040, %v1038, %v1041
        %v1043 = vld [vmem:[%s8] sm:$0xff]
        %v1044 = vld [vmem:[%s8 + $0x8] sm:$0xff]
        %v1045 = vld [vmem:[%s8 + $0x10] sm:$0xff]
        %v1046 = vld [vmem:[%s8 + $0x18] sm:$0xff]
        %v1047 = vld [vmem:[%s8 + $0x20] sm:$0xff]
        %v1048 = vld [vmem:[%s8 + $0x28] sm:$0xff]
        %v1049 = vld [vmem:[%s8 + $0x30] sm:$0xff]
        %v1050 = vld [vmem:[%s8 + $0x38] sm:$0xff]
        %v1051 = vld [vmem:[%s8 + $0x40] sm:$0xff]
        %v1052 = vld [vmem:[%s8 + $0x48] sm:$0xff]
        %v1053 = vld [vmem:[%s8 + $0x50] sm:$0xff]
        %v1054 = vld [vmem:[%s8 + $0x58] sm:$0xff]
        %v1055 = vld [vmem:[%s8 + $0x60] sm:$0xff]
        %v1056 = vld [vmem:[%s8 + $0x68] sm:$0xff]
        %v1057 = vld [vmem:[%s8 + $0x70] sm:$0xff]
        %v1058 = vld [vmem:[%s8 + $0x78] sm:$0xff]
        %v1059 = vld [vmem:[#allocation10] sm:$0x1]
        %v1061 = vperm.slane %v1059, 0
        %1063 = vmatpush.msra.mxu0 %v1058
        %1064 = vmatpush.msra.mxu0 %v1057
        %1065 = vmatpush.msra.mxu0 %v1056
        %1066 = vmatpush.msra.mxu0 %v1055
        %1067 = vmatpush.msra.mxu0 %v1054
        %1068 = vmatpush.msra.mxu0 %v1053
        %1069 = vmatpush.msra.mxu0 %v1052
        %1070 = vmatpush.msra.mxu0 %v1051
        %1071 = vmatpush.msra.mxu0 %v1050
        %1072 = vmatpush.msra.mxu0 %v1049
        %1073 = vmatpush.msra.mxu0 %v1048
        %1074 = vmatpush.msra.mxu0 %v1047
        %1075 = vmatpush.msra.mxu0 %v1046
        %1076 = vmatpush.msra.mxu0 %v1045
        %1077 = vmatpush.msra.mxu0 %v1044
        %1078 = vmatpush.msra.mxu0 %v1043
        %1079 = vmatmul.f32.gmra.mxu0 %v1042
        %v1080 = vpop.f32.mrf.mxu0
        %v1081 = vadd.f32 %v1061, %v1080
        %1082 = vdwg.mxu0
        %v1083 = vadd.f32 %v1081, %v965
        %v1084 = vld [vmem:[#allocation12] sm:$0xff]
        %v1085 = vld [vmem:[#allocation13] sm:$0x1]
        %v1087 = vperm.slane %v1085, 0
        %1089 = vmatpush.msra.mxu0 0.0
        %1090 = vmatpush.msra.mxu0 0.0
        %1091 = vmatpush.msra.mxu0 0.0
        %1092 = vmatpush.msra.mxu0 0.0
        %1093 = vmatpush.msra.mxu0 0.0
        %1094 = vmatpush.msra.mxu0 0.0
        %1095 = vmatpush.msra.mxu0 0.0
        %1096 = vmatpush.msra.mxu0 0.0
        %1097 = vmatpush.msra.mxu0 0.0
        %1098 = vmatpush.msra.mxu0 0.0
        %1099 = vmatpush.msra.mxu0 0.0
        %1100 = vmatpush.msra.mxu0 0.0
        %1101 = vmatpush.msra.mxu0 0.0
        %1102 = vmatpush.msra.mxu0 0.0
        %1103 = vmatpush.msra.mxu0 0.0
        %1104 = vmatpush.msra.mxu0 %v1084
        %1105 = vmatmul.f32.gmra.mxu0 %v974
        %v1106 = vpop.f32.mrf.mxu0
        %v1107 = vadd.f32 %v1087, %v1106
        %1108 = vdwg.mxu0
        %v1109 = vadd.f32 %v1083, %v1107
        %vm1110 = vcmp.gt.f32.partialorder %v1109, 0.0
        %v1111 = vmul.f32 %v1109, 0.2
        %v1112 = vsel %vm1110, %v1109, %v1111
        %v1113 = vld [vmem:[#allocation15] sm:$0xff]
        %v1114 = vld [vmem:[#allocation15 + $0x8] sm:$0xff]
        %v1115 = vld [vmem:[#allocation15 + $0x10] sm:$0xff]
        %v1116 = vld [vmem:[#allocation15 + $0x18] sm:$0xff]
        %v1117 = vld [vmem:[#allocation15 + $0x20] sm:$0xff]
        %v1118 = vld [vmem:[#allocation15 + $0x28] sm:$0xff]
        %v1119 = vld [vmem:[#allocation15 + $0x30] sm:$0xff]
        %v1120 = vld [vmem:[#allocation15 + $0x38] sm:$0xff]
        %v1121 = vld [vmem:[#allocation15 + $0x40] sm:$0xff]
        %v1122 = vld [vmem:[#allocation15 + $0x48] sm:$0xff]
        %v1123 = vld [vmem:[#allocation15 + $0x50] sm:$0xff]
        %v1124 = vld [vmem:[#allocation15 + $0x58] sm:$0xff]
        %v1125 = vld [vmem:[#allocation15 + $0x60] sm:$0xff]
        %v1126 = vld [vmem:[#allocation15 + $0x68] sm:$0xff]
        %v1127 = vld [vmem:[#allocation15 + $0x70] sm:$0xff]
        %v1128 = vld [vmem:[#allocation15 + $0x78] sm:$0xff]
        %v1129 = vld [vmem:[#allocation16] sm:$0x1]
        %v1131 = vperm.slane %v1129, 0
        %1133 = vmatpush.msra.mxu0 %v1128
        %1134 = vmatpush.msra.mxu0 %v1127
        %1135 = vmatpush.msra.mxu0 %v1126
        %1136 = vmatpush.msra.mxu0 %v1125
        %1137 = vmatpush.msra.mxu0 %v1124
        %1138 = vmatpush.msra.mxu0 %v1123
        %1139 = vmatpush.msra.mxu0 %v1122
        %1140 = vmatpush.msra.mxu0 %v1121
        %1141 = vmatpush.msra.mxu0 %v1120
        %1142 = vmatpush.msra.mxu0 %v1119
        %1143 = vmatpush.msra.mxu0 %v1118
        %1144 = vmatpush.msra.mxu0 %v1117
        %1145 = vmatpush.msra.mxu0 %v1116
        %1146 = vmatpush.msra.mxu0 %v1115
        %1147 = vmatpush.msra.mxu0 %v1114
        %1148 = vmatpush.msra.mxu0 %v1113
        %1149 = vmatmul.f32.gmra.mxu0 %v1112
        %v1150 = vpop.f32.mrf.mxu0
        %v1151 = vadd.f32 %v1131, %v1150
        %1152 = vdwg.mxu0
        %vm1153 = vcmp.gt.f32.partialorder %v1151, 0.0
        %v1154 = vmul.f32 %v1151, 0.2
        %v1155 = vsel %vm1153, %v1151, %v1154
        %v1156 = vld [vmem:[#allocation18] sm:$0xff]
        %v1157 = vld [vmem:[#allocation18 + $0x8] sm:$0xff]
        %v1158 = vld [vmem:[#allocation18 + $0x10] sm:$0xff]
        %v1159 = vld [vmem:[#allocation18 + $0x18] sm:$0xff]
        %v1160 = vld [vmem:[#allocation18 + $0x20] sm:$0xff]
        %v1161 = vld [vmem:[#allocation18 + $0x28] sm:$0xff]
        %v1162 = vld [vmem:[#allocation18 + $0x30] sm:$0xff]
        %v1163 = vld [vmem:[#allocation18 + $0x38] sm:$0xff]
        %v1164 = vld [vmem:[#allocation18 + $0x40] sm:$0xff]
        %v1165 = vld [vmem:[#allocation18 + $0x48] sm:$0xff]
        %v1166 = vld [vmem:[#allocation18 + $0x50] sm:$0xff]
        %v1167 = vld [vmem:[#allocation18 + $0x58] sm:$0xff]
        %v1168 = vld [vmem:[#allocation18 + $0x60] sm:$0xff]
        %v1169 = vld [vmem:[#allocation18 + $0x68] sm:$0xff]
        %v1170 = vld [vmem:[#allocation18 + $0x70] sm:$0xff]
        %v1171 = vld [vmem:[#allocation18 + $0x78] sm:$0xff]
        %v1172 = vld [vmem:[%s15] sm:$0x1]
        %v1174 = vperm.slane %v1172, 0
        %1176 = vmatpush.msra.mxu0 %v1171
        %1177 = vmatpush.msra.mxu0 %v1170
        %1178 = vmatpush.msra.mxu0 %v1169
        %1179 = vmatpush.msra.mxu0 %v1168
        %1180 = vmatpush.msra.mxu0 %v1167
        %1181 = vmatpush.msra.mxu0 %v1166
        %1182 = vmatpush.msra.mxu0 %v1165
        %1183 = vmatpush.msra.mxu0 %v1164
        %1184 = vmatpush.msra.mxu0 %v1163
        %1185 = vmatpush.msra.mxu0 %v1162
        %1186 = vmatpush.msra.mxu0 %v1161
        %1187 = vmatpush.msra.mxu0 %v1160
        %1188 = vmatpush.msra.mxu0 %v1159
        %1189 = vmatpush.msra.mxu0 %v1158
        %1190 = vmatpush.msra.mxu0 %v1157
        %1191 = vmatpush.msra.mxu0 %v1156
        %1192 = vmatmul.f32.gmra.mxu0 %v1155
        %v1193 = vpop.f32.mrf.mxu0
        %v1194 = vadd.f32 %v1174, %v1193
        %1195 = vdwg.mxu0
        %v1196 = vadd.f32 %v1194, %v1083
        %v1197 = vld [vmem:[%s16] sm:$0xff]
        %v1198 = vld [vmem:[%s17] sm:$0x1]
        %v1200 = vperm.slane %v1198, 0
        %1202 = vmatpush.msra.mxu0 0.0
        %1203 = vmatpush.msra.mxu0 0.0
        %1204 = vmatpush.msra.mxu0 0.0
        %1205 = vmatpush.msra.mxu0 0.0
        %1206 = vmatpush.msra.mxu0 0.0
        %1207 = vmatpush.msra.mxu0 0.0
        %1208 = vmatpush.msra.mxu0 0.0
        %1209 = vmatpush.msra.mxu0 0.0
        %1210 = vmatpush.msra.mxu0 0.0
        %1211 = vmatpush.msra.mxu0 0.0
        %1212 = vmatpush.msra.mxu0 0.0
        %1213 = vmatpush.msra.mxu0 0.0
        %1214 = vmatpush.msra.mxu0 0.0
        %1215 = vmatpush.msra.mxu0 0.0
        %1216 = vmatpush.msra.mxu0 0.0
        %1217 = vmatpush.msra.mxu0 %v1197
        %1218 = vmatmul.f32.gmra.mxu0 %v974
        %v1219 = vpop.f32.mrf.mxu0
        %v1220 = vadd.f32 %v1200, %v1219
        %1221 = vdwg.mxu0
        %v1222 = vadd.f32 %v1196, %v1220
        %vm1223 = vcmp.gt.f32.partialorder %v1222, 0.0
        %v1224 = vmul.f32 %v1222, 0.2
        %v1225 = vsel %vm1223, %v1222, %v1224
        %v1226 = vld [vmem:[#allocation19] sm:$0xff]
        %v1227 = vld [vmem:[#allocation19 + $0x8] sm:$0xff]
        %v1228 = vld [vmem:[#allocation19 + $0x10] sm:$0xff]
        %v1229 = vld [vmem:[#allocation19 + $0x18] sm:$0xff]
        %v1230 = vld [vmem:[#allocation19 + $0x20] sm:$0xff]
        %v1231 = vld [vmem:[#allocation19 + $0x28] sm:$0xff]
        %v1232 = vld [vmem:[#allocation19 + $0x30] sm:$0xff]
        %v1233 = vld [vmem:[#allocation19 + $0x38] sm:$0xff]
        %v1234 = vld [vmem:[#allocation19 + $0x40] sm:$0xff]
        %v1235 = vld [vmem:[#allocation19 + $0x48] sm:$0xff]
        %v1236 = vld [vmem:[#allocation19 + $0x50] sm:$0xff]
        %v1237 = vld [vmem:[#allocation19 + $0x58] sm:$0xff]
        %v1238 = vld [vmem:[#allocation19 + $0x60] sm:$0xff]
        %v1239 = vld [vmem:[#allocation19 + $0x68] sm:$0xff]
        %v1240 = vld [vmem:[#allocation19 + $0x70] sm:$0xff]
        %v1241 = vld [vmem:[#allocation19 + $0x78] sm:$0xff]
        %v1242 = vld [vmem:[%s19] sm:$0x1]
        %v1244 = vperm.slane %v1242, 0
        %1246 = vmatpush.msra.mxu0 %v1241
        %1247 = vmatpush.msra.mxu0 %v1240
        %1248 = vmatpush.msra.mxu0 %v1239
        %1249 = vmatpush.msra.mxu0 %v1238
        %1250 = vmatpush.msra.mxu0 %v1237
        %1251 = vmatpush.msra.mxu0 %v1236
        %1252 = vmatpush.msra.mxu0 %v1235
        %1253 = vmatpush.msra.mxu0 %v1234
        %1254 = vmatpush.msra.mxu0 %v1233
        %1255 = vmatpush.msra.mxu0 %v1232
        %1256 = vmatpush.msra.mxu0 %v1231
        %1257 = vmatpush.msra.mxu0 %v1230
        %1258 = vmatpush.msra.mxu0 %v1229
        %1259 = vmatpush.msra.mxu0 %v1228
        %1260 = vmatpush.msra.mxu0 %v1227
        %1261 = vmatpush.msra.mxu0 %v1226
        %1262 = vmatmul.f32.gmra.mxu0 %v1225
        %v1263 = vpop.f32.mrf.mxu0
        %v1264 = vadd.f32 %v1244, %v1263
        %1265 = vdwg.mxu0
        %vm1266 = vcmp.gt.f32.partialorder %v1264, 0.0
        %v1267 = vmul.f32 %v1264, 0.2
        %v1268 = vsel %vm1266, %v1264, %v1267
        %v1269 = vld [vmem:[#allocation21] sm:$0xff]
        %v1270 = vld [vmem:[#allocation21 + $0x8] sm:$0xff]
        %v1271 = vld [vmem:[#allocation21 + $0x10] sm:$0xff]
        %v1272 = vld [vmem:[#allocation21 + $0x18] sm:$0xff]
        %v1273 = vld [vmem:[#allocation21 + $0x20] sm:$0xff]
        %v1274 = vld [vmem:[#allocation21 + $0x28] sm:$0xff]
        %v1275 = vld [vmem:[#allocation21 + $0x30] sm:$0xff]
        %v1276 = vld [vmem:[#allocation21 + $0x38] sm:$0xff]
        %v1277 = vld [vmem:[#allocation21 + $0x40] sm:$0xff]
        %v1278 = vld [vmem:[#allocation21 + $0x48] sm:$0xff]
        %v1279 = vld [vmem:[#allocation21 + $0x50] sm:$0xff]
        %v1280 = vld [vmem:[#allocation21 + $0x58] sm:$0xff]
        %v1281 = vld [vmem:[#allocation21 + $0x60] sm:$0xff]
        %v1282 = vld [vmem:[#allocation21 + $0x68] sm:$0xff]
        %v1283 = vld [vmem:[#allocation21 + $0x70] sm:$0xff]
        %v1284 = vld [vmem:[#allocation21 + $0x78] sm:$0xff]
        %v1285 = vld [vmem:[%s21] sm:$0x1]
        %v1287 = vperm.slane %v1285, 0
        %1289 = vmatpush.msra.mxu0 %v1284
        %1290 = vmatpush.msra.mxu0 %v1283
        %1291 = vmatpush.msra.mxu0 %v1282
        %1292 = vmatpush.msra.mxu0 %v1281
        %1293 = vmatpush.msra.mxu0 %v1280
        %1294 = vmatpush.msra.mxu0 %v1279
        %1295 = vmatpush.msra.mxu0 %v1278
        %1296 = vmatpush.msra.mxu0 %v1277
        %1297 = vmatpush.msra.mxu0 %v1276
        %1298 = vmatpush.msra.mxu0 %v1275
        %1299 = vmatpush.msra.mxu0 %v1274
        %1300 = vmatpush.msra.mxu0 %v1273
        %1301 = vmatpush.msra.mxu0 %v1272
        %1302 = vmatpush.msra.mxu0 %v1271
        %1303 = vmatpush.msra.mxu0 %v1270
        %1304 = vmatpush.msra.mxu0 %v1269
        %1305 = vmatmul.f32.gmra.mxu0 %v1268
        %v1306 = vpop.f32.mrf.mxu0
        %v1307 = vadd.f32 %v1287, %v1306
        %1308 = vdwg.mxu0
        %v1309 = vadd.f32 %v1307, %v1196
        %p1310 = scmp.eq.s32.totalorder %s45, 0
        // Predicated region
        $region161: #{_lambda_.2} parent=107 // pred_check
          %p1311 = pneg %p1310
        $region162: #{_lambda_.2} parent=107 // pred_check_branch
          %1313 = sbr.rel (%p1311) target = $region164
        $region163: #{_lambda_.2} parent=107 // pred_region
          %1314 = vst [vmem:[%s934] sm:$0xff] 0.0
        $region164: #{_lambda_.2} parent=107 // pred_fallthru
          _
        %v1315 = vld [vmem:[%s934] sm:$0xff]
        %v1316 = vadd.f32 %v1315, %v1309
        %1317 = vst [vmem:[%s934] sm:$0xff] %v1316
        %p1318 = scmp.eq.s32.totalorder %s45, 3
        // Predicated region
        $region165: #{_lambda_.2} parent=107 // pred_check
          %p1319 = pneg %p1318
        $region166: #{_lambda_.2} parent=107 // pred_check_branch
          %1321 = sbr.rel (%p1319) target = $region168
        $region167: #{_lambda_.2} parent=107 // pred_region
          %v1322 = vld [vmem:[%s934] sm:$0xff]
          %v1323 = vmul.f32 %v1322, 0.25
          %1324 = vst [vmem:[%s934] sm:$0xff] %v1323
        $region168: #{_lambda_.2} parent=107 // pred_fallthru
          _
        %p1325 = scmp.lt.s32.totalorder %s44, 1
        %s1326 = scalar_select %p1325, %s44, 1
        %s1327 = smul.addr %s1326, 8
        %s1328 = scalar_lea.vmem %s22, %s1327
        // Predicated region
        $region169: #{_lambda_.2} parent=107 // pred_check
          %p1329 = pneg %p546
        $region170: #{_lambda_.2} parent=107 // pred_check_branch
          %1331 = sbr.rel (%p1329) target = $region172
        $region171: #{_lambda_.2} parent=107 // pred_region
          _
        $region172: #{_lambda_.2} parent=107 // pred_fallthru
          _
      $region108: #{_lambda_.2} parent=5 // pred_fallthru
        _
      %p1332 = scmp.le.s32.totalorder 2, %s35
      // Predicated region
      $region173: #{_lambda_.2} parent=5 // pred_check
        %p1333 = pneg %p1332
      $region174: #{_lambda_.2} parent=5 // pred_check_branch
        %1335 = sbr.rel (%p1333) target = $region176
      $region175: #{_lambda_.2} parent=5 // pred_region
        %s1336 = ssub.s32 %s35, 2
        // Predicated region
        $region177: #{_lambda_.2} parent=175 // pred_check
          %p1337 = pneg %p552
        $region178: #{_lambda_.2} parent=175 // pred_check_branch
          %1339 = sbr.rel (%p1337) target = $region180
        $region179: #{_lambda_.2} parent=175 // pred_region
          %p1340 = scmp.lt.s32.totalorder %s46, 1
          %s1341 = scalar_select %p1340, %s46, 1
          %s1342 = smul.addr %s1341, 8
          %s1343 = scalar_lea.vmem %s22, %s1342
        $region180: #{_lambda_.2} parent=175 // pred_fallthru
          _
      $region176: #{_lambda_.2} parent=5 // pred_fallthru
        _
    $region6: #{_lambda_.2} parent=1 // loop_footer
      %s39 = sadd.s32 1, %s35
    $region7: #{_lambda_.2} parent=1 // loop_footer_branch
      %34 = sbr.rel target = $region3
    $region8: #{_lambda_.2} parent=1 // loop_exit
      _
    %1344 = vsyncpa [#allocation3], 1
    %s1345 = scalar_lea.sflag [#allocation3], 1
    %1346 = vsyncpa %s1345, 1
    %1347 = vsyncpa [#allocation5], 1
    %1348 = vsyncpa [#allocation8], 1
    %1349 = vsyncpa [#allocation11], 1
    %1350 = vsyncpa [#allocation14], 1
    %1351 = vsyncpa [#allocation17], 1
    %1352 = vsyncpa [#allocation20], 1

// kernel: _lambda_.3
$region0: #{_lambda_.3}
  #allocation0 [shape = 'u32[]', space=smem, size = 0x4, offset = 0x4, fixed_abs, tag = 'smem constant byte address 0x4 - core index']
  #allocation1 [shape = 'u32[72,128]{1,0:T(1,128)}', space=vmem, size = 0x9000, scoped, tag = 'internal scratch']
  %s0 = inlined_call_operand.vmem [shape: f32[16,128], index: 0, kind: input, shape index: {}]
  %s1 = inlined_call_operand.vmem [shape: f32[128,128], index: 1, kind: input, shape index: {}]
  %s2 = inlined_call_operand.vmem [shape: f32[1,128], index: 2, kind: input, shape index: {}]
  %s3 = inlined_call_operand.vmem [shape: f32[128,128], index: 3, kind: input, shape index: {}]
  %s4 = inlined_call_operand.vmem [shape: f32[1,128], index: 4, kind: input, shape index: {}]
  %s5 = inlined_call_operand.vmem [shape: f32[128,128], index: 5, kind: input, shape index: {}]
  %s6 = inlined_call_operand.vmem [shape: f32[1,128], index: 6, kind: input, shape index: {}]
  %s7 = inlined_call_operand.vmem [shape: f32[128,128], index: 7, kind: input, shape index: {}]
  %s8 = inlined_call_operand.vmem [shape: f32[1,128], index: 8, kind: input, shape index: {}]
  %s9 = inlined_call_operand.vmem [shape: f32[128,128], index: 9, kind: input, shape index: {}]
  %s10 = inlined_call_operand.vmem [shape: f32[1,128], index: 10, kind: input, shape index: {}]
  %s11 = inlined_call_operand.vmem [shape: f32[128,128], index: 11, kind: input, shape index: {}]
  %s12 = inlined_call_operand.vmem [shape: f32[1,128], index: 12, kind: input, shape index: {}]
  %s13 = inlined_call_operand.hbm [shape: f32[128,128], index: 13, kind: input, shape index: {}]
  %s14 = inlined_call_operand.vmem [shape: f32[1,128], index: 14, kind: input, shape index: {}]
  %s15 = inlined_call_operand.hbm [shape: f32[128,128], index: 15, kind: input, shape index: {}]
  %s16 = inlined_call_operand.vmem [shape: f32[1,128], index: 16, kind: input, shape index: {}]
  %s17 = inlined_call_operand.vmem [shape: f32[16,128], index: 17, kind: output, shape index: {}]
  %s18 = sld [smem:[#allocation0]]
  $region109: #{_lambda_.3} parent=0
    _
  %s20 = ssub.s32 1, %s18
  %s21 = scalar_select 0, %s20, %s18
  $region1: #{_lambda_.3} parent=0
    #allocation2 [shape = 'u8[65536]{0}', space=vmem, size = 0x10000, scoped, tag = 'input window, operand 13, single buffered']
    #allocation3 [shape = 's32[2]{0}', space=sflag, size = 0x8, scoped, tag = 'scoped memory for _lambda_.3']
    #allocation4 [shape = 'u8[65536]{0}', space=vmem, size = 0x10000, scoped, tag = 'input window, operand 15, single buffered']
    #allocation5 [shape = 's32[1]{0}', space=sflag, size = 0x4, scoped, tag = 'scoped memory for _lambda_.3']
    %22 = vsyncpa [#allocation3], 0
    %23 = vsyncpa [#allocation5], 0
    loop: start=0, step=1, limit=4
    $region2: #{_lambda_.3} parent=1 // loop_pre_header
      _
    $region3: #{_lambda_.3} parent=1 // loop_header
      %s25 = sphi 0, %s29
      %p26 = scmp.ge.s32.totalorder %s25, 4
      %s35 = sphi 0, %s37
      %s38 = sphi 0, %s35
      %s39 = sphi 0, %s38
      %s55 = sphi 0, %s39
      %s59 = sphi 0, %s59
      %s61 = sphi 0, %s59
      %s62 = sphi 0, %s61
      %s76 = sphi 0, %s62
      %s80 = sphi 0, %s80
      %s82 = sphi 0, %s80
      %s83 = sphi 0, %s82
      %s97 = sphi 0, %s83
      %s101 = sphi 0, %s101
      %s103 = sphi 0, %s101
      %s104 = sphi 0, %s103
      %s118 = sphi 0, %s104
      %s122 = sphi 0, %s122
      %s124 = sphi 0, %s122
      %s125 = sphi 0, %s124
      %s139 = sphi 0, %s125
      %s143 = sphi 0, %s143
      %s145 = sphi 0, %s143
      %s146 = sphi 0, %s145
      %s160 = sphi 0, %s146
      %s164 = sphi 0, %s164
      %s166 = sphi 0, %s164
      %s167 = sphi 0, %s166
      %s181 = sphi 0, %s167
      %s185 = sphi 0, %s185
      %s187 = sphi 0, %s185
      %s188 = sphi 0, %s187
      %s202 = sphi 0, %s188
      %s206 = sphi 0, %s206
      %s208 = sphi 0, %s206
      %s209 = sphi 0, %s208
      %s223 = sphi 0, %s209
      %s227 = sphi 0, %s227
      %s229 = sphi 0, %s227
      %s230 = sphi 0, %s229
      %s244 = sphi 0, %s230
      %s248 = sphi 0, %s248
      %s250 = sphi 0, %s248
      %s251 = sphi 0, %s250
      %s265 = sphi 0, %s251
      %s269 = sphi 0, %s269
      %s271 = sphi 0, %s269
      %s272 = sphi 0, %s271
      %s286 = sphi 0, %s272
      %s290 = sphi 0, %s290
      %s292 = sphi 0, %s290
      %s293 = sphi 0, %s292
      %s307 = sphi 0, %s293
      %s311 = sphi 0, %s311
      %s313 = sphi 0, %s311
      %s314 = sphi 0, %s313
      %s328 = sphi 0, %s314
      %s332 = sphi 0, %s332
      %s334 = sphi 0, %s332
      %s335 = sphi 0, %s334
      %s349 = sphi 0, %s335
      %s353 = sphi 0, %s353
      %s355 = sphi 0, %s353
      %s356 = sphi 0, %s355
      %s370 = sphi 0, %s356
      %s374 = sphi 0, %s374
      %s376 = sphi 0, %s374
      %s377 = sphi 0, %s376
      %s391 = sphi 0, %s377
      %s397 = sphi 0, %s399
      %s400 = sphi 0, %s397
      %s401 = sphi 0, %s400
      %s417 = sphi 0, %s401
    $region4: #{_lambda_.3} parent=1 // loop_header_branch
      %28 = sbr.rel (%p26) target = $region8
    $region5: #{_lambda_.3} parent=1 // loop_body
      %s30 = ssub.s32 %s25, 1
      %s31 = ssub.s32 %s25, 2
      %s32 = sadd.s32 %s25, 1
      %s33 = ssub.s32 %s25, %s32
      %p34 = scmp.eq.s32.totalorder %s33, 0
      %s36 = sadd.s32 %s35, 1
      %s37 = scalar_select %p34, %s35, %s36
      %p40 = pneg %p34
      %p41 = scmp.eq.s32.totalorder %s25, 1
      %p42 = por %p40, %p41
      %p43 = scmp.ne.s32.totalorder %s35, %s38
      %p44 = scmp.eq.s32.totalorder %s25, 0
      %p45 = por %p43, %p44
      %p46 = scmp.ne.s32.totalorder %s35, %s38
      %p47 = scmp.eq.s32.totalorder %s30, 1
      %p48 = por %p46, %p47
      %p49 = scmp.ne.s32.totalorder %s38, %s39
      %p50 = scmp.eq.s32.totalorder %s30, 0
      %p51 = por %p49, %p50
      %p52 = scmp.ne.s32.totalorder %s38, %s39
      %p53 = scmp.eq.s32.totalorder %s31, 1
      %p54 = por %p52, %p53
      %p56 = scmp.ne.s32.totalorder %s39, %s55
      %p57 = scmp.eq.s32.totalorder %s31, 0
      %p58 = por %p56, %p57
      %s60 = sadd.s32 %s59, 1
      %p63 = scmp.eq.s32.totalorder %s25, 1
      %p64 = scmp.ne.s32.totalorder %s59, %s61
      %p65 = scmp.eq.s32.totalorder %s25, 0
      %p66 = por %p64, %p65
      %p67 = scmp.ne.s32.totalorder %s59, %s61
      %p68 = scmp.eq.s32.totalorder %s30, 1
      %p69 = por %p67, %p68
      %p70 = scmp.ne.s32.totalorder %s61, %s62
      %p71 = scmp.eq.s32.totalorder %s30, 0
      %p72 = por %p70, %p71
      %p73 = scmp.ne.s32.totalorder %s61, %s62
      %p74 = scmp.eq.s32.totalorder %s31, 1
      %p75 = por %p73, %p74
      %p77 = scmp.ne.s32.totalorder %s62, %s76
      %p78 = scmp.eq.s32.totalorder %s31, 0
      %p79 = por %p77, %p78
      %s81 = sadd.s32 %s80, 1
      %p84 = scmp.eq.s32.totalorder %s25, 1
      %p85 = scmp.ne.s32.totalorder %s80, %s82
      %p86 = scmp.eq.s32.totalorder %s25, 0
      %p87 = por %p85, %p86
      %p88 = scmp.ne.s32.totalorder %s80, %s82
      %p89 = scmp.eq.s32.totalorder %s30, 1
      %p90 = por %p88, %p89
      %p91 = scmp.ne.s32.totalorder %s82, %s83
      %p92 = scmp.eq.s32.totalorder %s30, 0
      %p93 = por %p91, %p92
      %p94 = scmp.ne.s32.totalorder %s82, %s83
      %p95 = scmp.eq.s32.totalorder %s31, 1
      %p96 = por %p94, %p95
      %p98 = scmp.ne.s32.totalorder %s83, %s97
      %p99 = scmp.eq.s32.totalorder %s31, 0
      %p100 = por %p98, %p99
      %s102 = sadd.s32 %s101, 1
      %p105 = scmp.eq.s32.totalorder %s25, 1
      %p106 = scmp.ne.s32.totalorder %s101, %s103
      %p107 = scmp.eq.s32.totalorder %s25, 0
      %p108 = por %p106, %p107
      %p109 = scmp.ne.s32.totalorder %s101, %s103
      %p110 = scmp.eq.s32.totalorder %s30, 1
      %p111 = por %p109, %p110
      %p112 = scmp.ne.s32.totalorder %s103, %s104
      %p113 = scmp.eq.s32.totalorder %s30, 0
      %p114 = por %p112, %p113
      %p115 = scmp.ne.s32.totalorder %s103, %s104
      %p116 = scmp.eq.s32.totalorder %s31, 1
      %p117 = por %p115, %p116
      %p119 = scmp.ne.s32.totalorder %s104, %s118
      %p120 = scmp.eq.s32.totalorder %s31, 0
      %p121 = por %p119, %p120
      %s123 = sadd.s32 %s122, 1
      %p126 = scmp.eq.s32.totalorder %s25, 1
      %p127 = scmp.ne.s32.totalorder %s122, %s124
      %p128 = scmp.eq.s32.totalorder %s25, 0
      %p129 = por %p127, %p128
      %p130 = scmp.ne.s32.totalorder %s122, %s124
      %p131 = scmp.eq.s32.totalorder %s30, 1
      %p132 = por %p130, %p131
      %p133 = scmp.ne.s32.totalorder %s124, %s125
      %p134 = scmp.eq.s32.totalorder %s30, 0
      %p135 = por %p133, %p134
      %p136 = scmp.ne.s32.totalorder %s124, %s125
      %p137 = scmp.eq.s32.totalorder %s31, 1
      %p138 = por %p136, %p137
      %p140 = scmp.ne.s32.totalorder %s125, %s139
      %p141 = scmp.eq.s32.totalorder %s31, 0
      %p142 = por %p140, %p141
      %s144 = sadd.s32 %s143, 1
      %p147 = scmp.eq.s32.totalorder %s25, 1
      %p148 = scmp.ne.s32.totalorder %s143, %s145
      %p149 = scmp.eq.s32.totalorder %s25, 0
      %p150 = por %p148, %p149
      %p151 = scmp.ne.s32.totalorder %s143, %s145
      %p152 = scmp.eq.s32.totalorder %s30, 1
      %p153 = por %p151, %p152
      %p154 = scmp.ne.s32.totalorder %s145, %s146
      %p155 = scmp.eq.s32.totalorder %s30, 0
      %p156 = por %p154, %p155
      %p157 = scmp.ne.s32.totalorder %s145, %s146
      %p158 = scmp.eq.s32.totalorder %s31, 1
      %p159 = por %p157, %p158
      %p161 = scmp.ne.s32.totalorder %s146, %s160
      %p162 = scmp.eq.s32.totalorder %s31, 0
      %p163 = por %p161, %p162
      %s165 = sadd.s32 %s164, 1
      %p168 = scmp.eq.s32.totalorder %s25, 1
      %p169 = scmp.ne.s32.totalorder %s164, %s166
      %p170 = scmp.eq.s32.totalorder %s25, 0
      %p171 = por %p169, %p170
      %p172 = scmp.ne.s32.totalorder %s164, %s166
      %p173 = scmp.eq.s32.totalorder %s30, 1
      %p174 = por %p172, %p173
      %p175 = scmp.ne.s32.totalorder %s166, %s167
      %p176 = scmp.eq.s32.totalorder %s30, 0
      %p177 = por %p175, %p176
      %p178 = scmp.ne.s32.totalorder %s166, %s167
      %p179 = scmp.eq.s32.totalorder %s31, 1
      %p180 = por %p178, %p179
      %p182 = scmp.ne.s32.totalorder %s167, %s181
      %p183 = scmp.eq.s32.totalorder %s31, 0
      %p184 = por %p182, %p183
      %s186 = sadd.s32 %s185, 1
      %p189 = scmp.eq.s32.totalorder %s25, 1
      %p190 = scmp.ne.s32.totalorder %s185, %s187
      %p191 = scmp.eq.s32.totalorder %s25, 0
      %p192 = por %p190, %p191
      %p193 = scmp.ne.s32.totalorder %s185, %s187
      %p194 = scmp.eq.s32.totalorder %s30, 1
      %p195 = por %p193, %p194
      %p196 = scmp.ne.s32.totalorder %s187, %s188
      %p197 = scmp.eq.s32.totalorder %s30, 0
      %p198 = por %p196, %p197
      %p199 = scmp.ne.s32.totalorder %s187, %s188
      %p200 = scmp.eq.s32.totalorder %s31, 1
      %p201 = por %p199, %p200
      %p203 = scmp.ne.s32.totalorder %s188, %s202
      %p204 = scmp.eq.s32.totalorder %s31, 0
      %p205 = por %p203, %p204
      %s207 = sadd.s32 %s206, 1
      %p210 = scmp.eq.s32.totalorder %s25, 1
      %p211 = scmp.ne.s32.totalorder %s206, %s208
      %p212 = scmp.eq.s32.totalorder %s25, 0
      %p213 = por %p211, %p212
      %p214 = scmp.ne.s32.totalorder %s206, %s208
      %p215 = scmp.eq.s32.totalorder %s30, 1
      %p216 = por %p214, %p215
      %p217 = scmp.ne.s32.totalorder %s208, %s209
      %p218 = scmp.eq.s32.totalorder %s30, 0
      %p219 = por %p217, %p218
      %p220 = scmp.ne.s32.totalorder %s208, %s209
      %p221 = scmp.eq.s32.totalorder %s31, 1
      %p222 = por %p220, %p221
      %p224 = scmp.ne.s32.totalorder %s209, %s223
      %p225 = scmp.eq.s32.totalorder %s31, 0
      %p226 = por %p224, %p225
      %s228 = sadd.s32 %s227, 1
      %p231 = scmp.eq.s32.totalorder %s25, 1
      %p232 = scmp.ne.s32.totalorder %s227, %s229
      %p233 = scmp.eq.s32.totalorder %s25, 0
      %p234 = por %p232, %p233
      %p235 = scmp.ne.s32.totalorder %s227, %s229
      %p236 = scmp.eq.s32.totalorder %s30, 1
      %p237 = por %p235, %p236
      %p238 = scmp.ne.s32.totalorder %s229, %s230
      %p239 = scmp.eq.s32.totalorder %s30, 0
      %p240 = por %p238, %p239
      %p241 = scmp.ne.s32.totalorder %s229, %s230
      %p242 = scmp.eq.s32.totalorder %s31, 1
      %p243 = por %p241, %p242
      %p245 = scmp.ne.s32.totalorder %s230, %s244
      %p246 = scmp.eq.s32.totalorder %s31, 0
      %p247 = por %p245, %p246
      %s249 = sadd.s32 %s248, 1
      %p252 = scmp.eq.s32.totalorder %s25, 1
      %p253 = scmp.ne.s32.totalorder %s248, %s250
      %p254 = scmp.eq.s32.totalorder %s25, 0
      %p255 = por %p253, %p254
      %p256 = scmp.ne.s32.totalorder %s248, %s250
      %p257 = scmp.eq.s32.totalorder %s30, 1
      %p258 = por %p256, %p257
      %p259 = scmp.ne.s32.totalorder %s250, %s251
      %p260 = scmp.eq.s32.totalorder %s30, 0
      %p261 = por %p259, %p260
      %p262 = scmp.ne.s32.totalorder %s250, %s251
      %p263 = scmp.eq.s32.totalorder %s31, 1
      %p264 = por %p262, %p263
      %p266 = scmp.ne.s32.totalorder %s251, %s265
      %p267 = scmp.eq.s32.totalorder %s31, 0
      %p268 = por %p266, %p267
      %s270 = sadd.s32 %s269, 1
      %p273 = scmp.eq.s32.totalorder %s25, 1
      %p274 = scmp.ne.s32.totalorder %s269, %s271
      %p275 = scmp.eq.s32.totalorder %s25, 0
      %p276 = por %p274, %p275
      %p277 = scmp.ne.s32.totalorder %s269, %s271
      %p278 = scmp.eq.s32.totalorder %s30, 1
      %p279 = por %p277, %p278
      %p280 = scmp.ne.s32.totalorder %s271, %s272
      %p281 = scmp.eq.s32.totalorder %s30, 0
      %p282 = por %p280, %p281
      %p283 = scmp.ne.s32.totalorder %s271, %s272
      %p284 = scmp.eq.s32.totalorder %s31, 1
      %p285 = por %p283, %p284
      %p287 = scmp.ne.s32.totalorder %s272, %s286
      %p288 = scmp.eq.s32.totalorder %s31, 0
      %p289 = por %p287, %p288
      %s291 = sadd.s32 %s290, 1
      %p294 = scmp.eq.s32.totalorder %s25, 1
      %p295 = scmp.ne.s32.totalorder %s290, %s292
      %p296 = scmp.eq.s32.totalorder %s25, 0
      %p297 = por %p295, %p296
      %p298 = scmp.ne.s32.totalorder %s290, %s292
      %p299 = scmp.eq.s32.totalorder %s30, 1
      %p300 = por %p298, %p299
      %p301 = scmp.ne.s32.totalorder %s292, %s293
      %p302 = scmp.eq.s32.totalorder %s30, 0
      %p303 = por %p301, %p302
      %p304 = scmp.ne.s32.totalorder %s292, %s293
      %p305 = scmp.eq.s32.totalorder %s31, 1
      %p306 = por %p304, %p305
      %p308 = scmp.ne.s32.totalorder %s293, %s307
      %p309 = scmp.eq.s32.totalorder %s31, 0
      %p310 = por %p308, %p309
      %s312 = sadd.s32 %s311, 1
      %p315 = scmp.eq.s32.totalorder %s25, 1
      %p316 = scmp.ne.s32.totalorder %s311, %s313
      %p317 = scmp.eq.s32.totalorder %s25, 0
      %p318 = por %p316, %p317
      %p319 = scmp.ne.s32.totalorder %s311, %s313
      %p320 = scmp.eq.s32.totalorder %s30, 1
      %p321 = por %p319, %p320
      %p322 = scmp.ne.s32.totalorder %s313, %s314
      %p323 = scmp.eq.s32.totalorder %s30, 0
      %p324 = por %p322, %p323
      %p325 = scmp.ne.s32.totalorder %s313, %s314
      %p326 = scmp.eq.s32.totalorder %s31, 1
      %p327 = por %p325, %p326
      %p329 = scmp.ne.s32.totalorder %s314, %s328
      %p330 = scmp.eq.s32.totalorder %s31, 0
      %p331 = por %p329, %p330
      %s333 = sadd.s32 %s332, 1
      %p336 = scmp.eq.s32.totalorder %s25, 1
      %p337 = scmp.ne.s32.totalorder %s332, %s334
      %p338 = scmp.eq.s32.totalorder %s25, 0
      %p339 = por %p337, %p338
      %p340 = scmp.ne.s32.totalorder %s332, %s334
      %p341 = scmp.eq.s32.totalorder %s30, 1
      %p342 = por %p340, %p341
      %p343 = scmp.ne.s32.totalorder %s334, %s335
      %p344 = scmp.eq.s32.totalorder %s30, 0
      %p345 = por %p343, %p344
      %p346 = scmp.ne.s32.totalorder %s334, %s335
      %p347 = scmp.eq.s32.totalorder %s31, 1
      %p348 = por %p346, %p347
      %p350 = scmp.ne.s32.totalorder %s335, %s349
      %p351 = scmp.eq.s32.totalorder %s31, 0
      %p352 = por %p350, %p351
      %s354 = sadd.s32 %s353, 1
      %p357 = scmp.eq.s32.totalorder %s25, 1
      %p358 = scmp.ne.s32.totalorder %s353, %s355
      %p359 = scmp.eq.s32.totalorder %s25, 0
      %p360 = por %p358, %p359
      %p361 = scmp.ne.s32.totalorder %s353, %s355
      %p362 = scmp.eq.s32.totalorder %s30, 1
      %p363 = por %p361, %p362
      %p364 = scmp.ne.s32.totalorder %s355, %s356
      %p365 = scmp.eq.s32.totalorder %s30, 0
      %p366 = por %p364, %p365
      %p367 = scmp.ne.s32.totalorder %s355, %s356
      %p368 = scmp.eq.s32.totalorder %s31, 1
      %p369 = por %p367, %p368
      %p371 = scmp.ne.s32.totalorder %s356, %s370
      %p372 = scmp.eq.s32.totalorder %s31, 0
      %p373 = por %p371, %p372
      %s375 = sadd.s32 %s374, 1
      %p378 = scmp.eq.s32.totalorder %s25, 1
      %p379 = scmp.ne.s32.totalorder %s374, %s376
      %p380 = scmp.eq.s32.totalorder %s25, 0
      %p381 = por %p379, %p380
      %p382 = scmp.ne.s32.totalorder %s374, %s376
      %p383 = scmp.eq.s32.totalorder %s30, 1
      %p384 = por %p382, %p383
      %p385 = scmp.ne.s32.totalorder %s376, %s377
      %p386 = scmp.eq.s32.totalorder %s30, 0
      %p387 = por %p385, %p386
      %p388 = scmp.ne.s32.totalorder %s376, %s377
      %p389 = scmp.eq.s32.totalorder %s31, 1
      %p390 = por %p388, %p389
      %p392 = scmp.ne.s32.totalorder %s377, %s391
      %p393 = scmp.eq.s32.totalorder %s31, 0
      %p394 = por %p392, %p393
      %s395 = ssub.s32 %s25, %s32
      %p396 = scmp.eq.s32.totalorder %s395, 0
      %s398 = sadd.s32 %s397, 1
      %s399 = scalar_select %p396, %s397, %s398
      %p402 = pneg %p396
      %p403 = scmp.eq.s32.totalorder %s25, 1
      %p404 = por %p402, %p403
      %p405 = scmp.ne.s32.totalorder %s397, %s400
      %p406 = scmp.eq.s32.totalorder %s25, 0
      %p407 = por %p405, %p406
      %p408 = scmp.ne.s32.totalorder %s397, %s400
      %p409 = scmp.eq.s32.totalorder %s30, 1
      %p410 = por %p408, %p409
      %p411 = scmp.ne.s32.totalorder %s400, %s401
      %p412 = scmp.eq.s32.totalorder %s30, 0
      %p413 = por %p411, %p412
      %p414 = scmp.ne.s32.totalorder %s400, %s401
      %p415 = scmp.eq.s32.totalorder %s31, 1
      %p416 = por %p414, %p415
      %p418 = scmp.ne.s32.totalorder %s401, %s417
      %p419 = scmp.eq.s32.totalorder %s31, 0
      %p420 = por %p418, %p419
      %p421 = scmp.le.s32.totalorder 1, %s25
      %p422 = scmp.lt.s32.totalorder %s25, 3
      %p423 = pnand %p421, %p422
      %p424 = pneg %p423
      // Predicated region
      $region9: #{_lambda_.3} parent=5 // pred_check
        _
      $region10: #{_lambda_.3} parent=5 // pred_check_branch
        %426 = sbr.rel (%p423) target = $region12
      $region11: #{_lambda_.3} parent=5 // pred_region
        %s427 = ssub.s32 %s25, 1
        // Predicated region
        $region13: #{_lambda_.3} parent=11 // pred_check
          %p428 = pneg %p72
        $region14: #{_lambda_.3} parent=11 // pred_check_branch
          %430 = sbr.rel (%p428) target = $region16
        $region15: #{_lambda_.3} parent=11 // pred_region
          _
        $region16: #{_lambda_.3} parent=11 // pred_fallthru
          _
        // Predicated region
        $region17: #{_lambda_.3} parent=11 // pred_check
          %p431 = pneg %p93
        $region18: #{_lambda_.3} parent=11 // pred_check_branch
          %433 = sbr.rel (%p431) target = $region20
        $region19: #{_lambda_.3} parent=11 // pred_region
          _
        $region20: #{_lambda_.3} parent=11 // pred_fallthru
          _
        // Predicated region
        $region21: #{_lambda_.3} parent=11 // pred_check
          %p434 = pneg %p114
        $region22: #{_lambda_.3} parent=11 // pred_check_branch
          %436 = sbr.rel (%p434) target = $region24
        $region23: #{_lambda_.3} parent=11 // pred_region
          _
        $region24: #{_lambda_.3} parent=11 // pred_fallthru
          _
        // Predicated region
        $region25: #{_lambda_.3} parent=11 // pred_check
          %p437 = pneg %p135
        $region26: #{_lambda_.3} parent=11 // pred_check_branch
          %439 = sbr.rel (%p437) target = $region28
        $region27: #{_lambda_.3} parent=11 // pred_region
          _
        $region28: #{_lambda_.3} parent=11 // pred_fallthru
          _
        // Predicated region
        $region29: #{_lambda_.3} parent=11 // pred_check
          %p440 = pneg %p156
        $region30: #{_lambda_.3} parent=11 // pred_check_branch
          %442 = sbr.rel (%p440) target = $region32
        $region31: #{_lambda_.3} parent=11 // pred_region
          _
        $region32: #{_lambda_.3} parent=11 // pred_fallthru
          _
        // Predicated region
        $region33: #{_lambda_.3} parent=11 // pred_check
          %p443 = pneg %p177
        $region34: #{_lambda_.3} parent=11 // pred_check_branch
          %445 = sbr.rel (%p443) target = $region36
        $region35: #{_lambda_.3} parent=11 // pred_region
          _
        $region36: #{_lambda_.3} parent=11 // pred_fallthru
          _
        // Predicated region
        $region37: #{_lambda_.3} parent=11 // pred_check
          %p446 = pneg %p198
        $region38: #{_lambda_.3} parent=11 // pred_check_branch
          %448 = sbr.rel (%p446) target = $region40
        $region39: #{_lambda_.3} parent=11 // pred_region
          _
        $region40: #{_lambda_.3} parent=11 // pred_fallthru
          _
        // Predicated region
        $region41: #{_lambda_.3} parent=11 // pred_check
          %p449 = pneg %p219
        $region42: #{_lambda_.3} parent=11 // pred_check_branch
          %451 = sbr.rel (%p449) target = $region44
        $region43: #{_lambda_.3} parent=11 // pred_region
          _
        $region44: #{_lambda_.3} parent=11 // pred_fallthru
          _
        // Predicated region
        $region45: #{_lambda_.3} parent=11 // pred_check
          %p452 = pneg %p240
        $region46: #{_lambda_.3} parent=11 // pred_check_branch
          %454 = sbr.rel (%p452) target = $region48
        $region47: #{_lambda_.3} parent=11 // pred_region
          _
        $region48: #{_lambda_.3} parent=11 // pred_fallthru
          _
        // Predicated region
        $region49: #{_lambda_.3} parent=11 // pred_check
          %p455 = pneg %p261
        $region50: #{_lambda_.3} parent=11 // pred_check_branch
          %457 = sbr.rel (%p455) target = $region52
        $region51: #{_lambda_.3} parent=11 // pred_region
          _
        $region52: #{_lambda_.3} parent=11 // pred_fallthru
          _
        // Predicated region
        $region53: #{_lambda_.3} parent=11 // pred_check
          %p458 = pneg %p282
        $region54: #{_lambda_.3} parent=11 // pred_check_branch
          %460 = sbr.rel (%p458) target = $region56
        $region55: #{_lambda_.3} parent=11 // pred_region
          _
        $region56: #{_lambda_.3} parent=11 // pred_fallthru
          _
        // Predicated region
        $region57: #{_lambda_.3} parent=11 // pred_check
          %p461 = pneg %p303
        $region58: #{_lambda_.3} parent=11 // pred_check_branch
          %463 = sbr.rel (%p461) target = $region60
        $region59: #{_lambda_.3} parent=11 // pred_region
          _
        $region60: #{_lambda_.3} parent=11 // pred_fallthru
          _
        // Predicated region
        $region61: #{_lambda_.3} parent=11 // pred_check
          %p464 = pneg %p324
        $region62: #{_lambda_.3} parent=11 // pred_check_branch
          %466 = sbr.rel (%p464) target = $region64
        $region63: #{_lambda_.3} parent=11 // pred_region
          %468 = vsyncadd [#allocation3], 0
          %s469 = sshll.u32 %s13, 4
          %s470 = int_to_ptr.hbm [resolvable:$true] %s469
          %s471 = sshll.u32 [#allocation2], 4
          %s472 = int_to_ptr.vmem [resolvable:$true] %s471
          %477 = dma.hbm_to_vmem [thread:$0]  %s470, 2048, %s472, [#allocation3], 128, 128, 8
        $region64: #{_lambda_.3} parent=11 // pred_fallthru
          _
        // Predicated region
        $region65: #{_lambda_.3} parent=11 // pred_check
          %p478 = pneg %p345
        $region66: #{_lambda_.3} parent=11 // pred_check_branch
          %480 = sbr.rel (%p478) target = $region68
        $region67: #{_lambda_.3} parent=11 // pred_region
          _
        $region68: #{_lambda_.3} parent=11 // pred_fallthru
          _
        // Predicated region
        $region69: #{_lambda_.3} parent=11 // pred_check
          %p481 = pneg %p366
        $region70: #{_lambda_.3} parent=11 // pred_check_branch
          %483 = sbr.rel (%p481) target = $region72
        $region71: #{_lambda_.3} parent=11 // pred_region
          %485 = vsyncadd [#allocation5], 0
          %s486 = sshll.u32 %s15, 4
          %s487 = int_to_ptr.hbm [resolvable:$true] %s486
          %s488 = sshll.u32 [#allocation4], 4
          %s489 = int_to_ptr.vmem [resolvable:$true] %s488
          %494 = dma.hbm_to_vmem [thread:$0]  %s487, 2048, %s489, [#allocation5], 128, 128, 8
        $region72: #{_lambda_.3} parent=11 // pred_fallthru
          _
        // Predicated region
        $region73: #{_lambda_.3} parent=11 // pred_check
          %p495 = pneg %p387
        $region74: #{_lambda_.3} parent=11 // pred_check_branch
          %497 = sbr.rel (%p495) target = $region76
        $region75: #{_lambda_.3} parent=11 // pred_region
          _
        $region76: #{_lambda_.3} parent=11 // pred_fallthru
          _
      $region12: #{_lambda_.3} parent=5 // pred_fallthru
        _
      %p498 = scmp.lt.s32.totalorder %s25, 2
      // Predicated region
      $region77: #{_lambda_.3} parent=5 // pred_check
        %p499 = pneg %p498
      $region78: #{_lambda_.3} parent=5 // pred_check_branch
        %501 = sbr.rel (%p499) target = $region80
      $region79: #{_lambda_.3} parent=5 // pred_region
        // Predicated region
        $region81: #{_lambda_.3} parent=79 // pred_check
          %p502 = pneg %p45
        $region82: #{_lambda_.3} parent=79 // pred_check_branch
          %504 = sbr.rel (%p502) target = $region84
        $region83: #{_lambda_.3} parent=79 // pred_region
          %p505 = scmp.lt.s32.totalorder %s25, 1
          %s506 = scalar_select %p505, %s25, 1
          %s507 = smul.addr %s506, 8
          %s508 = scalar_lea.vmem %s0, %s507
        $region84: #{_lambda_.3} parent=79 // pred_fallthru
          _
      $region80: #{_lambda_.3} parent=5 // pred_fallthru
        _
      %p509 = scmp.le.s32.totalorder 1, %s25
      %p510 = scmp.lt.s32.totalorder %s25, 3
      %p511 = pnand %p509, %p510
      %p512 = pneg %p511
      // Predicated region
      $region85: #{_lambda_.3} parent=5 // pred_check
        _
      $region86: #{_lambda_.3} parent=5 // pred_check_branch
        %514 = sbr.rel (%p511) target = $region88
      $region87: #{_lambda_.3} parent=5 // pred_region
        %s515 = ssub.s32 %s25, 1
        // Predicated region
        $region89: #{_lambda_.3} parent=87 // pred_check
          %p516 = pneg %p324
        $region90: #{_lambda_.3} parent=87 // pred_check_branch
          %518 = sbr.rel (%p516) target = $region92
        $region91: #{_lambda_.3} parent=87 // pred_region
          %520 = dma.done [#allocation3], 2048
        $region92: #{_lambda_.3} parent=87 // pred_fallthru
          _
        // Predicated region
        $region93: #{_lambda_.3} parent=87 // pred_check
          %p521 = pneg %p366
        $region94: #{_lambda_.3} parent=87 // pred_check_branch
          %523 = sbr.rel (%p521) target = $region96
        $region95: #{_lambda_.3} parent=87 // pred_region
          %525 = dma.done [#allocation5], 2048
        $region96: #{_lambda_.3} parent=87 // pred_fallthru
          _
        %p526 = scmp.lt.s32.totalorder %s30, 1
        %s527 = scalar_select %p526, %s30, 1
        %s528 = smul.addr %s527, 8
        %s529 = scalar_lea.vmem %s0, %s528
        %p530 = pneg %p51
        %p531 = pneg %p48
        %p532 = pneg %p72
        %p533 = pneg %p69
        %p534 = pneg %p93
        %p535 = pneg %p90
        %p536 = pneg %p114
        %p537 = pneg %p111
        %p538 = pneg %p135
        %p539 = pneg %p132
        %p540 = pneg %p156
        %p541 = pneg %p153
        %p542 = pneg %p177
        %p543 = pneg %p174
        %p544 = pneg %p198
        %p545 = pneg %p195
        %p546 = pneg %p219
        %p547 = pneg %p216
        %p548 = pneg %p240
        %p549 = pneg %p237
        %p550 = pneg %p261
        %p551 = pneg %p258
        %p552 = pneg %p282
        %p553 = pneg %p279
        %p554 = pneg %p303
        %p555 = pneg %p300
        %p556 = pneg %p324
        %p557 = pneg %p321
        %p558 = pneg %p345
        %p559 = pneg %p342
        %p560 = pneg %p366
        %p561 = pneg %p363
        %p562 = pneg %p387
        %p563 = pneg %p384
        %p564 = pneg %p413
        %p565 = pneg %p410
        %p566 = scmp.lt.s32.totalorder %s30, 1
        %s567 = scalar_select %p566, %s30, 1
        %s568 = smul.addr %s567, 8
        %s569 = scalar_lea.vmem %s17, %s568
        %p570 = scmp.lt.s32.totalorder %s30, 1
        %s571 = scalar_select %p570, %s30, 1
        %s572 = smul.addr %s571, 8
        %s573 = scalar_lea.vmem %s0, %s572
        %p574 = scmp.lt.s32.totalorder %s30, 1
        %s575 = scalar_select %p574, %s30, 1
        %s576 = smul.addr %s575, 8
        %s577 = scalar_lea.vmem %s17, %s576
        %v578 = vld [vmem:[%s573] sm:$0xff]
        %v579 = vld [vmem:[%s5] sm:$0xff]
        %v580 = vld [vmem:[%s5 + $0x8] sm:$0xff]
        %v581 = vld [vmem:[%s5 + $0x10] sm:$0xff]
        %v582 = vld [vmem:[%s5 + $0x18] sm:$0xff]
        %v583 = vld [vmem:[%s5 + $0x20] sm:$0xff]
        %v584 = vld [vmem:[%s5 + $0x28] sm:$0xff]
        %v585 = vld [vmem:[%s5 + $0x30] sm:$0xff]
        %v586 = vld [vmem:[%s5 + $0x38] sm:$0xff]
        %v587 = vld [vmem:[%s5 + $0x40] sm:$0xff]
        %v588 = vld [vmem:[%s5 + $0x48] sm:$0xff]
        %v589 = vld [vmem:[%s5 + $0x50] sm:$0xff]
        %v590 = vld [vmem:[%s5 + $0x58] sm:$0xff]
        %v591 = vld [vmem:[%s5 + $0x60] sm:$0xff]
        %v592 = vld [vmem:[%s5 + $0x68] sm:$0xff]
        %v593 = vld [vmem:[%s5 + $0x70] sm:$0xff]
        %v594 = vld [vmem:[%s5 + $0x78] sm:$0xff]
        %v595 = vld [vmem:[%s6] sm:$0x1]
        %v597 = vperm.slane %v595, 0
        %599 = vmatpush.msra.mxu0 %v594
        %600 = vmatpush.msra.mxu0 %v593
        %601 = vmatpush.msra.mxu0 %v592
        %602 = vmatpush.msra.mxu0 %v591
        %603 = vmatpush.msra.mxu0 %v590
        %604 = vmatpush.msra.mxu0 %v589
        %605 = vmatpush.msra.mxu0 %v588
        %606 = vmatpush.msra.mxu0 %v587
        %607 = vmatpush.msra.mxu0 %v586
        %608 = vmatpush.msra.mxu0 %v585
        %609 = vmatpush.msra.mxu0 %v584
        %610 = vmatpush.msra.mxu0 %v583
        %611 = vmatpush.msra.mxu0 %v582
        %612 = vmatpush.msra.mxu0 %v581
        %613 = vmatpush.msra.mxu0 %v580
        %614 = vmatpush.msra.mxu0 %v579
        %615 = vmatmul.f32.gmra.mxu0 %v578
        %v616 = vpop.f32.mrf.mxu0
        %v617 = vadd.f32 %v597, %v616
        %618 = vdwg.mxu0
        %vm619 = vcmp.gt.f32.partialorder %v578, 0.0
        %v620 = vmul.f32 %v578, 0.2
        %v621 = vsel %vm619, %v578, %v620
        %v622 = vld [vmem:[%s1] sm:$0xff]
        %v623 = vld [vmem:[%s1 + $0x8] sm:$0xff]
        %v624 = vld [vmem:[%s1 + $0x10] sm:$0xff]
        %v625 = vld [vmem:[%s1 + $0x18] sm:$0xff]
        %v626 = vld [vmem:[%s1 + $0x20] sm:$0xff]
        %v627 = vld [vmem:[%s1 + $0x28] sm:$0xff]
        %v628 = vld [vmem:[%s1 + $0x30] sm:$0xff]
        %v629 = vld [vmem:[%s1 + $0x38] sm:$0xff]
        %v630 = vld [vmem:[%s1 + $0x40] sm:$0xff]
        %v631 = vld [vmem:[%s1 + $0x48] sm:$0xff]
        %v632 = vld [vmem:[%s1 + $0x50] sm:$0xff]
        %v633 = vld [vmem:[%s1 + $0x58] sm:$0xff]
        %v634 = vld [vmem:[%s1 + $0x60] sm:$0xff]
        %v635 = vld [vmem:[%s1 + $0x68] sm:$0xff]
        %v636 = vld [vmem:[%s1 + $0x70] sm:$0xff]
        %v637 = vld [vmem:[%s1 + $0x78] sm:$0xff]
        %v638 = vld [vmem:[%s2] sm:$0x1]
        %v640 = vperm.slane %v638, 0
        %642 = vmatpush.msra.mxu0 %v637
        %643 = vmatpush.msra.mxu0 %v636
        %644 = vmatpush.msra.mxu0 %v635
        %645 = vmatpush.msra.mxu0 %v634
        %646 = vmatpush.msra.mxu0 %v633
        %647 = vmatpush.msra.mxu0 %v632
        %648 = vmatpush.msra.mxu0 %v631
        %649 = vmatpush.msra.mxu0 %v630
        %650 = vmatpush.msra.mxu0 %v629
        %651 = vmatpush.msra.mxu0 %v628
        %652 = vmatpush.msra.mxu0 %v627
        %653 = vmatpush.msra.mxu0 %v626
        %654 = vmatpush.msra.mxu0 %v625
        %655 = vmatpush.msra.mxu0 %v624
        %656 = vmatpush.msra.mxu0 %v623
        %657 = vmatpush.msra.mxu0 %v622
        %658 = vmatmul.f32.gmra.mxu0 %v621
        %v659 = vpop.f32.mrf.mxu0
        %v660 = vadd.f32 %v640, %v659
        %661 = vdwg.mxu0
        %vm662 = vcmp.gt.f32.partialorder %v660, 0.0
        %v663 = vmul.f32 %v660, 0.2
        %v664 = vsel %vm662, %v660, %v663
        %v665 = vld [vmem:[%s3] sm:$0xff]
        %v666 = vld [vmem:[%s3 + $0x8] sm:$0xff]
        %v667 = vld [vmem:[%s3 + $0x10] sm:$0xff]
        %v668 = vld [vmem:[%s3 + $0x18] sm:$0xff]
        %v669 = vld [vmem:[%s3 + $0x20] sm:$0xff]
        %v670 = vld [vmem:[%s3 + $0x28] sm:$0xff]
        %v671 = vld [vmem:[%s3 + $0x30] sm:$0xff]
        %v672 = vld [vmem:[%s3 + $0x38] sm:$0xff]
        %v673 = vld [vmem:[%s3 + $0x40] sm:$0xff]
        %v674 = vld [vmem:[%s3 + $0x48] sm:$0xff]
        %v675 = vld [vmem:[%s3 + $0x50] sm:$0xff]
        %v676 = vld [vmem:[%s3 + $0x58] sm:$0xff]
        %v677 = vld [vmem:[%s3 + $0x60] sm:$0xff]
        %v678 = vld [vmem:[%s3 + $0x68] sm:$0xff]
        %v679 = vld [vmem:[%s3 + $0x70] sm:$0xff]
        %v680 = vld [vmem:[%s3 + $0x78] sm:$0xff]
        %v681 = vld [vmem:[%s4] sm:$0x1]
        %v683 = vperm.slane %v681, 0
        %685 = vmatpush.msra.mxu0 %v680
        %686 = vmatpush.msra.mxu0 %v679
        %687 = vmatpush.msra.mxu0 %v678
        %688 = vmatpush.msra.mxu0 %v677
        %689 = vmatpush.msra.mxu0 %v676
        %690 = vmatpush.msra.mxu0 %v675
        %691 = vmatpush.msra.mxu0 %v674
        %692 = vmatpush.msra.mxu0 %v673
        %693 = vmatpush.msra.mxu0 %v672
        %694 = vmatpush.msra.mxu0 %v671
        %695 = vmatpush.msra.mxu0 %v670
        %696 = vmatpush.msra.mxu0 %v669
        %697 = vmatpush.msra.mxu0 %v668
        %698 = vmatpush.msra.mxu0 %v667
        %699 = vmatpush.msra.mxu0 %v666
        %700 = vmatpush.msra.mxu0 %v665
        %701 = vmatmul.f32.gmra.mxu0 %v664
        %v702 = vpop.f32.mrf.mxu0
        %v703 = vadd.f32 %v683, %v702
        %704 = vdwg.mxu0
        %v705 = vadd.f32 %v703, %v617
        %vm706 = vcmp.gt.f32.partialorder %v705, 0.0
        %v707 = vmul.f32 %v705, 0.2
        %v708 = vsel %vm706, %v705, %v707
        %v709 = vld [vmem:[%s7] sm:$0xff]
        %v710 = vld [vmem:[%s7 + $0x8] sm:$0xff]
        %v711 = vld [vmem:[%s7 + $0x10] sm:$0xff]
        %v712 = vld [vmem:[%s7 + $0x18] sm:$0xff]
        %v713 = vld [vmem:[%s7 + $0x20] sm:$0xff]
        %v714 = vld [vmem:[%s7 + $0x28] sm:$0xff]
        %v715 = vld [vmem:[%s7 + $0x30] sm:$0xff]
        %v716 = vld [vmem:[%s7 + $0x38] sm:$0xff]
        %v717 = vld [vmem:[%s7 + $0x40] sm:$0xff]
        %v718 = vld [vmem:[%s7 + $0x48] sm:$0xff]
        %v719 = vld [vmem:[%s7 + $0x50] sm:$0xff]
        %v720 = vld [vmem:[%s7 + $0x58] sm:$0xff]
        %v721 = vld [vmem:[%s7 + $0x60] sm:$0xff]
        %v722 = vld [vmem:[%s7 + $0x68] sm:$0xff]
        %v723 = vld [vmem:[%s7 + $0x70] sm:$0xff]
        %v724 = vld [vmem:[%s7 + $0x78] sm:$0xff]
        %v725 = vld [vmem:[%s8] sm:$0x1]
        %v727 = vperm.slane %v725, 0
        %729 = vmatpush.msra.mxu0 %v724
        %730 = vmatpush.msra.mxu0 %v723
        %731 = vmatpush.msra.mxu0 %v722
        %732 = vmatpush.msra.mxu0 %v721
        %733 = vmatpush.msra.mxu0 %v720
        %734 = vmatpush.msra.mxu0 %v719
        %735 = vmatpush.msra.mxu0 %v718
        %736 = vmatpush.msra.mxu0 %v717
        %737 = vmatpush.msra.mxu0 %v716
        %738 = vmatpush.msra.mxu0 %v715
        %739 = vmatpush.msra.mxu0 %v714
        %740 = vmatpush.msra.mxu0 %v713
        %741 = vmatpush.msra.mxu0 %v712
        %742 = vmatpush.msra.mxu0 %v711
        %743 = vmatpush.msra.mxu0 %v710
        %744 = vmatpush.msra.mxu0 %v709
        %745 = vmatmul.f32.gmra.mxu0 %v708
        %v746 = vpop.f32.mrf.mxu0
        %v747 = vadd.f32 %v727, %v746
        %748 = vdwg.mxu0
        %vm749 = vcmp.gt.f32.partialorder %v747, 0.0
        %v750 = vmul.f32 %v747, 0.2
        %v751 = vsel %vm749, %v747, %v750
        %v752 = vld [vmem:[%s9] sm:$0xff]
        %v753 = vld [vmem:[%s9 + $0x8] sm:$0xff]
        %v754 = vld [vmem:[%s9 + $0x10] sm:$0xff]
        %v755 = vld [vmem:[%s9 + $0x18] sm:$0xff]
        %v756 = vld [vmem:[%s9 + $0x20] sm:$0xff]
        %v757 = vld [vmem:[%s9 + $0x28] sm:$0xff]
        %v758 = vld [vmem:[%s9 + $0x30] sm:$0xff]
        %v759 = vld [vmem:[%s9 + $0x38] sm:$0xff]
        %v760 = vld [vmem:[%s9 + $0x40] sm:$0xff]
        %v761 = vld [vmem:[%s9 + $0x48] sm:$0xff]
        %v762 = vld [vmem:[%s9 + $0x50] sm:$0xff]
        %v763 = vld [vmem:[%s9 + $0x58] sm:$0xff]
        %v764 = vld [vmem:[%s9 + $0x60] sm:$0xff]
        %v765 = vld [vmem:[%s9 + $0x68] sm:$0xff]
        %v766 = vld [vmem:[%s9 + $0x70] sm:$0xff]
        %v767 = vld [vmem:[%s9 + $0x78] sm:$0xff]
        %v768 = vld [vmem:[%s10] sm:$0x1]
        %v770 = vperm.slane %v768, 0
        %772 = vmatpush.msra.mxu0 %v767
        %773 = vmatpush.msra.mxu0 %v766
        %774 = vmatpush.msra.mxu0 %v765
        %775 = vmatpush.msra.mxu0 %v764
        %776 = vmatpush.msra.mxu0 %v763
        %777 = vmatpush.msra.mxu0 %v762
        %778 = vmatpush.msra.mxu0 %v761
        %779 = vmatpush.msra.mxu0 %v760
        %780 = vmatpush.msra.mxu0 %v759
        %781 = vmatpush.msra.mxu0 %v758
        %782 = vmatpush.msra.mxu0 %v757
        %783 = vmatpush.msra.mxu0 %v756
        %784 = vmatpush.msra.mxu0 %v755
        %785 = vmatpush.msra.mxu0 %v754
        %786 = vmatpush.msra.mxu0 %v753
        %787 = vmatpush.msra.mxu0 %v752
        %788 = vmatmul.f32.gmra.mxu0 %v751
        %v789 = vpop.f32.mrf.mxu0
        %v790 = vadd.f32 %v770, %v789
        %791 = vdwg.mxu0
        %v792 = vadd.f32 %v790, %v705
        %vm793 = vcmp.gt.f32.partialorder %v792, 0.0
        %v794 = vmul.f32 %v792, 0.2
        %v795 = vsel %vm793, %v792, %v794
        %v796 = vld [vmem:[%s11] sm:$0xff]
        %v797 = vld [vmem:[%s11 + $0x8] sm:$0xff]
        %v798 = vld [vmem:[%s11 + $0x10] sm:$0xff]
        %v799 = vld [vmem:[%s11 + $0x18] sm:$0xff]
        %v800 = vld [vmem:[%s11 + $0x20] sm:$0xff]
        %v801 = vld [vmem:[%s11 + $0x28] sm:$0xff]
        %v802 = vld [vmem:[%s11 + $0x30] sm:$0xff]
        %v803 = vld [vmem:[%s11 + $0x38] sm:$0xff]
        %v804 = vld [vmem:[%s11 + $0x40] sm:$0xff]
        %v805 = vld [vmem:[%s11 + $0x48] sm:$0xff]
        %v806 = vld [vmem:[%s11 + $0x50] sm:$0xff]
        %v807 = vld [vmem:[%s11 + $0x58] sm:$0xff]
        %v808 = vld [vmem:[%s11 + $0x60] sm:$0xff]
        %v809 = vld [vmem:[%s11 + $0x68] sm:$0xff]
        %v810 = vld [vmem:[%s11 + $0x70] sm:$0xff]
        %v811 = vld [vmem:[%s11 + $0x78] sm:$0xff]
        %v812 = vld [vmem:[%s12] sm:$0x1]
        %v814 = vperm.slane %v812, 0
        %816 = vmatpush.msra.mxu0 %v811
        %817 = vmatpush.msra.mxu0 %v810
        %818 = vmatpush.msra.mxu0 %v809
        %819 = vmatpush.msra.mxu0 %v808
        %820 = vmatpush.msra.mxu0 %v807
        %821 = vmatpush.msra.mxu0 %v806
        %822 = vmatpush.msra.mxu0 %v805
        %823 = vmatpush.msra.mxu0 %v804
        %824 = vmatpush.msra.mxu0 %v803
        %825 = vmatpush.msra.mxu0 %v802
        %826 = vmatpush.msra.mxu0 %v801
        %827 = vmatpush.msra.mxu0 %v800
        %828 = vmatpush.msra.mxu0 %v799
        %829 = vmatpush.msra.mxu0 %v798
        %830 = vmatpush.msra.mxu0 %v797
        %831 = vmatpush.msra.mxu0 %v796
        %832 = vmatmul.f32.gmra.mxu0 %v795
        %v833 = vpop.f32.mrf.mxu0
        %v834 = vadd.f32 %v814, %v833
        %835 = vdwg.mxu0
        %vm836 = vcmp.gt.f32.partialorder %v834, 0.0
        %v837 = vmul.f32 %v834, 0.2
        %v838 = vsel %vm836, %v834, %v837
        %v839 = vld [vmem:[#allocation2] sm:$0xff]
        %v840 = vld [vmem:[#allocation2 + $0x8] sm:$0xff]
        %v841 = vld [vmem:[#allocation2 + $0x10] sm:$0xff]
        %v842 = vld [vmem:[#allocation2 + $0x18] sm:$0xff]
        %v843 = vld [vmem:[#allocation2 + $0x20] sm:$0xff]
        %v844 = vld [vmem:[#allocation2 + $0x28] sm:$0xff]
        %v845 = vld [vmem:[#allocation2 + $0x30] sm:$0xff]
        %v846 = vld [vmem:[#allocation2 + $0x38] sm:$0xff]
        %v847 = vld [vmem:[#allocation2 + $0x40] sm:$0xff]
        %v848 = vld [vmem:[#allocation2 + $0x48] sm:$0xff]
        %v849 = vld [vmem:[#allocation2 + $0x50] sm:$0xff]
        %v850 = vld [vmem:[#allocation2 + $0x58] sm:$0xff]
        %v851 = vld [vmem:[#allocation2 + $0x60] sm:$0xff]
        %v852 = vld [vmem:[#allocation2 + $0x68] sm:$0xff]
        %v853 = vld [vmem:[#allocation2 + $0x70] sm:$0xff]
        %v854 = vld [vmem:[#allocation2 + $0x78] sm:$0xff]
        %v855 = vld [vmem:[%s14] sm:$0x1]
        %v857 = vperm.slane %v855, 0
        %859 = vmatpush.msra.mxu0 %v854
        %860 = vmatpush.msra.mxu0 %v853
        %861 = vmatpush.msra.mxu0 %v852
        %862 = vmatpush.msra.mxu0 %v851
        %863 = vmatpush.msra.mxu0 %v850
        %864 = vmatpush.msra.mxu0 %v849
        %865 = vmatpush.msra.mxu0 %v848
        %866 = vmatpush.msra.mxu0 %v847
        %867 = vmatpush.msra.mxu0 %v846
        %868 = vmatpush.msra.mxu0 %v845
        %869 = vmatpush.msra.mxu0 %v844
        %870 = vmatpush.msra.mxu0 %v843
        %871 = vmatpush.msra.mxu0 %v842
        %872 = vmatpush.msra.mxu0 %v841
        %873 = vmatpush.msra.mxu0 %v840
        %874 = vmatpush.msra.mxu0 %v839
        %875 = vmatmul.f32.gmra.mxu0 %v838
        %v876 = vpop.f32.mrf.mxu0
        %v877 = vadd.f32 %v857, %v876
        %878 = vdwg.mxu0
        %v879 = vadd.f32 %v877, %v792
        %vm880 = vcmp.gt.f32.partialorder %v879, 0.0
        %v881 = vmul.f32 %v879, 0.2
        %v882 = vsel %vm880, %v879, %v881
        %v883 = vld [vmem:[#allocation4] sm:$0xff]
        %v884 = vld [vmem:[#allocation4 + $0x8] sm:$0xff]
        %v885 = vld [vmem:[#allocation4 + $0x10] sm:$0xff]
        %v886 = vld [vmem:[#allocation4 + $0x18] sm:$0xff]
        %v887 = vld [vmem:[#allocation4 + $0x20] sm:$0xff]
        %v888 = vld [vmem:[#allocation4 + $0x28] sm:$0xff]
        %v889 = vld [vmem:[#allocation4 + $0x30] sm:$0xff]
        %v890 = vld [vmem:[#allocation4 + $0x38] sm:$0xff]
        %v891 = vld [vmem:[#allocation4 + $0x40] sm:$0xff]
        %v892 = vld [vmem:[#allocation4 + $0x48] sm:$0xff]
        %v893 = vld [vmem:[#allocation4 + $0x50] sm:$0xff]
        %v894 = vld [vmem:[#allocation4 + $0x58] sm:$0xff]
        %v895 = vld [vmem:[#allocation4 + $0x60] sm:$0xff]
        %v896 = vld [vmem:[#allocation4 + $0x68] sm:$0xff]
        %v897 = vld [vmem:[#allocation4 + $0x70] sm:$0xff]
        %v898 = vld [vmem:[#allocation4 + $0x78] sm:$0xff]
        %v899 = vld [vmem:[%s16] sm:$0x1]
        %v901 = vperm.slane %v899, 0
        %903 = vmatpush.msra.mxu0 %v898
        %904 = vmatpush.msra.mxu0 %v897
        %905 = vmatpush.msra.mxu0 %v896
        %906 = vmatpush.msra.mxu0 %v895
        %907 = vmatpush.msra.mxu0 %v894
        %908 = vmatpush.msra.mxu0 %v893
        %909 = vmatpush.msra.mxu0 %v892
        %910 = vmatpush.msra.mxu0 %v891
        %911 = vmatpush.msra.mxu0 %v890
        %912 = vmatpush.msra.mxu0 %v889
        %913 = vmatpush.msra.mxu0 %v888
        %914 = vmatpush.msra.mxu0 %v887
        %915 = vmatpush.msra.mxu0 %v886
        %916 = vmatpush.msra.mxu0 %v885
        %917 = vmatpush.msra.mxu0 %v884
        %918 = vmatpush.msra.mxu0 %v883
        %919 = vmatmul.f32.gmra.mxu0 %v882
        %v920 = vpop.f32.mrf.mxu0
        %v921 = vadd.f32 %v901, %v920
        %922 = vdwg.mxu0
        %923 = vst [vmem:[%s577] sm:$0xff] %v921
        %p924 = scmp.lt.s32.totalorder %s30, 1
        %s925 = scalar_select %p924, %s30, 1
        %s926 = smul.addr %s925, 8
        %s927 = scalar_lea.vmem %s17, %s926
        // Predicated region
        $region97: #{_lambda_.3} parent=87 // pred_check
          %p928 = pneg %p410
        $region98: #{_lambda_.3} parent=87 // pred_check_branch
          %930 = sbr.rel (%p928) target = $region100
        $region99: #{_lambda_.3} parent=87 // pred_region
          _
        $region100: #{_lambda_.3} parent=87 // pred_fallthru
          _
      $region88: #{_lambda_.3} parent=5 // pred_fallthru
        _
      %p931 = scmp.le.s32.totalorder 2, %s25
      // Predicated region
      $region101: #{_lambda_.3} parent=5 // pred_check
        %p932 = pneg %p931
      $region102: #{_lambda_.3} parent=5 // pred_check_branch
        %934 = sbr.rel (%p932) target = $region104
      $region103: #{_lambda_.3} parent=5 // pred_region
        %s935 = ssub.s32 %s25, 2
        // Predicated region
        $region105: #{_lambda_.3} parent=103 // pred_check
          %p936 = pneg %p416
        $region106: #{_lambda_.3} parent=103 // pred_check_branch
          %938 = sbr.rel (%p936) target = $region108
        $region107: #{_lambda_.3} parent=103 // pred_region
          %p939 = scmp.lt.s32.totalorder %s31, 1
          %s940 = scalar_select %p939, %s31, 1
          %s941 = smul.addr %s940, 8
          %s942 = scalar_lea.vmem %s17, %s941
        $region108: #{_lambda_.3} parent=103 // pred_fallthru
          _
      $region104: #{_lambda_.3} parent=5 // pred_fallthru
        _
    $region6: #{_lambda_.3} parent=1 // loop_footer
      %s29 = sadd.s32 1, %s25
    $region7: #{_lambda_.3} parent=1 // loop_footer_branch
      %24 = sbr.rel target = $region3
    $region8: #{_lambda_.3} parent=1 // loop_exit
      _
    %943 = vsyncpa [#allocation3], 1
    %s944 = scalar_lea.sflag [#allocation3], 1
    %945 = vsyncpa %s944, 1
    %946 = vsyncpa [#allocation5], 1

</llo_original>
